<compile_context>
chip_gen: v5e
topology: v5e:2x2
jax: 0.10.0
libtpu: 0.0.40
codegen_flags: <defaults>
</compile_context>

<pallas_src>
import jax
import jax.numpy as jnp
from jax import lax
from jax.experimental import pallas as pl
from jax.experimental.pallas import tpu as pltpu

# ---- small config consistent with Encorder(src_dim, embed_dim, num_heads, pf_dim, target_dim, depth) ----
SRC_DIM = 96
EMBED_DIM = 128
NUM_HEADS = 8
HEAD_DIM = EMBED_DIM // NUM_HEADS          # 16
PF_DIM = 64
TARGET_DIM = 32
DEPTH = 2                                  # no effect in eval mode (see note above)
BATCH = 64
BATCH_TILE = 32                            # rows per grid step; grid = BATCH // BATCH_TILE

LN_EPS = 1e-5
BN_EPS = 1e-5

E = EMBED_DIM


def _offsets(widths):
    offs, o = [], 0
    for w in widths:
        offs.append(o)
        o += w
    return offs, o


# Column offsets inside the two parameter slabs (all multiples of 128 -> clean ref slices).
(_W_OFFS, W_TOTAL) = _offsets([E, 3 * E, E, E, E, E, E, E, E])
W_WE, W_QKV, W_WF, W_W1, W_W2, W_WH, W_WO, W_A, W_P = _W_OFFS
(_B_OFFS, B_TOTAL) = _offsets([E, 3 * E] + [E] * 9)
B_BE, B_QKV, B_BF, B_LN1G, B_LN1B, B_B1, B_B2, B_LN2G, B_LN2B, B_BH, B_BO = _B_OFFS


def _layernorm(x, g, b):
    mu = jnp.mean(x, axis=-1, keepdims=True)
    var = jnp.mean((x - mu) ** 2, axis=-1, keepdims=True)
    return (x - mu) * lax.rsqrt(var + LN_EPS) * g + b


def encoder_kernel(x_ref, w_ref, b_ref, out_ref):
    TB = x_ref.shape[0]
    f32 = jnp.float32
    bf16 = jnp.bfloat16

    def w(off, width=E):
        return w_ref[:, off:off + width]                  # bf16 weight block (load)

    def bias(off, width=E):
        return b_ref[:, off:off + width]                  # f32 (1, width)

    def mxu(act_f32, w_bf16):
        # f32 activations are cast to bf16 only at the MXU input; accumulate in f32.
        return jnp.dot(act_f32.astype(bf16), w_bf16, preferred_element_type=f32)

    # ---- embed_layer: x (TB, 96) @ We[:96, :] (96, 128) ----
    x = x_ref[...]
    embed = (jnp.dot(x.astype(bf16), w_ref[:SRC_DIM, W_WE:W_WE + E],
                     preferred_element_type=f32) + bias(B_BE))

    # ---- MultiHead_Attn (Dropout == identity in eval mode) ----
    # Fused Q/K/V projection (one MXU push, N = 384).  The 1/sqrt(head_dim) scale is
    # pre-folded into the K weights/bias at pack time.
    qkv = mxu(embed, w(W_QKV, 3 * E)) + bias(B_QKV, 3 * E)
    q = qkv[:, 0:E]
    k = qkv[:, E:2 * E]
    v = qkv[:, 2 * E:3 * E]

    # Constant 0/1 matrices packed in the slab:
    #   A[l', l] = [l'//16 == l//16]   (same head group)
    #   P[l', l] = [l'%16  == l%16 ]   (same within-group position)
    a_mat = w(W_A)
    p_mat = w(W_P)
    pos1h = p_mat[:HEAD_DIM, :].astype(f32)               # (16,128): pos1h[d, l] = [l%16 == d]

    # "Tiled-lane" attention: every tensor keeps the full 128-lane axis; head gather/scatter
    # and the h-contraction are lane-dense matmuls against the constant matrices (MXU is idle
    # anyway), everything else is VPU broadcast-multiply + reduce -- no relayouts.
    #   k_exp[(b,d), l] = k[b, (l//16)*16 + d]
    kmask = (k[:, None, :] * pos1h[None, :, :]).reshape(TB * HEAD_DIM, E)
    k_exp = jnp.dot(kmask.astype(bf16), a_mat, preferred_element_type=f32)
    #   e_t[(b,d), l] = energy[b, d, l%16]   (each of the 16 positions replicated 8x over lanes)
    y = (k_exp.reshape(TB, HEAD_DIM, E) * q[:, None, :]).reshape(TB * HEAD_DIM, E)
    e_t = jnp.dot(y.astype(bf16), p_mat, preferred_element_type=f32)

    # Softmax over the 16 real positions; the 128-lane sum counts each value NUM_HEADS times,
    # corrected on the (EUP) reciprocal.  Max over 128 lanes equals max over the 16 positions.
    e_t = e_t - jnp.max(e_t, axis=-1, keepdims=True)
    ex = jnp.exp(e_t)
    inv = pl.reciprocal(jnp.sum(ex, axis=-1, keepdims=True), approx=True)
    p_t = ex * (inv * float(NUM_HEADS))                    # (TB*16, 128) tiled probabilities

    #   s_grp[(b,d), l] = sum_e p[b,d,e] * v[b, (l//16)*16 + e]
    wv = (p_t.reshape(TB, HEAD_DIM, E) * v[:, None, :]).reshape(TB * HEAD_DIM, E)
    s_grp = jnp.dot(wv.astype(bf16), a_mat, preferred_element_type=f32)
    #   attn[b, h*16+d] = s_grp[(b,d), h*16+d]   (select sublane-row d within each lane group)
    attn = jnp.sum(s_grp.reshape(TB, HEAD_DIM, E) * pos1h[None, :, :], axis=1)
    attn = mxu(attn, w(W_WF)) + bias(B_BF)

    # ---- residual + self_attn_layer_norm ----
    s1 = _layernorm(embed + attn, bias(B_LN1G), bias(B_LN1B))

    # ---- PositionwiseFeedforwardLayer (pf dim zero-padded 64->128; pad lanes stay 0) ----
    hidden = jnp.maximum(mxu(s1, w(W_W1)) + bias(B_B1), 0.0)
    ff = mxu(hidden, w(W_W2)) + bias(B_B2)

    # ---- residual + ff_layer_norm ----
    s2 = _layernorm(s1 + ff, bias(B_LN2G), bias(B_LN2B))

    # ---- final head: weight_norm(Linear) with folded eval-BatchNorm -> ReLU -> Linear ----
    z = jnp.maximum(mxu(s2, w(W_WH)) + bias(B_BH), 0.0)
    out_ref[...] = (mxu(z, w(W_WO)) + bias(B_BO)).astype(out_ref.dtype)


def _cost_estimate(batch):
    mm_flops = 2 * batch * (SRC_DIM * E + E * 3 * E + 5 * E * E)     # projection / FF / head matmuls
    attn_flops = 3 * 2 * batch * HEAD_DIM * E * E                    # constant-matrix attention matmuls
    trans = batch * HEAD_DIM * E + 4 * batch * E                     # exp + rsqrt-ish
    bytes_accessed = (E * W_TOTAL * 2 + B_TOTAL * 4
                      + batch * SRC_DIM * 4 + batch * E * 4)
    return pl.CostEstimate(flops=int(mm_flops + attn_flops),
                           transcendentals=int(trans),
                           bytes_accessed=int(bytes_accessed))


@jax.jit
def encoder_forward(x, w_slab, b_slab):
    batch = x.shape[0]
    assert batch % BATCH_TILE == 0
    out = pl.pallas_call(
        encoder_kernel,
        out_shape=jax.ShapeDtypeStruct((batch, EMBED_DIM), jnp.float32),   # lane-dense output
        grid=(batch // BATCH_TILE,),
        in_specs=[
            pl.BlockSpec((BATCH_TILE, SRC_DIM), lambda i: (i, 0)),
            # Constant index_map: weight/bias slabs are DMA'd once and stay VMEM-resident
            # (effectively single-buffered) across all grid steps.
            pl.BlockSpec((EMBED_DIM, W_TOTAL), lambda i: (0, 0)),
            pl.BlockSpec((1, B_TOTAL), lambda i: (0, 0)),
        ],
        out_specs=pl.BlockSpec((BATCH_TILE, EMBED_DIM), lambda i: (i, 0)),
        compiler_params=pltpu.CompilerParams(dimension_semantics=("parallel",)),
        cost_estimate=_cost_estimate(batch),
    )(x, w_slab, b_slab)
    return out[:, :TARGET_DIM]


# -------------------- deterministic parameter init (synthetic, no checkpoint) --------------------
def init_params(key):
    keys = jax.random.split(key, 16)

    def linear(k, fan_in, fan_out):
        bound = fan_in ** -0.5
        kw, kb = jax.random.split(k)
        w = jax.random.uniform(kw, (fan_out, fan_in), jnp.float32, -bound, bound)  # torch layout
        b = jax.random.uniform(kb, (fan_out,), jnp.float32, -bound, bound)
        return w, b

    p = {}
    p['we'], p['be'] = linear(keys[0], SRC_DIM, EMBED_DIM)
    p['wq'], p['bq'] = linear(keys[1], EMBED_DIM, EMBED_DIM)
    p['wk'], p['bk'] = linear(keys[2], EMBED_DIM, EMBED_DIM)
    p['wv'], p['bv'] = linear(keys[3], EMBED_DIM, EMBED_DIM)
    p['wf'], p['bf'] = linear(keys[4], EMBED_DIM, EMBED_DIM)
    k5a, k5b = jax.random.split(keys[5])
    p['ln1g'] = 1.0 + 0.1 * jax.random.normal(k5a, (EMBED_DIM,), jnp.float32)
    p['ln1b'] = 0.1 * jax.random.normal(k5b, (EMBED_DIM,), jnp.float32)
    p['w1'], p['b1'] = linear(keys[6], EMBED_DIM, PF_DIM)
    p['w2'], p['b2'] = linear(keys[7], PF_DIM, EMBED_DIM)
    k8a, k8b = jax.random.split(keys[8])
    p['ln2g'] = 1.0 + 0.1 * jax.random.normal(k8a, (EMBED_DIM,), jnp.float32)
    p['ln2b'] = 0.1 * jax.random.normal(k8b, (EMBED_DIM,), jnp.float32)
    half = EMBED_DIM // 2
    p['fl_v'], p['fl_b'] = linear(keys[9], EMBED_DIM, half)       # weight_norm direction v
    p['fl_g'] = 1.0 + 0.1 * jax.random.normal(keys[10], (half,), jnp.float32)  # weight_norm gain
    kb1, kb2, kb3, kb4 = jax.random.split(keys[11], 4)
    p['bn_gamma'] = 1.0 + 0.1 * jax.random.normal(kb1, (half,), jnp.float32)
    p['bn_beta'] = 0.1 * jax.random.normal(kb2, (half,), jnp.float32)
    p['bn_mean'] = 0.1 * jax.random.normal(kb3, (half,), jnp.float32)
    p['bn_var'] = 1.0 + 0.1 * jnp.abs(jax.random.normal(kb4, (half,), jnp.float32))
    p['wo'], p['bo'] = linear(keys[12], half, TARGET_DIM)
    return p


def pack_kernel_args(p):
    """Glue: transpose torch-layout weights, fold weight_norm + eval-mode BatchNorm1d into the
    head Linear, fold the attention 1/sqrt(head_dim) scale into the K projection, zero-pad to
    lane-dense widths, append the constant head gather/scatter matrices (A, P), and concatenate
    everything into one bf16 weight slab + one f32 bias slab."""
    def t(w):
        return jnp.asarray(w, jnp.float32).T

    half = EMBED_DIM // 2
    inv_scale = 1.0 / float(HEAD_DIM) ** 0.5

    we_p = jnp.pad(t(p['we']), ((0, E - SRC_DIM), (0, 0)))               # (128,128)
    wqkv = jnp.concatenate([t(p['wq']), t(p['wk']) * inv_scale, t(p['wv'])], axis=1)  # (128,384)
    bqkv = jnp.concatenate([p['bq'], p['bk'] * inv_scale, p['bv']])      # (384,)

    w1_p = jnp.pad(t(p['w1']), ((0, 0), (0, E - PF_DIM)))                # (128,128)
    b1_p = jnp.pad(p['b1'], (0, E - PF_DIM))
    w2_p = jnp.pad(t(p['w2']), ((0, E - PF_DIM), (0, 0)))                # (128,128)

    # weight_norm(dim=0) fold + eval-mode BatchNorm1d fold into the head Linear
    vmat, g = p['fl_v'], p['fl_g']
    w_head = g[:, None] * vmat / jnp.linalg.norm(vmat, axis=1, keepdims=True)  # (half, 128)
    bn_scale = p['bn_gamma'] / jnp.sqrt(p['bn_var'] + BN_EPS)
    bn_shift = p['bn_beta'] - p['bn_mean'] * bn_scale
    wh = t(w_head) * bn_scale[None, :]                                   # (128, half)
    bh = p['fl_b'] * bn_scale + bn_shift                                 # (half,)
    wh_p = jnp.pad(wh, ((0, 0), (0, E - half)))                          # (128,128)
    bh_p = jnp.pad(bh, (0, E - half))
    wo_p = jnp.pad(t(p['wo']), ((0, E - half), (0, E - TARGET_DIM)))     # (128,128)
    bo_p = jnp.pad(p['bo'], (0, E - TARGET_DIM))

    # Constant 0/1 matrices for the tiled-lane attention (exact in bf16):
    lane = jnp.arange(E)
    a_mat = (lane[:, None] // HEAD_DIM == lane[None, :] // HEAD_DIM).astype(jnp.float32)
    p_mat = (lane[:, None] % HEAD_DIM == lane[None, :] % HEAD_DIM).astype(jnp.float32)

    w_slab = jnp.concatenate(
        [we_p, wqkv, t(p['wf']), w1_p, w2_p, wh_p, wo_p, a_mat, p_mat],
        axis=1).astype(jnp.bfloat16)                                     # (128, 1408) bf16
    b_slab = jnp.concatenate(
        [p['be'], bqkv, p['bf'], p['ln1g'], p['ln1b'], b1_p, p['b2'],
         p['ln2g'], p['ln2b'], bh_p, bo_p]).reshape(1, -1).astype(jnp.float32)  # (1, 1664) f32
    assert w_slab.shape == (E, W_TOTAL) and b_slab.shape == (1, B_TOTAL)
    return w_slab, b_slab


# -------------------- pure-JAX reference (mirrors the torch ops, uses RAW f32 params) --------------------
def reference_forward(x, p):
    def ln(t, g, b):
        mu = jnp.mean(t, -1, keepdims=True)
        var = jnp.mean((t - mu) ** 2, -1, keepdims=True)
        return (t - mu) / jnp.sqrt(var + LN_EPS) * g + b

    B = x.shape[0]
    embed = x @ p['we'].T + p['be']
    q = (embed @ p['wq'].T + p['bq']).reshape(B, NUM_HEADS, HEAD_DIM)
    k = (embed @ p['wk'].T + p['bk']).reshape(B, NUM_HEADS, HEAD_DIM)
    v = (embed @ p['wv'].T + p['bv']).reshape(B, NUM_HEADS, HEAD_DIM)
    energy = jnp.einsum('bhd,bhe->bde', k, q) / jnp.sqrt(jnp.float32(HEAD_DIM))
    pr = jax.nn.softmax(energy, axis=-1)
    f = jnp.einsum('bde,bhe->bdh', pr, v)
    attn = jnp.transpose(f, (0, 2, 1)).reshape(B, EMBED_DIM) @ p['wf'].T + p['bf']
    s = ln(embed + attn, p['ln1g'], p['ln1b'])
    ff = jnp.maximum(s @ p['w1'].T + p['b1'], 0.0) @ p['w2'].T + p['b2']
    s2 = ln(s + ff, p['ln2g'], p['ln2b'])
    vmat = p['fl_v']
    w_head = p['fl_g'][:, None] * vmat / jnp.linalg.norm(vmat, axis=1, keepdims=True)
    z = s2 @ w_head.T + p['fl_b']
    z = (z - p['bn_mean']) / jnp.sqrt(p['bn_var'] + BN_EPS) * p['bn_gamma'] + p['bn_beta']
    z = jnp.maximum(z, 0.0)
    return z @ p['wo'].T + p['bo']


if __name__ == "__main__":
    key = jax.random.PRNGKey(0)
    kx, kp = jax.random.split(key)
    x = jax.random.normal(kx, (BATCH, SRC_DIM), jnp.float32)
    params = init_params(kp)
    w_slab, b_slab = pack_kernel_args(params)

    out = jax.block_until_ready(encoder_forward(x, w_slab, b_slab))
    assert out.shape == (BATCH, TARGET_DIM)

    ref = reference_forward(x, params)
    if not jnp.allclose(out, ref, rtol=5e-2, atol=5e-2):
        max_err = float(jnp.max(jnp.abs(out - ref)))
        raise AssertionError(
            f"Pallas kernel output does not match pure-JAX reference (max abs err {max_err})")
    print("KERNEL_OK")
</pallas_src>

<mosaic_0001>
module attributes {stable_mosaic.version = 11 : i64} {
  func.func @encoder_kernel(%arg0: i32, %arg1: memref<32x96xf32, #tpu.memory_space<vmem>>, %arg2: memref<128x1408xbf16, #tpu.memory_space<vmem>>, %arg3: memref<1x1664xf32, #tpu.memory_space<vmem>>, %arg4: memref<32x128xf32, #tpu.memory_space<vmem>>) attributes {dimension_semantics = [#tpu.dimension_semantics<parallel>], iteration_bounds = array<i64: 2>, scalar_prefetch = 0 : i64, scratch_operands = 0 : i64, tpu.core_type = #tpu.core_type<tc>, window_params = [{transform_indices = @transform_0, window_bounds = array<i64: 32, 96>}, {pipeline_mode = #tpu.pipeline_mode<synchronous>, transform_indices = @transform_1, window_bounds = array<i64: 128, 1408>}, {pipeline_mode = #tpu.pipeline_mode<synchronous>, transform_indices = @transform_2, window_bounds = array<i64: 1, 1664>}, {transform_indices = @transform_3, window_bounds = array<i64: 32, 128>}]} {
    %c0 = arith.constant 0 : index
    %c0_0 = arith.constant 0 : index
    %0 = vector.load %arg1[%c0, %c0_0] : memref<32x96xf32, #tpu.memory_space<vmem>>, vector<32x96xf32>
    %1 = arith.truncf %0 : vector<32x96xf32> to vector<32x96xbf16>
    %c0_1 = arith.constant 0 : index
    %c0_2 = arith.constant 0 : index
    %2 = vector.load %arg2[%c0_1, %c0_2] : memref<128x1408xbf16, #tpu.memory_space<vmem>>, vector<96x128xbf16>
    %cst = arith.constant dense<0.000000e+00> : vector<32x128xf32>
    %3 = tpu.matmul %1, %2, %cst {dimension_numbers = #tpu.dot_dimension_numbers<[1], [0], [0], [1], [0, 0, 1, 1], [], []>} : vector<32x96xbf16>, vector<96x128xbf16>, vector<32x128xf32> -> vector<32x128xf32>
    %c0_3 = arith.constant 0 : index
    %c0_4 = arith.constant 0 : index
    %4 = vector.load %arg3[%c0_3, %c0_4] : memref<1x1664xf32, #tpu.memory_space<vmem>>, vector<1x128xf32>
    %5 = vector.broadcast %4 : vector<1x128xf32> to vector<32x128xf32>
    %6 = arith.addf %3, %5 : vector<32x128xf32>
    %c0_5 = arith.constant 0 : index
    %c128 = arith.constant 128 : index
    %7 = vector.load %arg2[%c0_5, %c128] : memref<128x1408xbf16, #tpu.memory_space<vmem>>, vector<128x384xbf16>
    %8 = arith.truncf %6 : vector<32x128xf32> to vector<32x128xbf16>
    %cst_6 = arith.constant dense<0.000000e+00> : vector<32x384xf32>
    %9 = tpu.matmul %8, %7, %cst_6 {dimension_numbers = #tpu.dot_dimension_numbers<[1], [0], [0], [1], [0, 0, 1, 1], [], []>} : vector<32x128xbf16>, vector<128x384xbf16>, vector<32x384xf32> -> vector<32x384xf32>
    %c0_7 = arith.constant 0 : index
    %c128_8 = arith.constant 128 : index
    %10 = vector.load %arg3[%c0_7, %c128_8] : memref<1x1664xf32, #tpu.memory_space<vmem>>, vector<1x384xf32>
    %11 = vector.broadcast %10 : vector<1x384xf32> to vector<32x384xf32>
    %12 = arith.addf %9, %11 : vector<32x384xf32>
    %13 = vector.extract_strided_slice %12 {offsets = [0, 0], sizes = [32, 128], strides = [1, 1]} : vector<32x384xf32> to vector<32x128xf32>
    %14 = vector.extract_strided_slice %12 {offsets = [0, 128], sizes = [32, 128], strides = [1, 1]} : vector<32x384xf32> to vector<32x128xf32>
    %15 = vector.extract_strided_slice %12 {offsets = [0, 256], sizes = [32, 128], strides = [1, 1]} : vector<32x384xf32> to vector<32x128xf32>
    %c0_9 = arith.constant 0 : index
    %c1152 = arith.constant 1152 : index
    %16 = vector.load %arg2[%c0_9, %c1152] : memref<128x1408xbf16, #tpu.memory_space<vmem>>, vector<128x128xbf16>
    %c0_10 = arith.constant 0 : index
    %c1280 = arith.constant 1280 : index
    %17 = vector.load %arg2[%c0_10, %c1280] : memref<128x1408xbf16, #tpu.memory_space<vmem>>, vector<128x128xbf16>
    %18 = vector.extract_strided_slice %17 {offsets = [0, 0], sizes = [16, 128], strides = [1, 1]} : vector<128x128xbf16> to vector<16x128xbf16>
    %19 = arith.extf %18 : vector<16x128xbf16> to vector<16x128xf32>
    %20 = vector.shape_cast %14 : vector<32x128xf32> to vector<32x1x128xf32>
    %21 = vector.shape_cast %19 : vector<16x128xf32> to vector<1x16x128xf32>
    %22 = vector.broadcast %20 : vector<32x1x128xf32> to vector<32x16x128xf32>
    %23 = vector.broadcast %21 : vector<1x16x128xf32> to vector<32x16x128xf32>
    %24 = arith.mulf %22, %23 : vector<32x16x128xf32>
    %25 = vector.shape_cast %24 : vector<32x16x128xf32> to vector<512x128xf32>
    %26 = arith.truncf %25 : vector<512x128xf32> to vector<512x128xbf16>
    %cst_11 = arith.constant dense<0.000000e+00> : vector<512x128xf32>
    %27 = tpu.matmul %26, %16, %cst_11 {dimension_numbers = #tpu.dot_dimension_numbers<[1], [0], [0], [1], [0, 0, 1, 1], [], []>} : vector<512x128xbf16>, vector<128x128xbf16>, vector<512x128xf32> -> vector<512x128xf32>
    %28 = vector.shape_cast %27 : vector<512x128xf32> to vector<32x16x128xf32>
    %29 = vector.shape_cast %13 : vector<32x128xf32> to vector<32x1x128xf32>
    %30 = vector.broadcast %29 : vector<32x1x128xf32> to vector<32x16x128xf32>
    %31 = arith.mulf %28, %30 : vector<32x16x128xf32>
    %32 = vector.shape_cast %31 : vector<32x16x128xf32> to vector<512x128xf32>
    %33 = arith.truncf %32 : vector<512x128xf32> to vector<512x128xbf16>
    %cst_12 = arith.constant dense<0.000000e+00> : vector<512x128xf32>
    %34 = tpu.matmul %33, %17, %cst_12 {dimension_numbers = #tpu.dot_dimension_numbers<[1], [0], [0], [1], [0, 0, 1, 1], [], []>} : vector<512x128xbf16>, vector<128x128xbf16>, vector<512x128xf32> -> vector<512x128xf32>
    %cst_13 = arith.constant dense<0xFF800000> : vector<512xf32>
    %35 = vector.multi_reduction <maximumf>, %34, %cst_13 [1] : vector<512x128xf32> to vector<512xf32>
    %36 = vector.shape_cast %35 : vector<512xf32> to vector<512x1xf32>
    %37 = vector.broadcast %36 : vector<512x1xf32> to vector<512x128xf32>
    %38 = arith.subf %34, %37 : vector<512x128xf32>
    %39 = math.exp %38 : vector<512x128xf32>
    %cst_14 = arith.constant dense<0.000000e+00> : vector<512xf32>
    %40 = vector.multi_reduction <add>, %39, %cst_14 [1] : vector<512x128xf32> to vector<512xf32>
    %41 = vector.shape_cast %40 : vector<512xf32> to vector<512x1xf32>
    %42 = tpu.reciprocal %41 {approx = true} : vector<512x1xf32> -> vector<512x1xf32>
    %cst_15 = arith.constant 8.000000e+00 : f32
    %43 = vector.broadcast %cst_15 : f32 to vector<512x1xf32>
    %44 = arith.mulf %42, %43 : vector<512x1xf32>
    %45 = vector.broadcast %44 : vector<512x1xf32> to vector<512x128xf32>
    %46 = arith.mulf %39, %45 : vector<512x128xf32>
    %47 = vector.shape_cast %46 : vector<512x128xf32> to vector<32x16x128xf32>
    %48 = vector.shape_cast %15 : vector<32x128xf32> to vector<32x1x128xf32>
    %49 = vector.broadcast %48 : vector<32x1x128xf32> to vector<32x16x128xf32>
    %50 = arith.mulf %47, %49 : vector<32x16x128xf32>
    %51 = vector.shape_cast %50 : vector<32x16x128xf32> to vector<512x128xf32>
    %52 = arith.truncf %51 : vector<512x128xf32> to vector<512x128xbf16>
    %cst_16 = arith.constant dense<0.000000e+00> : vector<512x128xf32>
    %53 = tpu.matmul %52, %16, %cst_16 {dimension_numbers = #tpu.dot_dimension_numbers<[1], [0], [0], [1], [0, 0, 1, 1], [], []>} : vector<512x128xbf16>, vector<128x128xbf16>, vector<512x128xf32> -> vector<512x128xf32>
    %54 = vector.shape_cast %53 : vector<512x128xf32> to vector<32x16x128xf32>
    %55 = vector.shape_cast %19 : vector<16x128xf32> to vector<1x16x128xf32>
    %56 = vector.broadcast %55 : vector<1x16x128xf32> to vector<32x16x128xf32>
    %57 = arith.mulf %54, %56 : vector<32x16x128xf32>
    %cst_17 = arith.constant dense<0.000000e+00> : vector<32x128xf32>
    %58 = vector.multi_reduction <add>, %57, %cst_17 [1] : vector<32x16x128xf32> to vector<32x128xf32>
    %c0_18 = arith.constant 0 : index
    %c512 = arith.constant 512 : index
    %59 = vector.load %arg2[%c0_18, %c512] : memref<128x1408xbf16, #tpu.memory_space<vmem>>, vector<128x128xbf16>
    %60 = arith.truncf %58 : vector<32x128xf32> to vector<32x128xbf16>
    %cst_19 = arith.constant dense<0.000000e+00> : vector<32x128xf32>
    %61 = tpu.matmul %60, %59, %cst_19 {dimension_numbers = #tpu.dot_dimension_numbers<[1], [0], [0], [1], [0, 0, 1, 1], [], []>} : vector<32x128xbf16>, vector<128x128xbf16>, vector<32x128xf32> -> vector<32x128xf32>
    %c0_20 = arith.constant 0 : index
    %c512_21 = arith.constant 512 : index
    %62 = vector.load %arg3[%c0_20, %c512_21] : memref<1x1664xf32, #tpu.memory_space<vmem>>, vector<1x128xf32>
    %63 = vector.broadcast %62 : vector<1x128xf32> to vector<32x128xf32>
    %64 = arith.addf %61, %63 : vector<32x128xf32>
    %65 = arith.addf %6, %64 : vector<32x128xf32>
    %c0_22 = arith.constant 0 : index
    %c640 = arith.constant 640 : index
    %66 = vector.load %arg3[%c0_22, %c640] : memref<1x1664xf32, #tpu.memory_space<vmem>>, vector<1x128xf32>
    %c0_23 = arith.constant 0 : index
    %c768 = arith.constant 768 : index
    %67 = vector.load %arg3[%c0_23, %c768] : memref<1x1664xf32, #tpu.memory_space<vmem>>, vector<1x128xf32>
    %cst_24 = arith.constant dense<0.000000e+00> : vector<32xf32>
    %68 = vector.multi_reduction <add>, %65, %cst_24 [1] : vector<32x128xf32> to vector<32xf32>
    %69 = vector.shape_cast %68 : vector<32xf32> to vector<32x1xf32>
    %cst_25 = arith.constant 1.280000e+02 : f32
    %70 = vector.broadcast %cst_25 : f32 to vector<32x1xf32>
    %71 = arith.divf %69, %70 : vector<32x1xf32>
    %72 = vector.broadcast %71 : vector<32x1xf32> to vector<32x128xf32>
    %73 = arith.subf %65, %72 : vector<32x128xf32>
    %74 = arith.mulf %73, %73 : vector<32x128xf32>
    %cst_26 = arith.constant dense<0.000000e+00> : vector<32xf32>
    %75 = vector.multi_reduction <add>, %74, %cst_26 [1] : vector<32x128xf32> to vector<32xf32>
    %76 = vector.shape_cast %75 : vector<32xf32> to vector<32x1xf32>
    %cst_27 = arith.constant 1.280000e+02 : f32
    %77 = vector.broadcast %cst_27 : f32 to vector<32x1xf32>
    %78 = arith.divf %76, %77 : vector<32x1xf32>
    %79 = vector.broadcast %71 : vector<32x1xf32> to vector<32x128xf32>
    %80 = arith.subf %65, %79 : vector<32x128xf32>
    %cst_28 = arith.constant 9.99999974E-6 : f32
    %81 = vector.broadcast %cst_28 : f32 to vector<32x1xf32>
    %82 = arith.addf %78, %81 : vector<32x1xf32>
    %83 = math.rsqrt %82 : vector<32x1xf32>
    %84 = vector.broadcast %83 : vector<32x1xf32> to vector<32x128xf32>
    %85 = arith.mulf %80, %84 : vector<32x128xf32>
    %86 = vector.broadcast %66 : vector<1x128xf32> to vector<32x128xf32>
    %87 = arith.mulf %85, %86 : vector<32x128xf32>
    %88 = vector.broadcast %67 : vector<1x128xf32> to vector<32x128xf32>
    %89 = arith.addf %87, %88 : vector<32x128xf32>
    %c0_29 = arith.constant 0 : index
    %c640_30 = arith.constant 640 : index
    %90 = vector.load %arg2[%c0_29, %c640_30] : memref<128x1408xbf16, #tpu.memory_space<vmem>>, vector<128x128xbf16>
    %91 = arith.truncf %89 : vector<32x128xf32> to vector<32x128xbf16>
    %cst_31 = arith.constant dense<0.000000e+00> : vector<32x128xf32>
    %92 = tpu.matmul %91, %90, %cst_31 {dimension_numbers = #tpu.dot_dimension_numbers<[1], [0], [0], [1], [0, 0, 1, 1], [], []>} : vector<32x128xbf16>, vector<128x128xbf16>, vector<32x128xf32> -> vector<32x128xf32>
    %c0_32 = arith.constant 0 : index
    %c896 = arith.constant 896 : index
    %93 = vector.load %arg3[%c0_32, %c896] : memref<1x1664xf32, #tpu.memory_space<vmem>>, vector<1x128xf32>
    %94 = vector.broadcast %93 : vector<1x128xf32> to vector<32x128xf32>
    %95 = arith.addf %92, %94 : vector<32x128xf32>
    %cst_33 = arith.constant 0.000000e+00 : f32
    %96 = vector.broadcast %cst_33 : f32 to vector<32x128xf32>
    %97 = arith.maximumf %95, %96 : vector<32x128xf32>
    %c0_34 = arith.constant 0 : index
    %c768_35 = arith.constant 768 : index
    %98 = vector.load %arg2[%c0_34, %c768_35] : memref<128x1408xbf16, #tpu.memory_space<vmem>>, vector<128x128xbf16>
    %99 = arith.truncf %97 : vector<32x128xf32> to vector<32x128xbf16>
    %cst_36 = arith.constant dense<0.000000e+00> : vector<32x128xf32>
    %100 = tpu.matmul %99, %98, %cst_36 {dimension_numbers = #tpu.dot_dimension_numbers<[1], [0], [0], [1], [0, 0, 1, 1], [], []>} : vector<32x128xbf16>, vector<128x128xbf16>, vector<32x128xf32> -> vector<32x128xf32>
    %c0_37 = arith.constant 0 : index
    %c1024 = arith.constant 1024 : index
    %101 = vector.load %arg3[%c0_37, %c1024] : memref<1x1664xf32, #tpu.memory_space<vmem>>, vector<1x128xf32>
    %102 = vector.broadcast %101 : vector<1x128xf32> to vector<32x128xf32>
    %103 = arith.addf %100, %102 : vector<32x128xf32>
    %104 = arith.addf %89, %103 : vector<32x128xf32>
    %c0_38 = arith.constant 0 : index
    %c1152_39 = arith.constant 1152 : index
    %105 = vector.load %arg3[%c0_38, %c1152_39] : memref<1x1664xf32, #tpu.memory_space<vmem>>, vector<1x128xf32>
    %c0_40 = arith.constant 0 : index
    %c1280_41 = arith.constant 1280 : index
    %106 = vector.load %arg3[%c0_40, %c1280_41] : memref<1x1664xf32, #tpu.memory_space<vmem>>, vector<1x128xf32>
    %cst_42 = arith.constant dense<0.000000e+00> : vector<32xf32>
    %107 = vector.multi_reduction <add>, %104, %cst_42 [1] : vector<32x128xf32> to vector<32xf32>
    %108 = vector.shape_cast %107 : vector<32xf32> to vector<32x1xf32>
    %cst_43 = arith.constant 1.280000e+02 : f32
    %109 = vector.broadcast %cst_43 : f32 to vector<32x1xf32>
    %110 = arith.divf %108, %109 : vector<32x1xf32>
    %111 = vector.broadcast %110 : vector<32x1xf32> to vector<32x128xf32>
    %112 = arith.subf %104, %111 : vector<32x128xf32>
    %113 = arith.mulf %112, %112 : vector<32x128xf32>
    %cst_44 = arith.constant dense<0.000000e+00> : vector<32xf32>
    %114 = vector.multi_reduction <add>, %113, %cst_44 [1] : vector<32x128xf32> to vector<32xf32>
    %115 = vector.shape_cast %114 : vector<32xf32> to vector<32x1xf32>
    %cst_45 = arith.constant 1.280000e+02 : f32
    %116 = vector.broadcast %cst_45 : f32 to vector<32x1xf32>
    %117 = arith.divf %115, %116 : vector<32x1xf32>
    %118 = vector.broadcast %110 : vector<32x1xf32> to vector<32x128xf32>
    %119 = arith.subf %104, %118 : vector<32x128xf32>
    %cst_46 = arith.constant 9.99999974E-6 : f32
    %120 = vector.broadcast %cst_46 : f32 to vector<32x1xf32>
    %121 = arith.addf %117, %120 : vector<32x1xf32>
    %122 = math.rsqrt %121 : vector<32x1xf32>
    %123 = vector.broadcast %122 : vector<32x1xf32> to vector<32x128xf32>
    %124 = arith.mulf %119, %123 : vector<32x128xf32>
    %125 = vector.broadcast %105 : vector<1x128xf32> to vector<32x128xf32>
    %126 = arith.mulf %124, %125 : vector<32x128xf32>
    %127 = vector.broadcast %106 : vector<1x128xf32> to vector<32x128xf32>
    %128 = arith.addf %126, %127 : vector<32x128xf32>
    %c0_47 = arith.constant 0 : index
    %c896_48 = arith.constant 896 : index
    %129 = vector.load %arg2[%c0_47, %c896_48] : memref<128x1408xbf16, #tpu.memory_space<vmem>>, vector<128x128xbf16>
    %130 = arith.truncf %128 : vector<32x128xf32> to vector<32x128xbf16>
    %cst_49 = arith.constant dense<0.000000e+00> : vector<32x128xf32>
    %131 = tpu.matmul %130, %129, %cst_49 {dimension_numbers = #tpu.dot_dimension_numbers<[1], [0], [0], [1], [0, 0, 1, 1], [], []>} : vector<32x128xbf16>, vector<128x128xbf16>, vector<32x128xf32> -> vector<32x128xf32>
    %c0_50 = arith.constant 0 : index
    %c1408 = arith.constant 1408 : index
    %132 = vector.load %arg3[%c0_50, %c1408] : memref<1x1664xf32, #tpu.memory_space<vmem>>, vector<1x128xf32>
    %133 = vector.broadcast %132 : vector<1x128xf32> to vector<32x128xf32>
    %134 = arith.addf %131, %133 : vector<32x128xf32>
    %cst_51 = arith.constant 0.000000e+00 : f32
    %135 = vector.broadcast %cst_51 : f32 to vector<32x128xf32>
    %136 = arith.maximumf %134, %135 : vector<32x128xf32>
    %c0_52 = arith.constant 0 : index
    %c1024_53 = arith.constant 1024 : index
    %137 = vector.load %arg2[%c0_52, %c1024_53] : memref<128x1408xbf16, #tpu.memory_space<vmem>>, vector<128x128xbf16>
    %138 = arith.truncf %136 : vector<32x128xf32> to vector<32x128xbf16>
    %cst_54 = arith.constant dense<0.000000e+00> : vector<32x128xf32>
    %139 = tpu.matmul %138, %137, %cst_54 {dimension_numbers = #tpu.dot_dimension_numbers<[1], [0], [0], [1], [0, 0, 1, 1], [], []>} : vector<32x128xbf16>, vector<128x128xbf16>, vector<32x128xf32> -> vector<32x128xf32>
    %c0_55 = arith.constant 0 : index
    %c1536 = arith.constant 1536 : index
    %140 = vector.load %arg3[%c0_55, %c1536] : memref<1x1664xf32, #tpu.memory_space<vmem>>, vector<1x128xf32>
    %141 = vector.broadcast %140 : vector<1x128xf32> to vector<32x128xf32>
    %142 = arith.addf %139, %141 : vector<32x128xf32>
    %c0_56 = arith.constant 0 : index
    %c0_57 = arith.constant 0 : index
    %143 = vector.load %arg4[%c0_56, %c0_57] : memref<32x128xf32, #tpu.memory_space<vmem>>, vector<32x128xf32>
    tpu.vector_store %arg4[%c0_56, %c0_57], %142 {strides = array<i32>} : memref<32x128xf32, #tpu.memory_space<vmem>>, vector<32x128xf32>,
    return
  }
  func.func @transform_0(%arg0: i32) -> (i32, i32) {
    %c0_i32 = arith.constant 0 : i32
    %c0_i32_0 = arith.constant 0 : i32
    return %arg0, %c0_i32 : i32, i32
  }
  func.func @transform_1(%arg0: i32) -> (i32, i32) {
    %c0_i32 = arith.constant 0 : i32
    %c0_i32_0 = arith.constant 0 : i32
    %c0_i32_1 = arith.constant 0 : i32
    return %c0_i32, %c0_i32_0 : i32, i32
  }
  func.func @transform_2(%arg0: i32) -> (i32, i32) {
    %c0_i32 = arith.constant 0 : i32
    %c0_i32_0 = arith.constant 0 : i32
    %c0_i32_1 = arith.constant 0 : i32
    return %c0_i32, %c0_i32_0 : i32, i32
  }
  func.func @transform_3(%arg0: i32) -> (i32, i32) {
    %c0_i32 = arith.constant 0 : i32
    %c0_i32_0 = arith.constant 0 : i32
    return %arg0, %c0_i32 : i32, i32
  }
}

</mosaic_0001>

<llo_original>
// kernel: encoder_forward.1
$region0: #{encoder_forward.1}
  #allocation0 [shape = 'u32[]', space=smem, size = 0x4, offset = 0x4, fixed_abs, tag = 'smem constant byte address 0x4 - core index']
  #allocation1 [shape = 'u32[72,128]{1,0:T(1,128)}', space=vmem, size = 0x9000, scoped, tag = 'internal scratch']
  %s0 = inlined_call_operand.hbm [shape: f32[64,96], index: 0, kind: input, shape index: {}]
  %s1 = inlined_call_operand.hbm [shape: bf16[128,1408], index: 1, kind: input, shape index: {}]
  %s2 = inlined_call_operand.hbm [shape: f32[1,1664], index: 2, kind: input, shape index: {}]
  %s3 = inlined_call_operand.vmem [shape: f32[64,128], index: 3, kind: output, shape index: {}]
  %s4 = sld [smem:[#allocation0]]
  $region57: #{encoder_forward.1} parent=0
    _
  %s6 = ssub.s32 1, %s4
  %s7 = scalar_select 0, %s6, %s4
  $region1: #{encoder_forward.1} parent=0
    #allocation2 [shape = 'u8[32768]{0}', space=vmem, size = 0x8000, scoped, tag = 'input window, operand 0']
    #allocation3 [shape = 's32[2]{0}', space=sflag, size = 0x8, scoped, tag = 'scoped memory for encoder_forward.1']
    #allocation4 [shape = 'u8[360448]{0}', space=vmem, size = 0x58000, scoped, tag = 'input window, operand 1, single buffered']
    #allocation5 [shape = 's32[1]{0}', space=sflag, size = 0x4, scoped, tag = 'scoped memory for encoder_forward.1']
    #allocation6 [shape = 'u8[6656]{0}', space=vmem, size = 0x1c00, scoped, tag = 'input window, operand 2, single buffered']
    %8 = vsyncpa [#allocation3], 0
    %s9 = scalar_lea.sflag [#allocation3], 1
    %10 = vsyncpa %s9, 0
    %11 = vsyncpa [#allocation5], 0
    loop: start=0, step=1, limit=4
    $region2: #{encoder_forward.1} parent=1 // loop_pre_header
      _
    $region3: #{encoder_forward.1} parent=1 // loop_header
      %s13 = sphi 0, %s17
      %p14 = scmp.ge.s32.totalorder %s13, 4
      %s23 = sphi 0, %s25
      %s26 = sphi 0, %s23
      %s27 = sphi 0, %s26
      %s43 = sphi 0, %s27
      %s47 = sphi 0, %s47
      %s49 = sphi 0, %s47
      %s50 = sphi 0, %s49
      %s64 = sphi 0, %s50
      %s68 = sphi 0, %s68
      %s70 = sphi 0, %s68
      %s71 = sphi 0, %s70
      %s85 = sphi 0, %s71
      %s91 = sphi 0, %s93
      %s94 = sphi 0, %s91
      %s95 = sphi 0, %s94
      %s111 = sphi 0, %s95
    $region4: #{encoder_forward.1} parent=1 // loop_header_branch
      %16 = sbr.rel (%p14) target = $region8
    $region5: #{encoder_forward.1} parent=1 // loop_body
      %s18 = ssub.s32 %s13, 1
      %s19 = ssub.s32 %s13, 2
      %s20 = sadd.s32 %s13, 1
      %s21 = ssub.s32 %s13, %s20
      %p22 = scmp.eq.s32.totalorder %s21, 0
      %s24 = sadd.s32 %s23, 1
      %s25 = scalar_select %p22, %s23, %s24
      %p28 = pneg %p22
      %p29 = scmp.eq.s32.totalorder %s13, 1
      %p30 = por %p28, %p29
      %p31 = scmp.ne.s32.totalorder %s23, %s26
      %p32 = scmp.eq.s32.totalorder %s13, 0
      %p33 = por %p31, %p32
      %p34 = scmp.ne.s32.totalorder %s23, %s26
      %p35 = scmp.eq.s32.totalorder %s18, 1
      %p36 = por %p34, %p35
      %p37 = scmp.ne.s32.totalorder %s26, %s27
      %p38 = scmp.eq.s32.totalorder %s18, 0
      %p39 = por %p37, %p38
      %p40 = scmp.ne.s32.totalorder %s26, %s27
      %p41 = scmp.eq.s32.totalorder %s19, 1
      %p42 = por %p40, %p41
      %p44 = scmp.ne.s32.totalorder %s27, %s43
      %p45 = scmp.eq.s32.totalorder %s19, 0
      %p46 = por %p44, %p45
      %s48 = sadd.s32 %s47, 1
      %p51 = scmp.eq.s32.totalorder %s13, 1
      %p52 = scmp.ne.s32.totalorder %s47, %s49
      %p53 = scmp.eq.s32.totalorder %s13, 0
      %p54 = por %p52, %p53
      %p55 = scmp.ne.s32.totalorder %s47, %s49
      %p56 = scmp.eq.s32.totalorder %s18, 1
      %p57 = por %p55, %p56
      %p58 = scmp.ne.s32.totalorder %s49, %s50
      %p59 = scmp.eq.s32.totalorder %s18, 0
      %p60 = por %p58, %p59
      %p61 = scmp.ne.s32.totalorder %s49, %s50
      %p62 = scmp.eq.s32.totalorder %s19, 1
      %p63 = por %p61, %p62
      %p65 = scmp.ne.s32.totalorder %s50, %s64
      %p66 = scmp.eq.s32.totalorder %s19, 0
      %p67 = por %p65, %p66
      %s69 = sadd.s32 %s68, 1
      %p72 = scmp.eq.s32.totalorder %s13, 1
      %p73 = scmp.ne.s32.totalorder %s68, %s70
      %p74 = scmp.eq.s32.totalorder %s13, 0
      %p75 = por %p73, %p74
      %p76 = scmp.ne.s32.totalorder %s68, %s70
      %p77 = scmp.eq.s32.totalorder %s18, 1
      %p78 = por %p76, %p77
      %p79 = scmp.ne.s32.totalorder %s70, %s71
      %p80 = scmp.eq.s32.totalorder %s18, 0
      %p81 = por %p79, %p80
      %p82 = scmp.ne.s32.totalorder %s70, %s71
      %p83 = scmp.eq.s32.totalorder %s19, 1
      %p84 = por %p82, %p83
      %p86 = scmp.ne.s32.totalorder %s71, %s85
      %p87 = scmp.eq.s32.totalorder %s19, 0
      %p88 = por %p86, %p87
      %s89 = ssub.s32 %s13, %s20
      %p90 = scmp.eq.s32.totalorder %s89, 0
      %s92 = sadd.s32 %s91, 1
      %s93 = scalar_select %p90, %s91, %s92
      %p96 = pneg %p90
      %p97 = scmp.eq.s32.totalorder %s13, 1
      %p98 = por %p96, %p97
      %p99 = scmp.ne.s32.totalorder %s91, %s94
      %p100 = scmp.eq.s32.totalorder %s13, 0
      %p101 = por %p99, %p100
      %p102 = scmp.ne.s32.totalorder %s91, %s94
      %p103 = scmp.eq.s32.totalorder %s18, 1
      %p104 = por %p102, %p103
      %p105 = scmp.ne.s32.totalorder %s94, %s95
      %p106 = scmp.eq.s32.totalorder %s18, 0
      %p107 = por %p105, %p106
      %p108 = scmp.ne.s32.totalorder %s94, %s95
      %p109 = scmp.eq.s32.totalorder %s19, 1
      %p110 = por %p108, %p109
      %p112 = scmp.ne.s32.totalorder %s95, %s111
      %p113 = scmp.eq.s32.totalorder %s19, 0
      %p114 = por %p112, %p113
      %p115 = scmp.le.s32.totalorder 1, %s13
      %p116 = scmp.lt.s32.totalorder %s13, 3
      %p117 = pnand %p115, %p116
      %p118 = pneg %p117
      // Predicated region
      $region9: #{encoder_forward.1} parent=5 // pred_check
        _
      $region10: #{encoder_forward.1} parent=5 // pred_check_branch
        %120 = sbr.rel (%p117) target = $region12
      $region11: #{encoder_forward.1} parent=5 // pred_region
        %s121 = ssub.s32 %s13, 1
        // Predicated region
        $region13: #{encoder_forward.1} parent=11 // pred_check
          %p122 = pneg %p60
        $region14: #{encoder_forward.1} parent=11 // pred_check_branch
          %124 = sbr.rel (%p122) target = $region16
        $region15: #{encoder_forward.1} parent=11 // pred_region
          %126 = vsyncadd [#allocation5], 0
          %s127 = sshll.u32 %s1, 4
          %s128 = int_to_ptr.hbm [resolvable:$true] %s127
          %s129 = sshll.u32 [#allocation4], 4
          %s130 = int_to_ptr.vmem [resolvable:$true] %s129
          %135 = dma.hbm_to_vmem [thread:$0]  %s128, 11264, %s130, [#allocation5], 704, 704, 44
        $region16: #{encoder_forward.1} parent=11 // pred_fallthru
          _
        // Predicated region
        $region17: #{encoder_forward.1} parent=11 // pred_check
          %p136 = pneg %p81
        $region18: #{encoder_forward.1} parent=11 // pred_check_branch
          %138 = sbr.rel (%p136) target = $region20
        $region19: #{encoder_forward.1} parent=11 // pred_region
          %140 = vsyncadd [#allocation5], 0
          %s142 = sshll.u32 %s2, 4
          %s143 = int_to_ptr.hbm [resolvable:$true] %s142
          %s144 = sshll.u32 [#allocation6], 4
          %s145 = int_to_ptr.vmem [resolvable:$true] %s144
          %147 = dma.hbm_to_vmem [thread:$0]  %s143, 208, %s145, [#allocation5]
        $region20: #{encoder_forward.1} parent=11 // pred_fallthru
          _
      $region12: #{encoder_forward.1} parent=5 // pred_fallthru
        _
      %p148 = scmp.lt.s32.totalorder %s13, 2
      // Predicated region
      $region21: #{encoder_forward.1} parent=5 // pred_check
        %p149 = pneg %p148
      $region22: #{encoder_forward.1} parent=5 // pred_check_branch
        %151 = sbr.rel (%p149) target = $region24
      $region23: #{encoder_forward.1} parent=5 // pred_region
        // Predicated region
        $region25: #{encoder_forward.1} parent=23 // pred_check
          %p152 = pneg %p33
        $region26: #{encoder_forward.1} parent=23 // pred_check_branch
          %154 = sbr.rel (%p152) target = $region28
        $region27: #{encoder_forward.1} parent=23 // pred_region
          %s155 = sand.u32 %s23, 1
          %s156 = scalar_lea.sflag [#allocation3], %s155
          %s157 = sand.u32 %s23, 1
          %s158 = smul.addr %s157, 32
          %s159 = scalar_lea.vmem [#allocation2], %s158
          %s160 = smul.u32 4, %s13
          %162 = vsyncadd %s156, 0
          %s163 = smul.addr %s160, 8
          %s164 = scalar_lea.hbm %s0, %s163
          %s165 = sshll.u32 %s164, 4
          %s166 = int_to_ptr.hbm [resolvable:$true] %s165
          %s167 = sshll.u32 %s159, 4
          %s168 = int_to_ptr.vmem [resolvable:$true] %s167
          %173 = dma.hbm_to_vmem [thread:$0]  %s166, 512, %s168, %s156, 128, 128, 8
        $region28: #{encoder_forward.1} parent=23 // pred_fallthru
          _
      $region24: #{encoder_forward.1} parent=5 // pred_fallthru
        _
      %p174 = scmp.le.s32.totalorder 1, %s13
      %p175 = scmp.lt.s32.totalorder %s13, 3
      %p176 = pnand %p174, %p175
      %p177 = pneg %p176
      // Predicated region
      $region29: #{encoder_forward.1} parent=5 // pred_check
        _
      $region30: #{encoder_forward.1} parent=5 // pred_check_branch
        %179 = sbr.rel (%p176) target = $region32
      $region31: #{encoder_forward.1} parent=5 // pred_region
        %s180 = ssub.s32 %s13, 1
        %s181 = sand.u32 %s26, 1
        %s182 = scalar_lea.sflag [#allocation3], %s181
        %s183 = sand.u32 %s26, 1
        %s184 = smul.addr %s183, 32
        %s185 = scalar_lea.vmem [#allocation2], %s184
        // Predicated region
        $region33: #{encoder_forward.1} parent=31 // pred_check
          %p186 = pneg %p39
        $region34: #{encoder_forward.1} parent=31 // pred_check_branch
          %188 = sbr.rel (%p186) target = $region36
        $region35: #{encoder_forward.1} parent=31 // pred_region
          %190 = dma.done %s182, 512
        $region36: #{encoder_forward.1} parent=31 // pred_fallthru
          _
        // Predicated region
        $region37: #{encoder_forward.1} parent=31 // pred_check
          %p191 = pneg %p60
        $region38: #{encoder_forward.1} parent=31 // pred_check_branch
          %193 = sbr.rel (%p191) target = $region40
        $region39: #{encoder_forward.1} parent=31 // pred_region
          %195 = dma.done [#allocation5], 11264
        $region40: #{encoder_forward.1} parent=31 // pred_fallthru
          _
        // Predicated region
        $region41: #{encoder_forward.1} parent=31 // pred_check
          %p196 = pneg %p81
        $region42: #{encoder_forward.1} parent=31 // pred_check_branch
          %198 = sbr.rel (%p196) target = $region44
        $region43: #{encoder_forward.1} parent=31 // pred_region
          %200 = dma.done [#allocation5], 208
        $region44: #{encoder_forward.1} parent=31 // pred_fallthru
          _
        %s201 = sand.u32 %s26, 1
        %s202 = scalar_lea.sflag [#allocation3], %s201
        %s203 = sand.u32 %s26, 1
        %s204 = smul.addr %s203, 32
        %s205 = scalar_lea.vmem [#allocation2], %s204
        %p206 = pneg %p39
        %p207 = pneg %p36
        %p208 = pneg %p60
        %p209 = pneg %p57
        %p210 = pneg %p81
        %p211 = pneg %p78
        %p212 = pneg %p107
        %p213 = pneg %p104
        %s214 = smul.u32 4, %s18
        %p215 = scmp.lt.s32.totalorder %s214, 7
        %s216 = scalar_select %p215, %s214, 7
        %s217 = smul.addr %s216, 8
        %s218 = scalar_lea.vmem %s3, %s217
        %s219 = smul.u32 4, %s18
        %s220 = smul.u32 4, %s18
        %p221 = scmp.lt.s32.totalorder %s220, 7
        %s222 = scalar_select %p221, %s220, 7
        %s223 = smul.addr %s222, 8
        %s224 = scalar_lea.vmem %s3, %s223
        %s225 = smul.u32 4, %s18
        %v227 = vld [vmem:[%s185] sm:$0xff]
        %v228 = vld [vmem:[%s185 + $0x8] sm:$0xff]
        %v229 = vld [vmem:[%s185 + $0x10] sm:$0xff]
        %v230 = vld [vmem:[%s185 + $0x18] sm:$0xff]
        %v231 = vpack.c.bf16 %v228, %v227
        %v232 = vpack.c.bf16 %v230, %v229
        %v233 = vld [vmem:[#allocation4] sm:$0xf]
        %v234 = vld [vmem:[#allocation4 + $0x2c] sm:$0xf]
        %v235 = vld [vmem:[#allocation4 + $0x58] sm:$0xf]
        %v236 = vld [vmem:[#allocation4 + $0x84] sm:$0xf]
        %v237 = vld [vmem:[#allocation4 + $0xb0] sm:$0xf]
        %v238 = vld [vmem:[#allocation4 + $0xdc] sm:$0xf]
        %v239 = vld [vmem:[#allocation4 + $0x108] sm:$0xf]
        %v240 = vld [vmem:[#allocation4 + $0x134] sm:$0xf]
        %v241 = vld [vmem:[#allocation4 + $0x160] sm:$0xf]
        %v242 = vld [vmem:[#allocation4 + $0x18c] sm:$0xf]
        %v243 = vld [vmem:[#allocation4 + $0x1b8] sm:$0xf]
        %v244 = vld [vmem:[#allocation4 + $0x1e4] sm:$0xf]
        %v245 = vld [vmem:[#allocation6] sm:$0x1]
        %v247 = vperm.slane %v245, 0
        %v261 = vunpack.c.l.b16 %v233
        %v262 = vunpack.c.l.b16 %v234
        %v263 = vunpack.c.l.b16 %v235
        %v264 = vunpack.c.l.b16 %v236
        %v265 = vunpack.c.l.b16 %v237
        %v266 = vunpack.c.l.b16 %v238
        %v267 = vunpack.c.l.b16 %v239
        %v268 = vunpack.c.l.b16 %v240
        %v269 = vunpack.c.l.b16 %v241
        %v270 = vunpack.c.l.b16 %v242
        %v271 = vunpack.c.l.b16 %v243
        %v272 = vunpack.c.l.b16 %v244
        %v273 = vpack.c.b16 %v262, %v261
        %v274 = vpack.c.b16 %v264, %v263
        %v275 = vpack.c.b16 %v266, %v265
        %v276 = vpack.c.b16 %v268, %v267
        %v277 = vpack.c.b16 %v270, %v269
        %v278 = vpack.c.b16 %v272, %v271
        %vm285 = vcmask 785408
        %v287 = vsel %vm285, %v231, 0
        %v290 = vsel %vm285, %v232, 0
        %292 = vmatpush.bf16.msra.mxu0 0
        %293 = vmatpush.bf16.msra.mxu0 0
        %294 = vmatpush.bf16.msra.mxu0 %v278
        %295 = vmatpush.bf16.msra.mxu0 %v277
        %296 = vmatpush.bf16.msra.mxu0 %v276
        %297 = vmatpush.bf16.msra.mxu0 %v275
        %298 = vmatpush.bf16.msra.mxu0 %v274
        %299 = vmatpush.bf16.msra.mxu0 %v273
        %300 = vmatmul.bf16.gmra.mxu0 %v287
        %v301 = vpop.f32.mrf.mxu0
        %v302 = vadd.f32 %v247, %v301
        %v303 = vpop.f32.mrf.mxu0
        %v304 = vadd.f32 %v247, %v303
        %305 = vmatmul.bf16.gmra.mxu0 %v290
        %v306 = vpop.f32.mrf.mxu0
        %v307 = vadd.f32 %v247, %v306
        %v308 = vpop.f32.mrf.mxu0
        %v309 = vadd.f32 %v247, %v308
        %310 = vdwg.mxu0
        %v311 = vld [vmem:[#allocation4 + $0x4] sm:$0xff]
        %v312 = vld [vmem:[#allocation4 + $0xc] sm:$0xf]
        %v313 = vld [vmem:[#allocation4 + $0x30] sm:$0xff]
        %v314 = vld [vmem:[#allocation4 + $0x38] sm:$0xf]
        %v315 = vld [vmem:[#allocation4 + $0x5c] sm:$0xff]
        %v316 = vld [vmem:[#allocation4 + $0x64] sm:$0xf]
        %v317 = vld [vmem:[#allocation4 + $0x88] sm:$0xff]
        %v318 = vld [vmem:[#allocation4 + $0x90] sm:$0xf]
        %v319 = vld [vmem:[#allocation4 + $0xb4] sm:$0xff]
        %v320 = vld [vmem:[#allocation4 + $0xbc] sm:$0xf]
        %v321 = vld [vmem:[#allocation4 + $0xe0] sm:$0xff]
        %v322 = vld [vmem:[#allocation4 + $0xe8] sm:$0xf]
        %v323 = vld [vmem:[#allocation4 + $0x10c] sm:$0xff]
        %v324 = vld [vmem:[#allocation4 + $0x114] sm:$0xf]
        %v325 = vld [vmem:[#allocation4 + $0x138] sm:$0xff]
        %v326 = vld [vmem:[#allocation4 + $0x140] sm:$0xf]
        %v327 = vld [vmem:[#allocation4 + $0x164] sm:$0xff]
        %v328 = vld [vmem:[#allocation4 + $0x16c] sm:$0xf]
        %v329 = vld [vmem:[#allocation4 + $0x190] sm:$0xff]
        %v330 = vld [vmem:[#allocation4 + $0x198] sm:$0xf]
        %v331 = vld [vmem:[#allocation4 + $0x1bc] sm:$0xff]
        %v332 = vld [vmem:[#allocation4 + $0x1c4] sm:$0xf]
        %v333 = vld [vmem:[#allocation4 + $0x1e8] sm:$0xff]
        %v334 = vld [vmem:[#allocation4 + $0x1f0] sm:$0xf]
        %v335 = vld [vmem:[#allocation4 + $0x214] sm:$0xff]
        %v336 = vld [vmem:[#allocation4 + $0x21c] sm:$0xf]
        %v337 = vld [vmem:[#allocation4 + $0x240] sm:$0xff]
        %v338 = vld [vmem:[#allocation4 + $0x248] sm:$0xf]
        %v339 = vld [vmem:[#allocation4 + $0x26c] sm:$0xff]
        %v340 = vld [vmem:[#allocation4 + $0x274] sm:$0xf]
        %v341 = vld [vmem:[#allocation4 + $0x298] sm:$0xff]
        %v342 = vld [vmem:[#allocation4 + $0x2a0] sm:$0xf]
        %v343 = vpack.c.bf16 %v304, %v302
        %v344 = vpack.c.bf16 %v309, %v307
        %v345 = vld [vmem:[#allocation6 + $0x1] sm:$0x7]
        %v347 = vperm.slane %v345, 0
        %v348 = vperm.slane %v345, 1
        %v349 = vperm.slane %v345, 2
        %v385 = vunpack.c.l.b16 %v311
        %v386 = vunpack.c.h.b16 %v311
        %v387 = vunpack.c.l.b16 %v312
        %v388 = vunpack.c.l.b16 %v313
        %v389 = vunpack.c.h.b16 %v313
        %v390 = vunpack.c.l.b16 %v314
        %v391 = vunpack.c.l.b16 %v315
        %v392 = vunpack.c.h.b16 %v315
        %v393 = vunpack.c.l.b16 %v316
        %v394 = vunpack.c.l.b16 %v317
        %v395 = vunpack.c.h.b16 %v317
        %v396 = vunpack.c.l.b16 %v318
        %v397 = vunpack.c.l.b16 %v319
        %v398 = vunpack.c.h.b16 %v319
        %v399 = vunpack.c.l.b16 %v320
        %v400 = vunpack.c.l.b16 %v321
        %v401 = vunpack.c.h.b16 %v321
        %v402 = vunpack.c.l.b16 %v322
        %v403 = vunpack.c.l.b16 %v323
        %v404 = vunpack.c.h.b16 %v323
        %v405 = vunpack.c.l.b16 %v324
        %v406 = vunpack.c.l.b16 %v325
        %v407 = vunpack.c.h.b16 %v325
        %v408 = vunpack.c.l.b16 %v326
        %v409 = vunpack.c.l.b16 %v327
        %v410 = vunpack.c.h.b16 %v327
        %v411 = vunpack.c.l.b16 %v328
        %v412 = vunpack.c.l.b16 %v329
        %v413 = vunpack.c.h.b16 %v329
        %v414 = vunpack.c.l.b16 %v330
        %v415 = vunpack.c.l.b16 %v331
        %v416 = vunpack.c.h.b16 %v331
        %v417 = vunpack.c.l.b16 %v332
        %v418 = vunpack.c.l.b16 %v333
        %v419 = vunpack.c.h.b16 %v333
        %v420 = vunpack.c.l.b16 %v334
        %v421 = vunpack.c.l.b16 %v335
        %v422 = vunpack.c.h.b16 %v335
        %v423 = vunpack.c.l.b16 %v336
        %v424 = vunpack.c.l.b16 %v337
        %v425 = vunpack.c.h.b16 %v337
        %v426 = vunpack.c.l.b16 %v338
        %v427 = vunpack.c.l.b16 %v339
        %v428 = vunpack.c.h.b16 %v339
        %v429 = vunpack.c.l.b16 %v340
        %v430 = vunpack.c.l.b16 %v341
        %v431 = vunpack.c.h.b16 %v341
        %v432 = vunpack.c.l.b16 %v342
        %v433 = vpack.c.b16 %v388, %v385
        %v434 = vpack.c.b16 %v389, %v386
        %v435 = vpack.c.b16 %v390, %v387
        %v436 = vpack.c.b16 %v394, %v391
        %v437 = vpack.c.b16 %v395, %v392
        %v438 = vpack.c.b16 %v396, %v393
        %v439 = vpack.c.b16 %v400, %v397
        %v440 = vpack.c.b16 %v401, %v398
        %v441 = vpack.c.b16 %v402, %v399
        %v442 = vpack.c.b16 %v406, %v403
        %v443 = vpack.c.b16 %v407, %v404
        %v444 = vpack.c.b16 %v408, %v405
        %v445 = vpack.c.b16 %v412, %v409
        %v446 = vpack.c.b16 %v413, %v410
        %v447 = vpack.c.b16 %v414, %v411
        %v448 = vpack.c.b16 %v418, %v415
        %v449 = vpack.c.b16 %v419, %v416
        %v450 = vpack.c.b16 %v420, %v417
        %v451 = vpack.c.b16 %v424, %v421
        %v452 = vpack.c.b16 %v425, %v422
        %v453 = vpack.c.b16 %v426, %v423
        %v454 = vpack.c.b16 %v430, %v427
        %v455 = vpack.c.b16 %v431, %v428
        %v456 = vpack.c.b16 %v432, %v429
        %481 = vmatpush.bf16.msra.mxu0 %v454
        %482 = vmatpush.bf16.msra.mxu0 %v451
        %483 = vmatpush.bf16.msra.mxu0 %v448
        %484 = vmatpush.bf16.msra.mxu0 %v445
        %485 = vmatpush.bf16.msra.mxu0 %v442
        %486 = vmatpush.bf16.msra.mxu0 %v439
        %487 = vmatpush.bf16.msra.mxu0 %v436
        %488 = vmatpush.bf16.msra.mxu0 %v433
        %489 = vmatmul.bf16.gmra.mxu0 %v343
        %v490 = vpop.f32.mrf.mxu0
        %v491 = vadd.f32 %v347, %v490
        %v492 = vpop.f32.mrf.mxu0
        %v493 = vadd.f32 %v347, %v492
        %494 = vmatmul.bf16.gmra.mxu0 %v344
        %v495 = vpop.f32.mrf.mxu0
        %v496 = vadd.f32 %v347, %v495
        %v497 = vpop.f32.mrf.mxu0
        %v498 = vadd.f32 %v347, %v497
        %499 = vdwg.mxu0
        %500 = vmatpush.bf16.msra.mxu0 %v455
        %501 = vmatpush.bf16.msra.mxu0 %v452
        %502 = vmatpush.bf16.msra.mxu0 %v449
        %503 = vmatpush.bf16.msra.mxu0 %v446
        %504 = vmatpush.bf16.msra.mxu0 %v443
        %505 = vmatpush.bf16.msra.mxu0 %v440
        %506 = vmatpush.bf16.msra.mxu0 %v437
        %507 = vmatpush.bf16.msra.mxu0 %v434
        %508 = vmatmul.bf16.gmra.mxu0 %v343
        %v509 = vpop.f32.mrf.mxu0
        %v510 = vadd.f32 %v348, %v509
        %v511 = vpop.f32.mrf.mxu0
        %v512 = vadd.f32 %v348, %v511
        %513 = vmatmul.bf16.gmra.mxu0 %v344
        %v514 = vpop.f32.mrf.mxu0
        %v515 = vadd.f32 %v348, %v514
        %v516 = vpop.f32.mrf.mxu0
        %v517 = vadd.f32 %v348, %v516
        %518 = vdwg.mxu0
        %519 = vmatpush.bf16.msra.mxu0 %v456
        %520 = vmatpush.bf16.msra.mxu0 %v453
        %521 = vmatpush.bf16.msra.mxu0 %v450
        %522 = vmatpush.bf16.msra.mxu0 %v447
        %523 = vmatpush.bf16.msra.mxu0 %v444
        %524 = vmatpush.bf16.msra.mxu0 %v441
        %525 = vmatpush.bf16.msra.mxu0 %v438
        %526 = vmatpush.bf16.msra.mxu0 %v435
        %527 = vmatmul.bf16.gmra.mxu0 %v343
        %v528 = vpop.f32.mrf.mxu0
        %v529 = vadd.f32 %v349, %v528
        %v530 = vpop.f32.mrf.mxu0
        %v531 = vadd.f32 %v349, %v530
        %532 = vmatmul.bf16.gmra.mxu0 %v344
        %v533 = vpop.f32.mrf.mxu0
        %v534 = vadd.f32 %v349, %v533
        %v535 = vpop.f32.mrf.mxu0
        %v536 = vadd.f32 %v349, %v535
        %537 = vdwg.mxu0
        %v538 = vld [vmem:[#allocation4 + $0x24] sm:$0xf]
        %v539 = vld [vmem:[#allocation4 + $0x50] sm:$0xf]
        %v540 = vld [vmem:[#allocation4 + $0x7c] sm:$0xf]
        %v541 = vld [vmem:[#allocation4 + $0xa8] sm:$0xf]
        %v542 = vld [vmem:[#allocation4 + $0xd4] sm:$0xf]
        %v543 = vld [vmem:[#allocation4 + $0x100] sm:$0xf]
        %v544 = vld [vmem:[#allocation4 + $0x12c] sm:$0xf]
        %v545 = vld [vmem:[#allocation4 + $0x158] sm:$0xf]
        %v546 = vld [vmem:[#allocation4 + $0x184] sm:$0xf]
        %v547 = vld [vmem:[#allocation4 + $0x1b0] sm:$0xf]
        %v548 = vld [vmem:[#allocation4 + $0x1dc] sm:$0xf]
        %v549 = vld [vmem:[#allocation4 + $0x208] sm:$0xf]
        %v550 = vld [vmem:[#allocation4 + $0x234] sm:$0xf]
        %v551 = vld [vmem:[#allocation4 + $0x260] sm:$0xf]
        %v552 = vld [vmem:[#allocation4 + $0x28c] sm:$0xf]
        %v553 = vld [vmem:[#allocation4 + $0x2b8] sm:$0xf]
        %v554 = vld [vmem:[#allocation4 + $0x28] sm:$0xf]
        %v555 = vld [vmem:[#allocation4 + $0x54] sm:$0xf]
        %v556 = vld [vmem:[#allocation4 + $0x80] sm:$0xf]
        %v557 = vld [vmem:[#allocation4 + $0xac] sm:$0xf]
        %v558 = vld [vmem:[#allocation4 + $0xd8] sm:$0xf]
        %v559 = vld [vmem:[#allocation4 + $0x104] sm:$0xf]
        %v560 = vld [vmem:[#allocation4 + $0x130] sm:$0xf]
        %v561 = vld [vmem:[#allocation4 + $0x15c] sm:$0xf]
        %v562 = vld [vmem:[#allocation4 + $0x188] sm:$0xf]
        %v563 = vld [vmem:[#allocation4 + $0x1b4] sm:$0xf]
        %v564 = vld [vmem:[#allocation4 + $0x1e0] sm:$0xf]
        %v565 = vld [vmem:[#allocation4 + $0x20c] sm:$0xf]
        %v566 = vld [vmem:[#allocation4 + $0x238] sm:$0xf]
        %v567 = vld [vmem:[#allocation4 + $0x264] sm:$0xf]
        %v568 = vld [vmem:[#allocation4 + $0x290] sm:$0xf]
        %v569 = vld [vmem:[#allocation4 + $0x2bc] sm:$0xf]
        %v570 = vunpack.c.l.bf16 %v554
        %v571 = vunpack.c.l.bf16 %v555
        %v576 = vrot.slane %v510, 1
        %v577 = vrot.slane %v510, 2
        %v578 = vrot.slane %v510, 3
        %v579 = vrot.slane %v510, 4
        %v580 = vrot.slane %v510, 5
        %v581 = vrot.slane %v510, 6
        %v582 = vrot.slane %v510, 7
        %v583 = vrot.slane %v512, 1
        %v584 = vrot.slane %v512, 2
        %v585 = vrot.slane %v512, 3
        %v586 = vrot.slane %v512, 4
        %v587 = vrot.slane %v512, 5
        %v588 = vrot.slane %v512, 6
        %v589 = vrot.slane %v512, 7
        %v590 = vrot.slane %v515, 1
        %v591 = vrot.slane %v515, 2
        %v592 = vrot.slane %v515, 3
        %v593 = vrot.slane %v515, 4
        %v594 = vrot.slane %v515, 5
        %v595 = vrot.slane %v515, 6
        %v596 = vrot.slane %v515, 7
        %v597 = vrot.slane %v517, 1
        %v598 = vrot.slane %v517, 2
        %v599 = vrot.slane %v517, 3
        %v600 = vrot.slane %v517, 4
        %v601 = vrot.slane %v517, 5
        %v602 = vrot.slane %v517, 6
        %v603 = vrot.slane %v517, 7
        %v604 = vperm.slane %v510, 0
        %v605 = vperm.slane %v576, 0
        %v606 = vperm.slane %v577, 0
        %v607 = vperm.slane %v578, 0
        %v608 = vperm.slane %v579, 0
        %v609 = vperm.slane %v580, 0
        %v610 = vperm.slane %v581, 0
        %v611 = vperm.slane %v582, 0
        %v612 = vperm.slane %v512, 0
        %v613 = vperm.slane %v583, 0
        %v614 = vperm.slane %v584, 0
        %v615 = vperm.slane %v585, 0
        %v616 = vperm.slane %v586, 0
        %v617 = vperm.slane %v587, 0
        %v618 = vperm.slane %v588, 0
        %v619 = vperm.slane %v589, 0
        %v620 = vperm.slane %v515, 0
        %v621 = vperm.slane %v590, 0
        %v622 = vperm.slane %v591, 0
        %v623 = vperm.slane %v592, 0
        %v624 = vperm.slane %v593, 0
        %v625 = vperm.slane %v594, 0
        %v626 = vperm.slane %v595, 0
        %v627 = vperm.slane %v596, 0
        %v628 = vperm.slane %v517, 0
        %v629 = vperm.slane %v597, 0
        %v630 = vperm.slane %v598, 0
        %v631 = vperm.slane %v599, 0
        %v632 = vperm.slane %v600, 0
        %v633 = vperm.slane %v601, 0
        %v634 = vperm.slane %v602, 0
        %v635 = vperm.slane %v603, 0
        %v668 = vmul.f32 %v604, %v570
        %v669 = vmul.f32 %v604, %v571
        %v670 = vmul.f32 %v605, %v570
        %v671 = vmul.f32 %v605, %v571
        %v672 = vmul.f32 %v606, %v570
        %v673 = vmul.f32 %v606, %v571
        %v674 = vmul.f32 %v607, %v570
        %v675 = vmul.f32 %v607, %v571
        %v676 = vmul.f32 %v608, %v570
        %v677 = vmul.f32 %v608, %v571
        %v678 = vmul.f32 %v609, %v570
        %v679 = vmul.f32 %v609, %v571
        %v680 = vmul.f32 %v610, %v570
        %v681 = vmul.f32 %v610, %v571
        %v682 = vmul.f32 %v611, %v570
        %v683 = vmul.f32 %v611, %v571
        %v684 = vmul.f32 %v612, %v570
        %v685 = vmul.f32 %v612, %v571
        %v686 = vmul.f32 %v613, %v570
        %v687 = vmul.f32 %v613, %v571
        %v688 = vmul.f32 %v614, %v570
        %v689 = vmul.f32 %v614, %v571
        %v690 = vmul.f32 %v615, %v570
        %v691 = vmul.f32 %v615, %v571
        %v692 = vmul.f32 %v616, %v570
        %v693 = vmul.f32 %v616, %v571
        %v694 = vmul.f32 %v617, %v570
        %v695 = vmul.f32 %v617, %v571
        %v696 = vmul.f32 %v618, %v570
        %v697 = vmul.f32 %v618, %v571
        %v698 = vmul.f32 %v619, %v570
        %v699 = vmul.f32 %v619, %v571
        %v700 = vmul.f32 %v620, %v570
        %v701 = vmul.f32 %v620, %v571
        %v702 = vmul.f32 %v621, %v570
        %v703 = vmul.f32 %v621, %v571
        %v704 = vmul.f32 %v622, %v570
        %v705 = vmul.f32 %v622, %v571
        %v706 = vmul.f32 %v623, %v570
        %v707 = vmul.f32 %v623, %v571
        %v708 = vmul.f32 %v624, %v570
        %v709 = vmul.f32 %v624, %v571
        %v710 = vmul.f32 %v625, %v570
        %v711 = vmul.f32 %v625, %v571
        %v712 = vmul.f32 %v626, %v570
        %v713 = vmul.f32 %v626, %v571
        %v714 = vmul.f32 %v627, %v570
        %v715 = vmul.f32 %v627, %v571
        %v716 = vmul.f32 %v628, %v570
        %v717 = vmul.f32 %v628, %v571
        %v718 = vmul.f32 %v629, %v570
        %v719 = vmul.f32 %v629, %v571
        %v720 = vmul.f32 %v630, %v570
        %v721 = vmul.f32 %v630, %v571
        %v722 = vmul.f32 %v631, %v570
        %v723 = vmul.f32 %v631, %v571
        %v724 = vmul.f32 %v632, %v570
        %v725 = vmul.f32 %v632, %v571
        %v726 = vmul.f32 %v633, %v570
        %v727 = vmul.f32 %v633, %v571
        %v728 = vmul.f32 %v634, %v570
        %v729 = vmul.f32 %v634, %v571
        %v730 = vmul.f32 %v635, %v570
        %v731 = vmul.f32 %v635, %v571
        %v732 = vpack.c.bf16 %v669, %v668
        %v733 = vpack.c.bf16 %v671, %v670
        %v734 = vpack.c.bf16 %v673, %v672
        %v735 = vpack.c.bf16 %v675, %v674
        %v736 = vpack.c.bf16 %v677, %v676
        %v737 = vpack.c.bf16 %v679, %v678
        %v738 = vpack.c.bf16 %v681, %v680
        %v739 = vpack.c.bf16 %v683, %v682
        %v740 = vpack.c.bf16 %v685, %v684
        %v741 = vpack.c.bf16 %v687, %v686
        %v742 = vpack.c.bf16 %v689, %v688
        %v743 = vpack.c.bf16 %v691, %v690
        %v744 = vpack.c.bf16 %v693, %v692
        %v745 = vpack.c.bf16 %v695, %v694
        %v746 = vpack.c.bf16 %v697, %v696
        %v747 = vpack.c.bf16 %v699, %v698
        %v748 = vpack.c.bf16 %v701, %v700
        %v749 = vpack.c.bf16 %v703, %v702
        %v750 = vpack.c.bf16 %v705, %v704
        %v751 = vpack.c.bf16 %v707, %v706
        %v752 = vpack.c.bf16 %v709, %v708
        %v753 = vpack.c.bf16 %v711, %v710
        %v754 = vpack.c.bf16 %v713, %v712
        %v755 = vpack.c.bf16 %v715, %v714
        %v756 = vpack.c.bf16 %v717, %v716
        %v757 = vpack.c.bf16 %v719, %v718
        %v758 = vpack.c.bf16 %v721, %v720
        %v759 = vpack.c.bf16 %v723, %v722
        %v760 = vpack.c.bf16 %v725, %v724
        %v761 = vpack.c.bf16 %v727, %v726
        %v762 = vpack.c.bf16 %v729, %v728
        %v763 = vpack.c.bf16 %v731, %v730
        %v780 = vunpack.c.l.b16 %v538
        %v781 = vunpack.c.l.b16 %v539
        %v782 = vunpack.c.l.b16 %v540
        %v783 = vunpack.c.l.b16 %v541
        %v784 = vunpack.c.l.b16 %v542
        %v785 = vunpack.c.l.b16 %v543
        %v786 = vunpack.c.l.b16 %v544
        %v787 = vunpack.c.l.b16 %v545
        %v788 = vunpack.c.l.b16 %v546
        %v789 = vunpack.c.l.b16 %v547
        %v790 = vunpack.c.l.b16 %v548
        %v791 = vunpack.c.l.b16 %v549
        %v792 = vunpack.c.l.b16 %v550
        %v793 = vunpack.c.l.b16 %v551
        %v794 = vunpack.c.l.b16 %v552
        %v795 = vunpack.c.l.b16 %v553
        %v796 = vpack.c.b16 %v781, %v780
        %v797 = vpack.c.b16 %v783, %v782
        %v798 = vpack.c.b16 %v785, %v784
        %v799 = vpack.c.b16 %v787, %v786
        %v800 = vpack.c.b16 %v789, %v788
        %v801 = vpack.c.b16 %v791, %v790
        %v802 = vpack.c.b16 %v793, %v792
        %v803 = vpack.c.b16 %v795, %v794
        %812 = vmatpush.bf16.msra.mxu0 %v803
        %813 = vmatpush.bf16.msra.mxu0 %v802
        %814 = vmatpush.bf16.msra.mxu0 %v801
        %815 = vmatpush.bf16.msra.mxu0 %v800
        %816 = vmatpush.bf16.msra.mxu0 %v799
        %817 = vmatpush.bf16.msra.mxu0 %v798
        %818 = vmatpush.bf16.msra.mxu0 %v797
        %819 = vmatpush.bf16.msra.mxu0 %v796
        %820 = vmatmul.bf16.gmra.mxu0 %v732
        %v821 = vpop.f32.mrf.mxu0
        %v822 = vadd.f32 0.0, %v821
        %v823 = vpop.f32.mrf.mxu0
        %v824 = vadd.f32 0.0, %v823
        %825 = vmatmul.bf16.gmra.mxu0 %v733
        %v826 = vpop.f32.mrf.mxu0
        %v827 = vadd.f32 0.0, %v826
        %v828 = vpop.f32.mrf.mxu0
        %v829 = vadd.f32 0.0, %v828
        %830 = vmatmul.bf16.gmra.mxu0 %v734
        %v831 = vpop.f32.mrf.mxu0
        %v832 = vadd.f32 0.0, %v831
        %v833 = vpop.f32.mrf.mxu0
        %v834 = vadd.f32 0.0, %v833
        %835 = vmatmul.bf16.gmra.mxu0 %v735
        %v836 = vpop.f32.mrf.mxu0
        %v837 = vadd.f32 0.0, %v836
        %v838 = vpop.f32.mrf.mxu0
        %v839 = vadd.f32 0.0, %v838
        %840 = vmatmul.bf16.gmra.mxu0 %v736
        %v841 = vpop.f32.mrf.mxu0
        %v842 = vadd.f32 0.0, %v841
        %v843 = vpop.f32.mrf.mxu0
        %v844 = vadd.f32 0.0, %v843
        %845 = vmatmul.bf16.gmra.mxu0 %v737
        %v846 = vpop.f32.mrf.mxu0
        %v847 = vadd.f32 0.0, %v846
        %v848 = vpop.f32.mrf.mxu0
        %v849 = vadd.f32 0.0, %v848
        %850 = vmatmul.bf16.gmra.mxu0 %v738
        %v851 = vpop.f32.mrf.mxu0
        %v852 = vadd.f32 0.0, %v851
        %v853 = vpop.f32.mrf.mxu0
        %v854 = vadd.f32 0.0, %v853
        %855 = vmatmul.bf16.gmra.mxu0 %v739
        %v856 = vpop.f32.mrf.mxu0
        %v857 = vadd.f32 0.0, %v856
        %v858 = vpop.f32.mrf.mxu0
        %v859 = vadd.f32 0.0, %v858
        %860 = vmatmul.bf16.gmra.mxu0 %v740
        %v861 = vpop.f32.mrf.mxu0
        %v862 = vadd.f32 0.0, %v861
        %v863 = vpop.f32.mrf.mxu0
        %v864 = vadd.f32 0.0, %v863
        %865 = vmatmul.bf16.gmra.mxu0 %v741
        %v866 = vpop.f32.mrf.mxu0
        %v867 = vadd.f32 0.0, %v866
        %v868 = vpop.f32.mrf.mxu0
        %v869 = vadd.f32 0.0, %v868
        %870 = vmatmul.bf16.gmra.mxu0 %v742
        %v871 = vpop.f32.mrf.mxu0
        %v872 = vadd.f32 0.0, %v871
        %v873 = vpop.f32.mrf.mxu0
        %v874 = vadd.f32 0.0, %v873
        %875 = vmatmul.bf16.gmra.mxu0 %v743
        %v876 = vpop.f32.mrf.mxu0
        %v877 = vadd.f32 0.0, %v876
        %v878 = vpop.f32.mrf.mxu0
        %v879 = vadd.f32 0.0, %v878
        %880 = vmatmul.bf16.gmra.mxu0 %v744
        %v881 = vpop.f32.mrf.mxu0
        %v882 = vadd.f32 0.0, %v881
        %v883 = vpop.f32.mrf.mxu0
        %v884 = vadd.f32 0.0, %v883
        %885 = vmatmul.bf16.gmra.mxu0 %v745
        %v886 = vpop.f32.mrf.mxu0
        %v887 = vadd.f32 0.0, %v886
        %v888 = vpop.f32.mrf.mxu0
        %v889 = vadd.f32 0.0, %v888
        %890 = vmatmul.bf16.gmra.mxu0 %v746
        %v891 = vpop.f32.mrf.mxu0
        %v892 = vadd.f32 0.0, %v891
        %v893 = vpop.f32.mrf.mxu0
        %v894 = vadd.f32 0.0, %v893
        %895 = vmatmul.bf16.gmra.mxu0 %v747
        %v896 = vpop.f32.mrf.mxu0
        %v897 = vadd.f32 0.0, %v896
        %v898 = vpop.f32.mrf.mxu0
        %v899 = vadd.f32 0.0, %v898
        %900 = vmatmul.bf16.gmra.mxu0 %v748
        %v901 = vpop.f32.mrf.mxu0
        %v902 = vadd.f32 0.0, %v901
        %v903 = vpop.f32.mrf.mxu0
        %v904 = vadd.f32 0.0, %v903
        %905 = vmatmul.bf16.gmra.mxu0 %v749
        %v906 = vpop.f32.mrf.mxu0
        %v907 = vadd.f32 0.0, %v906
        %v908 = vpop.f32.mrf.mxu0
        %v909 = vadd.f32 0.0, %v908
        %910 = vmatmul.bf16.gmra.mxu0 %v750
        %v911 = vpop.f32.mrf.mxu0
        %v912 = vadd.f32 0.0, %v911
        %v913 = vpop.f32.mrf.mxu0
        %v914 = vadd.f32 0.0, %v913
        %915 = vmatmul.bf16.gmra.mxu0 %v751
        %v916 = vpop.f32.mrf.mxu0
        %v917 = vadd.f32 0.0, %v916
        %v918 = vpop.f32.mrf.mxu0
        %v919 = vadd.f32 0.0, %v918
        %920 = vmatmul.bf16.gmra.mxu0 %v752
        %v921 = vpop.f32.mrf.mxu0
        %v922 = vadd.f32 0.0, %v921
        %v923 = vpop.f32.mrf.mxu0
        %v924 = vadd.f32 0.0, %v923
        %925 = vmatmul.bf16.gmra.mxu0 %v753
        %v926 = vpop.f32.mrf.mxu0
        %v927 = vadd.f32 0.0, %v926
        %v928 = vpop.f32.mrf.mxu0
        %v929 = vadd.f32 0.0, %v928
        %930 = vmatmul.bf16.gmra.mxu0 %v754
        %v931 = vpop.f32.mrf.mxu0
        %v932 = vadd.f32 0.0, %v931
        %v933 = vpop.f32.mrf.mxu0
        %v934 = vadd.f32 0.0, %v933
        %935 = vmatmul.bf16.gmra.mxu0 %v755
        %v936 = vpop.f32.mrf.mxu0
        %v937 = vadd.f32 0.0, %v936
        %v938 = vpop.f32.mrf.mxu0
        %v939 = vadd.f32 0.0, %v938
        %940 = vmatmul.bf16.gmra.mxu0 %v756
        %v941 = vpop.f32.mrf.mxu0
        %v942 = vadd.f32 0.0, %v941
        %v943 = vpop.f32.mrf.mxu0
        %v944 = vadd.f32 0.0, %v943
        %945 = vmatmul.bf16.gmra.mxu0 %v757
        %v946 = vpop.f32.mrf.mxu0
        %v947 = vadd.f32 0.0, %v946
        %v948 = vpop.f32.mrf.mxu0
        %v949 = vadd.f32 0.0, %v948
        %950 = vmatmul.bf16.gmra.mxu0 %v758
        %v951 = vpop.f32.mrf.mxu0
        %v952 = vadd.f32 0.0, %v951
        %v953 = vpop.f32.mrf.mxu0
        %v954 = vadd.f32 0.0, %v953
        %955 = vmatmul.bf16.gmra.mxu0 %v759
        %v956 = vpop.f32.mrf.mxu0
        %v957 = vadd.f32 0.0, %v956
        %v958 = vpop.f32.mrf.mxu0
        %v959 = vadd.f32 0.0, %v958
        %960 = vmatmul.bf16.gmra.mxu0 %v760
        %v961 = vpop.f32.mrf.mxu0
        %v962 = vadd.f32 0.0, %v961
        %v963 = vpop.f32.mrf.mxu0
        %v964 = vadd.f32 0.0, %v963
        %965 = vmatmul.bf16.gmra.mxu0 %v761
        %v966 = vpop.f32.mrf.mxu0
        %v967 = vadd.f32 0.0, %v966
        %v968 = vpop.f32.mrf.mxu0
        %v969 = vadd.f32 0.0, %v968
        %970 = vmatmul.bf16.gmra.mxu0 %v762
        %v971 = vpop.f32.mrf.mxu0
        %v972 = vadd.f32 0.0, %v971
        %v973 = vpop.f32.mrf.mxu0
        %v974 = vadd.f32 0.0, %v973
        %975 = vmatmul.bf16.gmra.mxu0 %v763
        %v976 = vpop.f32.mrf.mxu0
        %v977 = vadd.f32 0.0, %v976
        %v978 = vpop.f32.mrf.mxu0
        %v979 = vadd.f32 0.0, %v978
        %980 = vdwg.mxu0
        %v985 = vrot.slane %v491, 1
        %v986 = vrot.slane %v491, 2
        %v987 = vrot.slane %v491, 3
        %v988 = vrot.slane %v491, 4
        %v989 = vrot.slane %v491, 5
        %v990 = vrot.slane %v491, 6
        %v991 = vrot.slane %v491, 7
        %v992 = vrot.slane %v493, 1
        %v993 = vrot.slane %v493, 2
        %v994 = vrot.slane %v493, 3
        %v995 = vrot.slane %v493, 4
        %v996 = vrot.slane %v493, 5
        %v997 = vrot.slane %v493, 6
        %v998 = vrot.slane %v493, 7
        %v999 = vrot.slane %v496, 1
        %v1000 = vrot.slane %v496, 2
        %v1001 = vrot.slane %v496, 3
        %v1002 = vrot.slane %v496, 4
        %v1003 = vrot.slane %v496, 5
        %v1004 = vrot.slane %v496, 6
        %v1005 = vrot.slane %v496, 7
        %v1006 = vrot.slane %v498, 1
        %v1007 = vrot.slane %v498, 2
        %v1008 = vrot.slane %v498, 3
        %v1009 = vrot.slane %v498, 4
        %v1010 = vrot.slane %v498, 5
        %v1011 = vrot.slane %v498, 6
        %v1012 = vrot.slane %v498, 7
        %v1013 = vperm.slane %v491, 0
        %v1014 = vperm.slane %v985, 0
        %v1015 = vperm.slane %v986, 0
        %v1016 = vperm.slane %v987, 0
        %v1017 = vperm.slane %v988, 0
        %v1018 = vperm.slane %v989, 0
        %v1019 = vperm.slane %v990, 0
        %v1020 = vperm.slane %v991, 0
        %v1021 = vperm.slane %v493, 0
        %v1022 = vperm.slane %v992, 0
        %v1023 = vperm.slane %v993, 0
        %v1024 = vperm.slane %v994, 0
        %v1025 = vperm.slane %v995, 0
        %v1026 = vperm.slane %v996, 0
        %v1027 = vperm.slane %v997, 0
        %v1028 = vperm.slane %v998, 0
        %v1029 = vperm.slane %v496, 0
        %v1030 = vperm.slane %v999, 0
        %v1031 = vperm.slane %v1000, 0
        %v1032 = vperm.slane %v1001, 0
        %v1033 = vperm.slane %v1002, 0
        %v1034 = vperm.slane %v1003, 0
        %v1035 = vperm.slane %v1004, 0
        %v1036 = vperm.slane %v1005, 0
        %v1037 = vperm.slane %v498, 0
        %v1038 = vperm.slane %v1006, 0
        %v1039 = vperm.slane %v1007, 0
        %v1040 = vperm.slane %v1008, 0
        %v1041 = vperm.slane %v1009, 0
        %v1042 = vperm.slane %v1010, 0
        %v1043 = vperm.slane %v1011, 0
        %v1044 = vperm.slane %v1012, 0
        %v1077 = vmul.f32 %v822, %v1013
        %v1078 = vmul.f32 %v824, %v1013
        %v1079 = vmul.f32 %v827, %v1014
        %v1080 = vmul.f32 %v829, %v1014
        %v1081 = vmul.f32 %v832, %v1015
        %v1082 = vmul.f32 %v834, %v1015
        %v1083 = vmul.f32 %v837, %v1016
        %v1084 = vmul.f32 %v839, %v1016
        %v1085 = vmul.f32 %v842, %v1017
        %v1086 = vmul.f32 %v844, %v1017
        %v1087 = vmul.f32 %v847, %v1018
        %v1088 = vmul.f32 %v849, %v1018
        %v1089 = vmul.f32 %v852, %v1019
        %v1090 = vmul.f32 %v854, %v1019
        %v1091 = vmul.f32 %v857, %v1020
        %v1092 = vmul.f32 %v859, %v1020
        %v1093 = vmul.f32 %v862, %v1021
        %v1094 = vmul.f32 %v864, %v1021
        %v1095 = vmul.f32 %v867, %v1022
        %v1096 = vmul.f32 %v869, %v1022
        %v1097 = vmul.f32 %v872, %v1023
        %v1098 = vmul.f32 %v874, %v1023
        %v1099 = vmul.f32 %v877, %v1024
        %v1100 = vmul.f32 %v879, %v1024
        %v1101 = vmul.f32 %v882, %v1025
        %v1102 = vmul.f32 %v884, %v1025
        %v1103 = vmul.f32 %v887, %v1026
        %v1104 = vmul.f32 %v889, %v1026
        %v1105 = vmul.f32 %v892, %v1027
        %v1106 = vmul.f32 %v894, %v1027
        %v1107 = vmul.f32 %v897, %v1028
        %v1108 = vmul.f32 %v899, %v1028
        %v1109 = vmul.f32 %v902, %v1029
        %v1110 = vmul.f32 %v904, %v1029
        %v1111 = vmul.f32 %v907, %v1030
        %v1112 = vmul.f32 %v909, %v1030
        %v1113 = vmul.f32 %v912, %v1031
        %v1114 = vmul.f32 %v914, %v1031
        %v1115 = vmul.f32 %v917, %v1032
        %v1116 = vmul.f32 %v919, %v1032
        %v1117 = vmul.f32 %v922, %v1033
        %v1118 = vmul.f32 %v924, %v1033
        %v1119 = vmul.f32 %v927, %v1034
        %v1120 = vmul.f32 %v929, %v1034
        %v1121 = vmul.f32 %v932, %v1035
        %v1122 = vmul.f32 %v934, %v1035
        %v1123 = vmul.f32 %v937, %v1036
        %v1124 = vmul.f32 %v939, %v1036
        %v1125 = vmul.f32 %v942, %v1037
        %v1126 = vmul.f32 %v944, %v1037
        %v1127 = vmul.f32 %v947, %v1038
        %v1128 = vmul.f32 %v949, %v1038
        %v1129 = vmul.f32 %v952, %v1039
        %v1130 = vmul.f32 %v954, %v1039
        %v1131 = vmul.f32 %v957, %v1040
        %v1132 = vmul.f32 %v959, %v1040
        %v1133 = vmul.f32 %v962, %v1041
        %v1134 = vmul.f32 %v964, %v1041
        %v1135 = vmul.f32 %v967, %v1042
        %v1136 = vmul.f32 %v969, %v1042
        %v1137 = vmul.f32 %v972, %v1043
        %v1138 = vmul.f32 %v974, %v1043
        %v1139 = vmul.f32 %v977, %v1044
        %v1140 = vmul.f32 %v979, %v1044
        %v1141 = vpack.c.bf16 %v1078, %v1077
        %v1142 = vpack.c.bf16 %v1080, %v1079
        %v1143 = vpack.c.bf16 %v1082, %v1081
        %v1144 = vpack.c.bf16 %v1084, %v1083
        %v1145 = vpack.c.bf16 %v1086, %v1085
        %v1146 = vpack.c.bf16 %v1088, %v1087
        %v1147 = vpack.c.bf16 %v1090, %v1089
        %v1148 = vpack.c.bf16 %v1092, %v1091
        %v1149 = vpack.c.bf16 %v1094, %v1093
        %v1150 = vpack.c.bf16 %v1096, %v1095
        %v1151 = vpack.c.bf16 %v1098, %v1097
        %v1152 = vpack.c.bf16 %v1100, %v1099
        %v1153 = vpack.c.bf16 %v1102, %v1101
        %v1154 = vpack.c.bf16 %v1104, %v1103
        %v1155 = vpack.c.bf16 %v1106, %v1105
        %v1156 = vpack.c.bf16 %v1108, %v1107
        %v1157 = vpack.c.bf16 %v1110, %v1109
        %v1158 = vpack.c.bf16 %v1112, %v1111
        %v1159 = vpack.c.bf16 %v1114, %v1113
        %v1160 = vpack.c.bf16 %v1116, %v1115
        %v1161 = vpack.c.bf16 %v1118, %v1117
        %v1162 = vpack.c.bf16 %v1120, %v1119
        %v1163 = vpack.c.bf16 %v1122, %v1121
        %v1164 = vpack.c.bf16 %v1124, %v1123
        %v1165 = vpack.c.bf16 %v1126, %v1125
        %v1166 = vpack.c.bf16 %v1128, %v1127
        %v1167 = vpack.c.bf16 %v1130, %v1129
        %v1168 = vpack.c.bf16 %v1132, %v1131
        %v1169 = vpack.c.bf16 %v1134, %v1133
        %v1170 = vpack.c.bf16 %v1136, %v1135
        %v1171 = vpack.c.bf16 %v1138, %v1137
        %v1172 = vpack.c.bf16 %v1140, %v1139
        %v1189 = vunpack.c.l.b16 %v554
        %v1190 = vunpack.c.l.b16 %v555
        %v1191 = vunpack.c.l.b16 %v556
        %v1192 = vunpack.c.l.b16 %v557
        %v1193 = vunpack.c.l.b16 %v558
        %v1194 = vunpack.c.l.b16 %v559
        %v1195 = vunpack.c.l.b16 %v560
        %v1196 = vunpack.c.l.b16 %v561
        %v1197 = vunpack.c.l.b16 %v562
        %v1198 = vunpack.c.l.b16 %v563
        %v1199 = vunpack.c.l.b16 %v564
        %v1200 = vunpack.c.l.b16 %v565
        %v1201 = vunpack.c.l.b16 %v566
        %v1202 = vunpack.c.l.b16 %v567
        %v1203 = vunpack.c.l.b16 %v568
        %v1204 = vunpack.c.l.b16 %v569
        %v1205 = vpack.c.b16 %v1190, %v1189
        %v1206 = vpack.c.b16 %v1192, %v1191
        %v1207 = vpack.c.b16 %v1194, %v1193
        %v1208 = vpack.c.b16 %v1196, %v1195
        %v1209 = vpack.c.b16 %v1198, %v1197
        %v1210 = vpack.c.b16 %v1200, %v1199
        %v1211 = vpack.c.b16 %v1202, %v1201
        %v1212 = vpack.c.b16 %v1204, %v1203
        %1221 = vmatpush.bf16.msra.mxu0 %v1212
        %1222 = vmatpush.bf16.msra.mxu0 %v1211
        %1223 = vmatpush.bf16.msra.mxu0 %v1210
        %1224 = vmatpush.bf16.msra.mxu0 %v1209
        %1225 = vmatpush.bf16.msra.mxu0 %v1208
        %1226 = vmatpush.bf16.msra.mxu0 %v1207
        %1227 = vmatpush.bf16.msra.mxu0 %v1206
        %1228 = vmatpush.bf16.msra.mxu0 %v1205
        %1229 = vmatmul.bf16.gmra.mxu0 %v1141
        %v1230 = vpop.f32.mrf.mxu0
        %v1231 = vadd.f32 0.0, %v1230
        %v1232 = vpop.f32.mrf.mxu0
        %v1233 = vadd.f32 0.0, %v1232
        %1234 = vmatmul.bf16.gmra.mxu0 %v1142
        %v1235 = vpop.f32.mrf.mxu0
        %v1236 = vadd.f32 0.0, %v1235
        %v1237 = vpop.f32.mrf.mxu0
        %v1238 = vadd.f32 0.0, %v1237
        %1239 = vmatmul.bf16.gmra.mxu0 %v1143
        %v1240 = vpop.f32.mrf.mxu0
        %v1241 = vadd.f32 0.0, %v1240
        %v1242 = vpop.f32.mrf.mxu0
        %v1243 = vadd.f32 0.0, %v1242
        %1244 = vmatmul.bf16.gmra.mxu0 %v1144
        %v1245 = vpop.f32.mrf.mxu0
        %v1246 = vadd.f32 0.0, %v1245
        %v1247 = vpop.f32.mrf.mxu0
        %v1248 = vadd.f32 0.0, %v1247
        %1249 = vmatmul.bf16.gmra.mxu0 %v1145
        %v1250 = vpop.f32.mrf.mxu0
        %v1251 = vadd.f32 0.0, %v1250
        %v1252 = vpop.f32.mrf.mxu0
        %v1253 = vadd.f32 0.0, %v1252
        %1254 = vmatmul.bf16.gmra.mxu0 %v1146
        %v1255 = vpop.f32.mrf.mxu0
        %v1256 = vadd.f32 0.0, %v1255
        %v1257 = vpop.f32.mrf.mxu0
        %v1258 = vadd.f32 0.0, %v1257
        %1259 = vmatmul.bf16.gmra.mxu0 %v1147
        %v1260 = vpop.f32.mrf.mxu0
        %v1261 = vadd.f32 0.0, %v1260
        %v1262 = vpop.f32.mrf.mxu0
        %v1263 = vadd.f32 0.0, %v1262
        %1264 = vmatmul.bf16.gmra.mxu0 %v1148
        %v1265 = vpop.f32.mrf.mxu0
        %v1266 = vadd.f32 0.0, %v1265
        %v1267 = vpop.f32.mrf.mxu0
        %v1268 = vadd.f32 0.0, %v1267
        %1269 = vmatmul.bf16.gmra.mxu0 %v1149
        %v1270 = vpop.f32.mrf.mxu0
        %v1271 = vadd.f32 0.0, %v1270
        %v1272 = vpop.f32.mrf.mxu0
        %v1273 = vadd.f32 0.0, %v1272
        %1274 = vmatmul.bf16.gmra.mxu0 %v1150
        %v1275 = vpop.f32.mrf.mxu0
        %v1276 = vadd.f32 0.0, %v1275
        %v1277 = vpop.f32.mrf.mxu0
        %v1278 = vadd.f32 0.0, %v1277
        %1279 = vmatmul.bf16.gmra.mxu0 %v1151
        %v1280 = vpop.f32.mrf.mxu0
        %v1281 = vadd.f32 0.0, %v1280
        %v1282 = vpop.f32.mrf.mxu0
        %v1283 = vadd.f32 0.0, %v1282
        %1284 = vmatmul.bf16.gmra.mxu0 %v1152
        %v1285 = vpop.f32.mrf.mxu0
        %v1286 = vadd.f32 0.0, %v1285
        %v1287 = vpop.f32.mrf.mxu0
        %v1288 = vadd.f32 0.0, %v1287
        %1289 = vmatmul.bf16.gmra.mxu0 %v1153
        %v1290 = vpop.f32.mrf.mxu0
        %v1291 = vadd.f32 0.0, %v1290
        %v1292 = vpop.f32.mrf.mxu0
        %v1293 = vadd.f32 0.0, %v1292
        %1294 = vmatmul.bf16.gmra.mxu0 %v1154
        %v1295 = vpop.f32.mrf.mxu0
        %v1296 = vadd.f32 0.0, %v1295
        %v1297 = vpop.f32.mrf.mxu0
        %v1298 = vadd.f32 0.0, %v1297
        %1299 = vmatmul.bf16.gmra.mxu0 %v1155
        %v1300 = vpop.f32.mrf.mxu0
        %v1301 = vadd.f32 0.0, %v1300
        %v1302 = vpop.f32.mrf.mxu0
        %v1303 = vadd.f32 0.0, %v1302
        %1304 = vmatmul.bf16.gmra.mxu0 %v1156
        %v1305 = vpop.f32.mrf.mxu0
        %v1306 = vadd.f32 0.0, %v1305
        %v1307 = vpop.f32.mrf.mxu0
        %v1308 = vadd.f32 0.0, %v1307
        %1309 = vmatmul.bf16.gmra.mxu0 %v1157
        %v1310 = vpop.f32.mrf.mxu0
        %v1311 = vadd.f32 0.0, %v1310
        %v1312 = vpop.f32.mrf.mxu0
        %v1313 = vadd.f32 0.0, %v1312
        %1314 = vmatmul.bf16.gmra.mxu0 %v1158
        %v1315 = vpop.f32.mrf.mxu0
        %v1316 = vadd.f32 0.0, %v1315
        %v1317 = vpop.f32.mrf.mxu0
        %v1318 = vadd.f32 0.0, %v1317
        %1319 = vmatmul.bf16.gmra.mxu0 %v1159
        %v1320 = vpop.f32.mrf.mxu0
        %v1321 = vadd.f32 0.0, %v1320
        %v1322 = vpop.f32.mrf.mxu0
        %v1323 = vadd.f32 0.0, %v1322
        %1324 = vmatmul.bf16.gmra.mxu0 %v1160
        %v1325 = vpop.f32.mrf.mxu0
        %v1326 = vadd.f32 0.0, %v1325
        %v1327 = vpop.f32.mrf.mxu0
        %v1328 = vadd.f32 0.0, %v1327
        %1329 = vmatmul.bf16.gmra.mxu0 %v1161
        %v1330 = vpop.f32.mrf.mxu0
        %v1331 = vadd.f32 0.0, %v1330
        %v1332 = vpop.f32.mrf.mxu0
        %v1333 = vadd.f32 0.0, %v1332
        %1334 = vmatmul.bf16.gmra.mxu0 %v1162
        %v1335 = vpop.f32.mrf.mxu0
        %v1336 = vadd.f32 0.0, %v1335
        %v1337 = vpop.f32.mrf.mxu0
        %v1338 = vadd.f32 0.0, %v1337
        %1339 = vmatmul.bf16.gmra.mxu0 %v1163
        %v1340 = vpop.f32.mrf.mxu0
        %v1341 = vadd.f32 0.0, %v1340
        %v1342 = vpop.f32.mrf.mxu0
        %v1343 = vadd.f32 0.0, %v1342
        %1344 = vmatmul.bf16.gmra.mxu0 %v1164
        %v1345 = vpop.f32.mrf.mxu0
        %v1346 = vadd.f32 0.0, %v1345
        %v1347 = vpop.f32.mrf.mxu0
        %v1348 = vadd.f32 0.0, %v1347
        %1349 = vmatmul.bf16.gmra.mxu0 %v1165
        %v1350 = vpop.f32.mrf.mxu0
        %v1351 = vadd.f32 0.0, %v1350
        %v1352 = vpop.f32.mrf.mxu0
        %v1353 = vadd.f32 0.0, %v1352
        %1354 = vmatmul.bf16.gmra.mxu0 %v1166
        %v1355 = vpop.f32.mrf.mxu0
        %v1356 = vadd.f32 0.0, %v1355
        %v1357 = vpop.f32.mrf.mxu0
        %v1358 = vadd.f32 0.0, %v1357
        %1359 = vmatmul.bf16.gmra.mxu0 %v1167
        %v1360 = vpop.f32.mrf.mxu0
        %v1361 = vadd.f32 0.0, %v1360
        %v1362 = vpop.f32.mrf.mxu0
        %v1363 = vadd.f32 0.0, %v1362
        %1364 = vmatmul.bf16.gmra.mxu0 %v1168
        %v1365 = vpop.f32.mrf.mxu0
        %v1366 = vadd.f32 0.0, %v1365
        %v1367 = vpop.f32.mrf.mxu0
        %v1368 = vadd.f32 0.0, %v1367
        %1369 = vmatmul.bf16.gmra.mxu0 %v1169
        %v1370 = vpop.f32.mrf.mxu0
        %v1371 = vadd.f32 0.0, %v1370
        %v1372 = vpop.f32.mrf.mxu0
        %v1373 = vadd.f32 0.0, %v1372
        %1374 = vmatmul.bf16.gmra.mxu0 %v1170
        %v1375 = vpop.f32.mrf.mxu0
        %v1376 = vadd.f32 0.0, %v1375
        %v1377 = vpop.f32.mrf.mxu0
        %v1378 = vadd.f32 0.0, %v1377
        %1379 = vmatmul.bf16.gmra.mxu0 %v1171
        %v1380 = vpop.f32.mrf.mxu0
        %v1381 = vadd.f32 0.0, %v1380
        %v1382 = vpop.f32.mrf.mxu0
        %v1383 = vadd.f32 0.0, %v1382
        %1384 = vmatmul.bf16.gmra.mxu0 %v1172
        %v1385 = vpop.f32.mrf.mxu0
        %v1386 = vadd.f32 0.0, %v1385
        %v1387 = vpop.f32.mrf.mxu0
        %v1388 = vadd.f32 0.0, %v1387
        %1389 = vdwg.mxu0
        %1390 = vmax.xlane.f32.xlu0 %v1231
        %v1391 = vpop.xlane.xlu0 %1390
        %1392 = vmax.xlane.f32.xlu0 %v1233
        %v1393 = vpop.xlane.xlu0 %1392
        %1394 = vmax.xlane.f32.xlu0 %v1236
        %v1395 = vpop.xlane.xlu0 %1394
        %1396 = vmax.xlane.f32.xlu0 %v1238
        %v1397 = vpop.xlane.xlu0 %1396
        %1398 = vmax.xlane.f32.xlu0 %v1241
        %v1399 = vpop.xlane.xlu0 %1398
        %1400 = vmax.xlane.f32.xlu0 %v1243
        %v1401 = vpop.xlane.xlu0 %1400
        %1402 = vmax.xlane.f32.xlu0 %v1246
        %v1403 = vpop.xlane.xlu0 %1402
        %1404 = vmax.xlane.f32.xlu0 %v1248
        %v1405 = vpop.xlane.xlu0 %1404
        %1406 = vmax.xlane.f32.xlu0 %v1251
        %v1407 = vpop.xlane.xlu0 %1406
        %1408 = vmax.xlane.f32.xlu0 %v1253
        %v1409 = vpop.xlane.xlu0 %1408
        %1410 = vmax.xlane.f32.xlu0 %v1256
        %v1411 = vpop.xlane.xlu0 %1410
        %1412 = vmax.xlane.f32.xlu0 %v1258
        %v1413 = vpop.xlane.xlu0 %1412
        %1414 = vmax.xlane.f32.xlu0 %v1261
        %v1415 = vpop.xlane.xlu0 %1414
        %1416 = vmax.xlane.f32.xlu0 %v1263
        %v1417 = vpop.xlane.xlu0 %1416
        %1418 = vmax.xlane.f32.xlu0 %v1266
        %v1419 = vpop.xlane.xlu0 %1418
        %1420 = vmax.xlane.f32.xlu0 %v1268
        %v1421 = vpop.xlane.xlu0 %1420
        %1422 = vmax.xlane.f32.xlu0 %v1271
        %v1423 = vpop.xlane.xlu0 %1422
        %1424 = vmax.xlane.f32.xlu0 %v1273
        %v1425 = vpop.xlane.xlu0 %1424
        %1426 = vmax.xlane.f32.xlu0 %v1276
        %v1427 = vpop.xlane.xlu0 %1426
        %1428 = vmax.xlane.f32.xlu0 %v1278
        %v1429 = vpop.xlane.xlu0 %1428
        %1430 = vmax.xlane.f32.xlu0 %v1281
        %v1431 = vpop.xlane.xlu0 %1430
        %1432 = vmax.xlane.f32.xlu0 %v1283
        %v1433 = vpop.xlane.xlu0 %1432
        %1434 = vmax.xlane.f32.xlu0 %v1286
        %v1435 = vpop.xlane.xlu0 %1434
        %1436 = vmax.xlane.f32.xlu0 %v1288
        %v1437 = vpop.xlane.xlu0 %1436
        %1438 = vmax.xlane.f32.xlu0 %v1291
        %v1439 = vpop.xlane.xlu0 %1438
        %1440 = vmax.xlane.f32.xlu0 %v1293
        %v1441 = vpop.xlane.xlu0 %1440
        %1442 = vmax.xlane.f32.xlu0 %v1296
        %v1443 = vpop.xlane.xlu0 %1442
        %1444 = vmax.xlane.f32.xlu0 %v1298
        %v1445 = vpop.xlane.xlu0 %1444
        %1446 = vmax.xlane.f32.xlu0 %v1301
        %v1447 = vpop.xlane.xlu0 %1446
        %1448 = vmax.xlane.f32.xlu0 %v1303
        %v1449 = vpop.xlane.xlu0 %1448
        %1450 = vmax.xlane.f32.xlu0 %v1306
        %v1451 = vpop.xlane.xlu0 %1450
        %1452 = vmax.xlane.f32.xlu0 %v1308
        %v1453 = vpop.xlane.xlu0 %1452
        %1454 = vmax.xlane.f32.xlu0 %v1311
        %v1455 = vpop.xlane.xlu0 %1454
        %1456 = vmax.xlane.f32.xlu0 %v1313
        %v1457 = vpop.xlane.xlu0 %1456
        %1458 = vmax.xlane.f32.xlu0 %v1316
        %v1459 = vpop.xlane.xlu0 %1458
        %1460 = vmax.xlane.f32.xlu0 %v1318
        %v1461 = vpop.xlane.xlu0 %1460
        %1462 = vmax.xlane.f32.xlu0 %v1321
        %v1463 = vpop.xlane.xlu0 %1462
        %1464 = vmax.xlane.f32.xlu0 %v1323
        %v1465 = vpop.xlane.xlu0 %1464
        %1466 = vmax.xlane.f32.xlu0 %v1326
        %v1467 = vpop.xlane.xlu0 %1466
        %1468 = vmax.xlane.f32.xlu0 %v1328
        %v1469 = vpop.xlane.xlu0 %1468
        %1470 = vmax.xlane.f32.xlu0 %v1331
        %v1471 = vpop.xlane.xlu0 %1470
        %1472 = vmax.xlane.f32.xlu0 %v1333
        %v1473 = vpop.xlane.xlu0 %1472
        %1474 = vmax.xlane.f32.xlu0 %v1336
        %v1475 = vpop.xlane.xlu0 %1474
        %1476 = vmax.xlane.f32.xlu0 %v1338
        %v1477 = vpop.xlane.xlu0 %1476
        %1478 = vmax.xlane.f32.xlu0 %v1341
        %v1479 = vpop.xlane.xlu0 %1478
        %1480 = vmax.xlane.f32.xlu0 %v1343
        %v1481 = vpop.xlane.xlu0 %1480
        %1482 = vmax.xlane.f32.xlu0 %v1346
        %v1483 = vpop.xlane.xlu0 %1482
        %1484 = vmax.xlane.f32.xlu0 %v1348
        %v1485 = vpop.xlane.xlu0 %1484
        %1486 = vmax.xlane.f32.xlu0 %v1351
        %v1487 = vpop.xlane.xlu0 %1486
        %1488 = vmax.xlane.f32.xlu0 %v1353
        %v1489 = vpop.xlane.xlu0 %1488
        %1490 = vmax.xlane.f32.xlu0 %v1356
        %v1491 = vpop.xlane.xlu0 %1490
        %1492 = vmax.xlane.f32.xlu0 %v1358
        %v1493 = vpop.xlane.xlu0 %1492
        %1494 = vmax.xlane.f32.xlu0 %v1361
        %v1495 = vpop.xlane.xlu0 %1494
        %1496 = vmax.xlane.f32.xlu0 %v1363
        %v1497 = vpop.xlane.xlu0 %1496
        %1498 = vmax.xlane.f32.xlu0 %v1366
        %v1499 = vpop.xlane.xlu0 %1498
        %1500 = vmax.xlane.f32.xlu0 %v1368
        %v1501 = vpop.xlane.xlu0 %1500
        %1502 = vmax.xlane.f32.xlu0 %v1371
        %v1503 = vpop.xlane.xlu0 %1502
        %1504 = vmax.xlane.f32.xlu0 %v1373
        %v1505 = vpop.xlane.xlu0 %1504
        %1506 = vmax.xlane.f32.xlu0 %v1376
        %v1507 = vpop.xlane.xlu0 %1506
        %1508 = vmax.xlane.f32.xlu0 %v1378
        %v1509 = vpop.xlane.xlu0 %1508
        %1510 = vmax.xlane.f32.xlu0 %v1381
        %v1511 = vpop.xlane.xlu0 %1510
        %1512 = vmax.xlane.f32.xlu0 %v1383
        %v1513 = vpop.xlane.xlu0 %1512
        %1514 = vmax.xlane.f32.xlu0 %v1386
        %v1515 = vpop.xlane.xlu0 %1514
        %1516 = vmax.xlane.f32.xlu0 %v1388
        %v1517 = vpop.xlane.xlu0 %1516
        %v1518 = vsub.f32 %v1231, %v1391
        %v1519 = vsub.f32 %v1233, %v1393
        %v1520 = vsub.f32 %v1236, %v1395
        %v1521 = vsub.f32 %v1238, %v1397
        %v1522 = vsub.f32 %v1241, %v1399
        %v1523 = vsub.f32 %v1243, %v1401
        %v1524 = vsub.f32 %v1246, %v1403
        %v1525 = vsub.f32 %v1248, %v1405
        %v1526 = vsub.f32 %v1251, %v1407
        %v1527 = vsub.f32 %v1253, %v1409
        %v1528 = vsub.f32 %v1256, %v1411
        %v1529 = vsub.f32 %v1258, %v1413
        %v1530 = vsub.f32 %v1261, %v1415
        %v1531 = vsub.f32 %v1263, %v1417
        %v1532 = vsub.f32 %v1266, %v1419
        %v1533 = vsub.f32 %v1268, %v1421
        %v1534 = vsub.f32 %v1271, %v1423
        %v1535 = vsub.f32 %v1273, %v1425
        %v1536 = vsub.f32 %v1276, %v1427
        %v1537 = vsub.f32 %v1278, %v1429
        %v1538 = vsub.f32 %v1281, %v1431
        %v1539 = vsub.f32 %v1283, %v1433
        %v1540 = vsub.f32 %v1286, %v1435
        %v1541 = vsub.f32 %v1288, %v1437
        %v1542 = vsub.f32 %v1291, %v1439
        %v1543 = vsub.f32 %v1293, %v1441
        %v1544 = vsub.f32 %v1296, %v1443
        %v1545 = vsub.f32 %v1298, %v1445
        %v1546 = vsub.f32 %v1301, %v1447
        %v1547 = vsub.f32 %v1303, %v1449
        %v1548 = vsub.f32 %v1306, %v1451
        %v1549 = vsub.f32 %v1308, %v1453
        %v1550 = vsub.f32 %v1311, %v1455
        %v1551 = vsub.f32 %v1313, %v1457
        %v1552 = vsub.f32 %v1316, %v1459
        %v1553 = vsub.f32 %v1318, %v1461
        %v1554 = vsub.f32 %v1321, %v1463
        %v1555 = vsub.f32 %v1323, %v1465
        %v1556 = vsub.f32 %v1326, %v1467
        %v1557 = vsub.f32 %v1328, %v1469
        %v1558 = vsub.f32 %v1331, %v1471
        %v1559 = vsub.f32 %v1333, %v1473
        %v1560 = vsub.f32 %v1336, %v1475
        %v1561 = vsub.f32 %v1338, %v1477
        %v1562 = vsub.f32 %v1341, %v1479
        %v1563 = vsub.f32 %v1343, %v1481
        %v1564 = vsub.f32 %v1346, %v1483
        %v1565 = vsub.f32 %v1348, %v1485
        %v1566 = vsub.f32 %v1351, %v1487
        %v1567 = vsub.f32 %v1353, %v1489
        %v1568 = vsub.f32 %v1356, %v1491
        %v1569 = vsub.f32 %v1358, %v1493
        %v1570 = vsub.f32 %v1361, %v1495
        %v1571 = vsub.f32 %v1363, %v1497
        %v1572 = vsub.f32 %v1366, %v1499
        %v1573 = vsub.f32 %v1368, %v1501
        %v1574 = vsub.f32 %v1371, %v1503
        %v1575 = vsub.f32 %v1373, %v1505
        %v1576 = vsub.f32 %v1376, %v1507
        %v1577 = vsub.f32 %v1378, %v1509
        %v1578 = vsub.f32 %v1381, %v1511
        %v1579 = vsub.f32 %v1383, %v1513
        %v1580 = vsub.f32 %v1386, %v1515
        %v1581 = vsub.f32 %v1388, %v1517
        %v1582 = vmul.f32 %v1518, 1.442695
        %v1583 = vpow.pop %v1582
        %v1584 = vmul.f32 %v1519, 1.442695
        %v1585 = vpow.pop %v1584
        %v1586 = vmul.f32 %v1520, 1.442695
        %v1587 = vpow.pop %v1586
        %v1588 = vmul.f32 %v1521, 1.442695
        %v1589 = vpow.pop %v1588
        %v1590 = vmul.f32 %v1522, 1.442695
        %v1591 = vpow.pop %v1590
        %v1592 = vmul.f32 %v1523, 1.442695
        %v1593 = vpow.pop %v1592
        %v1594 = vmul.f32 %v1524, 1.442695
        %v1595 = vpow.pop %v1594
        %v1596 = vmul.f32 %v1525, 1.442695
        %v1597 = vpow.pop %v1596
        %v1598 = vmul.f32 %v1526, 1.442695
        %v1599 = vpow.pop %v1598
        %v1600 = vmul.f32 %v1527, 1.442695
        %v1601 = vpow.pop %v1600
        %v1602 = vmul.f32 %v1528, 1.442695
        %v1603 = vpow.pop %v1602
        %v1604 = vmul.f32 %v1529, 1.442695
        %v1605 = vpow.pop %v1604
        %v1606 = vmul.f32 %v1530, 1.442695
        %v1607 = vpow.pop %v1606
        %v1608 = vmul.f32 %v1531, 1.442695
        %v1609 = vpow.pop %v1608
        %v1610 = vmul.f32 %v1532, 1.442695
        %v1611 = vpow.pop %v1610
        %v1612 = vmul.f32 %v1533, 1.442695
        %v1613 = vpow.pop %v1612
        %v1614 = vmul.f32 %v1534, 1.442695
        %v1615 = vpow.pop %v1614
        %v1616 = vmul.f32 %v1535, 1.442695
        %v1617 = vpow.pop %v1616
        %v1618 = vmul.f32 %v1536, 1.442695
        %v1619 = vpow.pop %v1618
        %v1620 = vmul.f32 %v1537, 1.442695
        %v1621 = vpow.pop %v1620
        %v1622 = vmul.f32 %v1538, 1.442695
        %v1623 = vpow.pop %v1622
        %v1624 = vmul.f32 %v1539, 1.442695
        %v1625 = vpow.pop %v1624
        %v1626 = vmul.f32 %v1540, 1.442695
        %v1627 = vpow.pop %v1626
        %v1628 = vmul.f32 %v1541, 1.442695
        %v1629 = vpow.pop %v1628
        %v1630 = vmul.f32 %v1542, 1.442695
        %v1631 = vpow.pop %v1630
        %v1632 = vmul.f32 %v1543, 1.442695
        %v1633 = vpow.pop %v1632
        %v1634 = vmul.f32 %v1544, 1.442695
        %v1635 = vpow.pop %v1634
        %v1636 = vmul.f32 %v1545, 1.442695
        %v1637 = vpow.pop %v1636
        %v1638 = vmul.f32 %v1546, 1.442695
        %v1639 = vpow.pop %v1638
        %v1640 = vmul.f32 %v1547, 1.442695
        %v1641 = vpow.pop %v1640
        %v1642 = vmul.f32 %v1548, 1.442695
        %v1643 = vpow.pop %v1642
        %v1644 = vmul.f32 %v1549, 1.442695
        %v1645 = vpow.pop %v1644
        %v1646 = vmul.f32 %v1550, 1.442695
        %v1647 = vpow.pop %v1646
        %v1648 = vmul.f32 %v1551, 1.442695
        %v1649 = vpow.pop %v1648
        %v1650 = vmul.f32 %v1552, 1.442695
        %v1651 = vpow.pop %v1650
        %v1652 = vmul.f32 %v1553, 1.442695
        %v1653 = vpow.pop %v1652
        %v1654 = vmul.f32 %v1554, 1.442695
        %v1655 = vpow.pop %v1654
        %v1656 = vmul.f32 %v1555, 1.442695
        %v1657 = vpow.pop %v1656
        %v1658 = vmul.f32 %v1556, 1.442695
        %v1659 = vpow.pop %v1658
        %v1660 = vmul.f32 %v1557, 1.442695
        %v1661 = vpow.pop %v1660
        %v1662 = vmul.f32 %v1558, 1.442695
        %v1663 = vpow.pop %v1662
        %v1664 = vmul.f32 %v1559, 1.442695
        %v1665 = vpow.pop %v1664
        %v1666 = vmul.f32 %v1560, 1.442695
        %v1667 = vpow.pop %v1666
        %v1668 = vmul.f32 %v1561, 1.442695
        %v1669 = vpow.pop %v1668
        %v1670 = vmul.f32 %v1562, 1.442695
        %v1671 = vpow.pop %v1670
        %v1672 = vmul.f32 %v1563, 1.442695
        %v1673 = vpow.pop %v1672
        %v1674 = vmul.f32 %v1564, 1.442695
        %v1675 = vpow.pop %v1674
        %v1676 = vmul.f32 %v1565, 1.442695
        %v1677 = vpow.pop %v1676
        %v1678 = vmul.f32 %v1566, 1.442695
        %v1679 = vpow.pop %v1678
        %v1680 = vmul.f32 %v1567, 1.442695
        %v1681 = vpow.pop %v1680
        %v1682 = vmul.f32 %v1568, 1.442695
        %v1683 = vpow.pop %v1682
        %v1684 = vmul.f32 %v1569, 1.442695
        %v1685 = vpow.pop %v1684
        %v1686 = vmul.f32 %v1570, 1.442695
        %v1687 = vpow.pop %v1686
        %v1688 = vmul.f32 %v1571, 1.442695
        %v1689 = vpow.pop %v1688
        %v1690 = vmul.f32 %v1572, 1.442695
        %v1691 = vpow.pop %v1690
        %v1692 = vmul.f32 %v1573, 1.442695
        %v1693 = vpow.pop %v1692
        %v1694 = vmul.f32 %v1574, 1.442695
        %v1695 = vpow.pop %v1694
        %v1696 = vmul.f32 %v1575, 1.442695
        %v1697 = vpow.pop %v1696
        %v1698 = vmul.f32 %v1576, 1.442695
        %v1699 = vpow.pop %v1698
        %v1700 = vmul.f32 %v1577, 1.442695
        %v1701 = vpow.pop %v1700
        %v1702 = vmul.f32 %v1578, 1.442695
        %v1703 = vpow.pop %v1702
        %v1704 = vmul.f32 %v1579, 1.442695
        %v1705 = vpow.pop %v1704
        %v1706 = vmul.f32 %v1580, 1.442695
        %v1707 = vpow.pop %v1706
        %v1708 = vmul.f32 %v1581, 1.442695
        %v1709 = vpow.pop %v1708
        %1710 = vadd.xlane.f32.xlu0 %v1583
        %v1711 = vpop.xlane.xlu0 %1710
        %1712 = vadd.xlane.f32.xlu0 %v1585
        %v1713 = vpop.xlane.xlu0 %1712
        %1714 = vadd.xlane.f32.xlu0 %v1587
        %v1715 = vpop.xlane.xlu0 %1714
        %1716 = vadd.xlane.f32.xlu0 %v1589
        %v1717 = vpop.xlane.xlu0 %1716
        %1718 = vadd.xlane.f32.xlu0 %v1591
        %v1719 = vpop.xlane.xlu0 %1718
        %1720 = vadd.xlane.f32.xlu0 %v1593
        %v1721 = vpop.xlane.xlu0 %1720
        %1722 = vadd.xlane.f32.xlu0 %v1595
        %v1723 = vpop.xlane.xlu0 %1722
        %1724 = vadd.xlane.f32.xlu0 %v1597
        %v1725 = vpop.xlane.xlu0 %1724
        %1726 = vadd.xlane.f32.xlu0 %v1599
        %v1727 = vpop.xlane.xlu0 %1726
        %1728 = vadd.xlane.f32.xlu0 %v1601
        %v1729 = vpop.xlane.xlu0 %1728
        %1730 = vadd.xlane.f32.xlu0 %v1603
        %v1731 = vpop.xlane.xlu0 %1730
        %1732 = vadd.xlane.f32.xlu0 %v1605
        %v1733 = vpop.xlane.xlu0 %1732
        %1734 = vadd.xlane.f32.xlu0 %v1607
        %v1735 = vpop.xlane.xlu0 %1734
        %1736 = vadd.xlane.f32.xlu0 %v1609
        %v1737 = vpop.xlane.xlu0 %1736
        %1738 = vadd.xlane.f32.xlu0 %v1611
        %v1739 = vpop.xlane.xlu0 %1738
        %1740 = vadd.xlane.f32.xlu0 %v1613
        %v1741 = vpop.xlane.xlu0 %1740
        %1742 = vadd.xlane.f32.xlu0 %v1615
        %v1743 = vpop.xlane.xlu0 %1742
        %1744 = vadd.xlane.f32.xlu0 %v1617
        %v1745 = vpop.xlane.xlu0 %1744
        %1746 = vadd.xlane.f32.xlu0 %v1619
        %v1747 = vpop.xlane.xlu0 %1746
        %1748 = vadd.xlane.f32.xlu0 %v1621
        %v1749 = vpop.xlane.xlu0 %1748
        %1750 = vadd.xlane.f32.xlu0 %v1623
        %v1751 = vpop.xlane.xlu0 %1750
        %1752 = vadd.xlane.f32.xlu0 %v1625
        %v1753 = vpop.xlane.xlu0 %1752
        %1754 = vadd.xlane.f32.xlu0 %v1627
        %v1755 = vpop.xlane.xlu0 %1754
        %1756 = vadd.xlane.f32.xlu0 %v1629
        %v1757 = vpop.xlane.xlu0 %1756
        %1758 = vadd.xlane.f32.xlu0 %v1631
        %v1759 = vpop.xlane.xlu0 %1758
        %1760 = vadd.xlane.f32.xlu0 %v1633
        %v1761 = vpop.xlane.xlu0 %1760
        %1762 = vadd.xlane.f32.xlu0 %v1635
        %v1763 = vpop.xlane.xlu0 %1762
        %1764 = vadd.xlane.f32.xlu0 %v1637
        %v1765 = vpop.xlane.xlu0 %1764
        %1766 = vadd.xlane.f32.xlu0 %v1639
        %v1767 = vpop.xlane.xlu0 %1766
        %1768 = vadd.xlane.f32.xlu0 %v1641
        %v1769 = vpop.xlane.xlu0 %1768
        %1770 = vadd.xlane.f32.xlu0 %v1643
        %v1771 = vpop.xlane.xlu0 %1770
        %1772 = vadd.xlane.f32.xlu0 %v1645
        %v1773 = vpop.xlane.xlu0 %1772
        %1774 = vadd.xlane.f32.xlu0 %v1647
        %v1775 = vpop.xlane.xlu0 %1774
        %1776 = vadd.xlane.f32.xlu0 %v1649
        %v1777 = vpop.xlane.xlu0 %1776
        %1778 = vadd.xlane.f32.xlu0 %v1651
        %v1779 = vpop.xlane.xlu0 %1778
        %1780 = vadd.xlane.f32.xlu0 %v1653
        %v1781 = vpop.xlane.xlu0 %1780
        %1782 = vadd.xlane.f32.xlu0 %v1655
        %v1783 = vpop.xlane.xlu0 %1782
        %1784 = vadd.xlane.f32.xlu0 %v1657
        %v1785 = vpop.xlane.xlu0 %1784
        %1786 = vadd.xlane.f32.xlu0 %v1659
        %v1787 = vpop.xlane.xlu0 %1786
        %1788 = vadd.xlane.f32.xlu0 %v1661
        %v1789 = vpop.xlane.xlu0 %1788
        %1790 = vadd.xlane.f32.xlu0 %v1663
        %v1791 = vpop.xlane.xlu0 %1790
        %1792 = vadd.xlane.f32.xlu0 %v1665
        %v1793 = vpop.xlane.xlu0 %1792
        %1794 = vadd.xlane.f32.xlu0 %v1667
        %v1795 = vpop.xlane.xlu0 %1794
        %1796 = vadd.xlane.f32.xlu0 %v1669
        %v1797 = vpop.xlane.xlu0 %1796
        %1798 = vadd.xlane.f32.xlu0 %v1671
        %v1799 = vpop.xlane.xlu0 %1798
        %1800 = vadd.xlane.f32.xlu0 %v1673
        %v1801 = vpop.xlane.xlu0 %1800
        %1802 = vadd.xlane.f32.xlu0 %v1675
        %v1803 = vpop.xlane.xlu0 %1802
        %1804 = vadd.xlane.f32.xlu0 %v1677
        %v1805 = vpop.xlane.xlu0 %1804
        %1806 = vadd.xlane.f32.xlu0 %v1679
        %v1807 = vpop.xlane.xlu0 %1806
        %1808 = vadd.xlane.f32.xlu0 %v1681
        %v1809 = vpop.xlane.xlu0 %1808
        %1810 = vadd.xlane.f32.xlu0 %v1683
        %v1811 = vpop.xlane.xlu0 %1810
        %1812 = vadd.xlane.f32.xlu0 %v1685
        %v1813 = vpop.xlane.xlu0 %1812
        %1814 = vadd.xlane.f32.xlu0 %v1687
        %v1815 = vpop.xlane.xlu0 %1814
        %1816 = vadd.xlane.f32.xlu0 %v1689
        %v1817 = vpop.xlane.xlu0 %1816
        %1818 = vadd.xlane.f32.xlu0 %v1691
        %v1819 = vpop.xlane.xlu0 %1818
        %1820 = vadd.xlane.f32.xlu0 %v1693
        %v1821 = vpop.xlane.xlu0 %1820
        %1822 = vadd.xlane.f32.xlu0 %v1695
        %v1823 = vpop.xlane.xlu0 %1822
        %1824 = vadd.xlane.f32.xlu0 %v1697
        %v1825 = vpop.xlane.xlu0 %1824
        %1826 = vadd.xlane.f32.xlu0 %v1699
        %v1827 = vpop.xlane.xlu0 %1826
        %1828 = vadd.xlane.f32.xlu0 %v1701
        %v1829 = vpop.xlane.xlu0 %1828
        %1830 = vadd.xlane.f32.xlu0 %v1703
        %v1831 = vpop.xlane.xlu0 %1830
        %1832 = vadd.xlane.f32.xlu0 %v1705
        %v1833 = vpop.xlane.xlu0 %1832
        %1834 = vadd.xlane.f32.xlu0 %v1707
        %v1835 = vpop.xlane.xlu0 %1834
        %1836 = vadd.xlane.f32.xlu0 %v1709
        %v1837 = vpop.xlane.xlu0 %1836
        %v1838 = vrcp.pop %v1711
        %v1839 = vrcp.pop %v1713
        %v1840 = vrcp.pop %v1715
        %v1841 = vrcp.pop %v1717
        %v1842 = vrcp.pop %v1719
        %v1843 = vrcp.pop %v1721
        %v1844 = vrcp.pop %v1723
        %v1845 = vrcp.pop %v1725
        %v1846 = vrcp.pop %v1727
        %v1847 = vrcp.pop %v1729
        %v1848 = vrcp.pop %v1731
        %v1849 = vrcp.pop %v1733
        %v1850 = vrcp.pop %v1735
        %v1851 = vrcp.pop %v1737
        %v1852 = vrcp.pop %v1739
        %v1853 = vrcp.pop %v1741
        %v1854 = vrcp.pop %v1743
        %v1855 = vrcp.pop %v1745
        %v1856 = vrcp.pop %v1747
        %v1857 = vrcp.pop %v1749
        %v1858 = vrcp.pop %v1751
        %v1859 = vrcp.pop %v1753
        %v1860 = vrcp.pop %v1755
        %v1861 = vrcp.pop %v1757
        %v1862 = vrcp.pop %v1759
        %v1863 = vrcp.pop %v1761
        %v1864 = vrcp.pop %v1763
        %v1865 = vrcp.pop %v1765
        %v1866 = vrcp.pop %v1767
        %v1867 = vrcp.pop %v1769
        %v1868 = vrcp.pop %v1771
        %v1869 = vrcp.pop %v1773
        %v1870 = vrcp.pop %v1775
        %v1871 = vrcp.pop %v1777
        %v1872 = vrcp.pop %v1779
        %v1873 = vrcp.pop %v1781
        %v1874 = vrcp.pop %v1783
        %v1875 = vrcp.pop %v1785
        %v1876 = vrcp.pop %v1787
        %v1877 = vrcp.pop %v1789
        %v1878 = vrcp.pop %v1791
        %v1879 = vrcp.pop %v1793
        %v1880 = vrcp.pop %v1795
        %v1881 = vrcp.pop %v1797
        %v1882 = vrcp.pop %v1799
        %v1883 = vrcp.pop %v1801
        %v1884 = vrcp.pop %v1803
        %v1885 = vrcp.pop %v1805
        %v1886 = vrcp.pop %v1807
        %v1887 = vrcp.pop %v1809
        %v1888 = vrcp.pop %v1811
        %v1889 = vrcp.pop %v1813
        %v1890 = vrcp.pop %v1815
        %v1891 = vrcp.pop %v1817
        %v1892 = vrcp.pop %v1819
        %v1893 = vrcp.pop %v1821
        %v1894 = vrcp.pop %v1823
        %v1895 = vrcp.pop %v1825
        %v1896 = vrcp.pop %v1827
        %v1897 = vrcp.pop %v1829
        %v1898 = vrcp.pop %v1831
        %v1899 = vrcp.pop %v1833
        %v1900 = vrcp.pop %v1835
        %v1901 = vrcp.pop %v1837
        %v1902 = vmul.f32 %v1838, 8.0
        %v1903 = vmul.f32 %v1839, 8.0
        %v1904 = vmul.f32 %v1840, 8.0
        %v1905 = vmul.f32 %v1841, 8.0
        %v1906 = vmul.f32 %v1842, 8.0
        %v1907 = vmul.f32 %v1843, 8.0
        %v1908 = vmul.f32 %v1844, 8.0
        %v1909 = vmul.f32 %v1845, 8.0
        %v1910 = vmul.f32 %v1846, 8.0
        %v1911 = vmul.f32 %v1847, 8.0
        %v1912 = vmul.f32 %v1848, 8.0
        %v1913 = vmul.f32 %v1849, 8.0
        %v1914 = vmul.f32 %v1850, 8.0
        %v1915 = vmul.f32 %v1851, 8.0
        %v1916 = vmul.f32 %v1852, 8.0
        %v1917 = vmul.f32 %v1853, 8.0
        %v1918 = vmul.f32 %v1854, 8.0
        %v1919 = vmul.f32 %v1855, 8.0
        %v1920 = vmul.f32 %v1856, 8.0
        %v1921 = vmul.f32 %v1857, 8.0
        %v1922 = vmul.f32 %v1858, 8.0
        %v1923 = vmul.f32 %v1859, 8.0
        %v1924 = vmul.f32 %v1860, 8.0
        %v1925 = vmul.f32 %v1861, 8.0
        %v1926 = vmul.f32 %v1862, 8.0
        %v1927 = vmul.f32 %v1863, 8.0
        %v1928 = vmul.f32 %v1864, 8.0
        %v1929 = vmul.f32 %v1865, 8.0
        %v1930 = vmul.f32 %v1866, 8.0
        %v1931 = vmul.f32 %v1867, 8.0
        %v1932 = vmul.f32 %v1868, 8.0
        %v1933 = vmul.f32 %v1869, 8.0
        %v1934 = vmul.f32 %v1870, 8.0
        %v1935 = vmul.f32 %v1871, 8.0
        %v1936 = vmul.f32 %v1872, 8.0
        %v1937 = vmul.f32 %v1873, 8.0
        %v1938 = vmul.f32 %v1874, 8.0
        %v1939 = vmul.f32 %v1875, 8.0
        %v1940 = vmul.f32 %v1876, 8.0
        %v1941 = vmul.f32 %v1877, 8.0
        %v1942 = vmul.f32 %v1878, 8.0
        %v1943 = vmul.f32 %v1879, 8.0
        %v1944 = vmul.f32 %v1880, 8.0
        %v1945 = vmul.f32 %v1881, 8.0
        %v1946 = vmul.f32 %v1882, 8.0
        %v1947 = vmul.f32 %v1883, 8.0
        %v1948 = vmul.f32 %v1884, 8.0
        %v1949 = vmul.f32 %v1885, 8.0
        %v1950 = vmul.f32 %v1886, 8.0
        %v1951 = vmul.f32 %v1887, 8.0
        %v1952 = vmul.f32 %v1888, 8.0
        %v1953 = vmul.f32 %v1889, 8.0
        %v1954 = vmul.f32 %v1890, 8.0
        %v1955 = vmul.f32 %v1891, 8.0
        %v1956 = vmul.f32 %v1892, 8.0
        %v1957 = vmul.f32 %v1893, 8.0
        %v1958 = vmul.f32 %v1894, 8.0
        %v1959 = vmul.f32 %v1895, 8.0
        %v1960 = vmul.f32 %v1896, 8.0
        %v1961 = vmul.f32 %v1897, 8.0
        %v1962 = vmul.f32 %v1898, 8.0
        %v1963 = vmul.f32 %v1899, 8.0
        %v1964 = vmul.f32 %v1900, 8.0
        %v1965 = vmul.f32 %v1901, 8.0
        %v1966 = vmul.f32 %v1583, %v1902
        %v1967 = vmul.f32 %v1585, %v1903
        %v1968 = vmul.f32 %v1587, %v1904
        %v1969 = vmul.f32 %v1589, %v1905
        %v1970 = vmul.f32 %v1591, %v1906
        %v1971 = vmul.f32 %v1593, %v1907
        %v1972 = vmul.f32 %v1595, %v1908
        %v1973 = vmul.f32 %v1597, %v1909
        %v1974 = vmul.f32 %v1599, %v1910
        %v1975 = vmul.f32 %v1601, %v1911
        %v1976 = vmul.f32 %v1603, %v1912
        %v1977 = vmul.f32 %v1605, %v1913
        %v1978 = vmul.f32 %v1607, %v1914
        %v1979 = vmul.f32 %v1609, %v1915
        %v1980 = vmul.f32 %v1611, %v1916
        %v1981 = vmul.f32 %v1613, %v1917
        %v1982 = vmul.f32 %v1615, %v1918
        %v1983 = vmul.f32 %v1617, %v1919
        %v1984 = vmul.f32 %v1619, %v1920
        %v1985 = vmul.f32 %v1621, %v1921
        %v1986 = vmul.f32 %v1623, %v1922
        %v1987 = vmul.f32 %v1625, %v1923
        %v1988 = vmul.f32 %v1627, %v1924
        %v1989 = vmul.f32 %v1629, %v1925
        %v1990 = vmul.f32 %v1631, %v1926
        %v1991 = vmul.f32 %v1633, %v1927
        %v1992 = vmul.f32 %v1635, %v1928
        %v1993 = vmul.f32 %v1637, %v1929
        %v1994 = vmul.f32 %v1639, %v1930
        %v1995 = vmul.f32 %v1641, %v1931
        %v1996 = vmul.f32 %v1643, %v1932
        %v1997 = vmul.f32 %v1645, %v1933
        %v1998 = vmul.f32 %v1647, %v1934
        %v1999 = vmul.f32 %v1649, %v1935
        %v2000 = vmul.f32 %v1651, %v1936
        %v2001 = vmul.f32 %v1653, %v1937
        %v2002 = vmul.f32 %v1655, %v1938
        %v2003 = vmul.f32 %v1657, %v1939
        %v2004 = vmul.f32 %v1659, %v1940
        %v2005 = vmul.f32 %v1661, %v1941
        %v2006 = vmul.f32 %v1663, %v1942
        %v2007 = vmul.f32 %v1665, %v1943
        %v2008 = vmul.f32 %v1667, %v1944
        %v2009 = vmul.f32 %v1669, %v1945
        %v2010 = vmul.f32 %v1671, %v1946
        %v2011 = vmul.f32 %v1673, %v1947
        %v2012 = vmul.f32 %v1675, %v1948
        %v2013 = vmul.f32 %v1677, %v1949
        %v2014 = vmul.f32 %v1679, %v1950
        %v2015 = vmul.f32 %v1681, %v1951
        %v2016 = vmul.f32 %v1683, %v1952
        %v2017 = vmul.f32 %v1685, %v1953
        %v2018 = vmul.f32 %v1687, %v1954
        %v2019 = vmul.f32 %v1689, %v1955
        %v2020 = vmul.f32 %v1691, %v1956
        %v2021 = vmul.f32 %v1693, %v1957
        %v2022 = vmul.f32 %v1695, %v1958
        %v2023 = vmul.f32 %v1697, %v1959
        %v2024 = vmul.f32 %v1699, %v1960
        %v2025 = vmul.f32 %v1701, %v1961
        %v2026 = vmul.f32 %v1703, %v1962
        %v2027 = vmul.f32 %v1705, %v1963
        %v2028 = vmul.f32 %v1707, %v1964
        %v2029 = vmul.f32 %v1709, %v1965
        %v2034 = vrot.slane %v529, 1
        %v2035 = vrot.slane %v529, 2
        %v2036 = vrot.slane %v529, 3
        %v2037 = vrot.slane %v529, 4
        %v2038 = vrot.slane %v529, 5
        %v2039 = vrot.slane %v529, 6
        %v2040 = vrot.slane %v529, 7
        %v2041 = vrot.slane %v531, 1
        %v2042 = vrot.slane %v531, 2
        %v2043 = vrot.slane %v531, 3
        %v2044 = vrot.slane %v531, 4
        %v2045 = vrot.slane %v531, 5
        %v2046 = vrot.slane %v531, 6
        %v2047 = vrot.slane %v531, 7
        %v2048 = vrot.slane %v534, 1
        %v2049 = vrot.slane %v534, 2
        %v2050 = vrot.slane %v534, 3
        %v2051 = vrot.slane %v534, 4
        %v2052 = vrot.slane %v534, 5
        %v2053 = vrot.slane %v534, 6
        %v2054 = vrot.slane %v534, 7
        %v2055 = vrot.slane %v536, 1
        %v2056 = vrot.slane %v536, 2
        %v2057 = vrot.slane %v536, 3
        %v2058 = vrot.slane %v536, 4
        %v2059 = vrot.slane %v536, 5
        %v2060 = vrot.slane %v536, 6
        %v2061 = vrot.slane %v536, 7
        %v2062 = vperm.slane %v529, 0
        %v2063 = vperm.slane %v2034, 0
        %v2064 = vperm.slane %v2035, 0
        %v2065 = vperm.slane %v2036, 0
        %v2066 = vperm.slane %v2037, 0
        %v2067 = vperm.slane %v2038, 0
        %v2068 = vperm.slane %v2039, 0
        %v2069 = vperm.slane %v2040, 0
        %v2070 = vperm.slane %v531, 0
        %v2071 = vperm.slane %v2041, 0
        %v2072 = vperm.slane %v2042, 0
        %v2073 = vperm.slane %v2043, 0
        %v2074 = vperm.slane %v2044, 0
        %v2075 = vperm.slane %v2045, 0
        %v2076 = vperm.slane %v2046, 0
        %v2077 = vperm.slane %v2047, 0
        %v2078 = vperm.slane %v534, 0
        %v2079 = vperm.slane %v2048, 0
        %v2080 = vperm.slane %v2049, 0
        %v2081 = vperm.slane %v2050, 0
        %v2082 = vperm.slane %v2051, 0
        %v2083 = vperm.slane %v2052, 0
        %v2084 = vperm.slane %v2053, 0
        %v2085 = vperm.slane %v2054, 0
        %v2086 = vperm.slane %v536, 0
        %v2087 = vperm.slane %v2055, 0
        %v2088 = vperm.slane %v2056, 0
        %v2089 = vperm.slane %v2057, 0
        %v2090 = vperm.slane %v2058, 0
        %v2091 = vperm.slane %v2059, 0
        %v2092 = vperm.slane %v2060, 0
        %v2093 = vperm.slane %v2061, 0
        %v2126 = vmul.f32 %v1966, %v2062
        %v2127 = vmul.f32 %v1967, %v2062
        %v2128 = vmul.f32 %v1968, %v2063
        %v2129 = vmul.f32 %v1969, %v2063
        %v2130 = vmul.f32 %v1970, %v2064
        %v2131 = vmul.f32 %v1971, %v2064
        %v2132 = vmul.f32 %v1972, %v2065
        %v2133 = vmul.f32 %v1973, %v2065
        %v2134 = vmul.f32 %v1974, %v2066
        %v2135 = vmul.f32 %v1975, %v2066
        %v2136 = vmul.f32 %v1976, %v2067
        %v2137 = vmul.f32 %v1977, %v2067
        %v2138 = vmul.f32 %v1978, %v2068
        %v2139 = vmul.f32 %v1979, %v2068
        %v2140 = vmul.f32 %v1980, %v2069
        %v2141 = vmul.f32 %v1981, %v2069
        %v2142 = vmul.f32 %v1982, %v2070
        %v2143 = vmul.f32 %v1983, %v2070
        %v2144 = vmul.f32 %v1984, %v2071
        %v2145 = vmul.f32 %v1985, %v2071
        %v2146 = vmul.f32 %v1986, %v2072
        %v2147 = vmul.f32 %v1987, %v2072
        %v2148 = vmul.f32 %v1988, %v2073
        %v2149 = vmul.f32 %v1989, %v2073
        %v2150 = vmul.f32 %v1990, %v2074
        %v2151 = vmul.f32 %v1991, %v2074
        %v2152 = vmul.f32 %v1992, %v2075
        %v2153 = vmul.f32 %v1993, %v2075
        %v2154 = vmul.f32 %v1994, %v2076
        %v2155 = vmul.f32 %v1995, %v2076
        %v2156 = vmul.f32 %v1996, %v2077
        %v2157 = vmul.f32 %v1997, %v2077
        %v2158 = vmul.f32 %v1998, %v2078
        %v2159 = vmul.f32 %v1999, %v2078
        %v2160 = vmul.f32 %v2000, %v2079
        %v2161 = vmul.f32 %v2001, %v2079
        %v2162 = vmul.f32 %v2002, %v2080
        %v2163 = vmul.f32 %v2003, %v2080
        %v2164 = vmul.f32 %v2004, %v2081
        %v2165 = vmul.f32 %v2005, %v2081
        %v2166 = vmul.f32 %v2006, %v2082
        %v2167 = vmul.f32 %v2007, %v2082
        %v2168 = vmul.f32 %v2008, %v2083
        %v2169 = vmul.f32 %v2009, %v2083
        %v2170 = vmul.f32 %v2010, %v2084
        %v2171 = vmul.f32 %v2011, %v2084
        %v2172 = vmul.f32 %v2012, %v2085
        %v2173 = vmul.f32 %v2013, %v2085
        %v2174 = vmul.f32 %v2014, %v2086
        %v2175 = vmul.f32 %v2015, %v2086
        %v2176 = vmul.f32 %v2016, %v2087
        %v2177 = vmul.f32 %v2017, %v2087
        %v2178 = vmul.f32 %v2018, %v2088
        %v2179 = vmul.f32 %v2019, %v2088
        %v2180 = vmul.f32 %v2020, %v2089
        %v2181 = vmul.f32 %v2021, %v2089
        %v2182 = vmul.f32 %v2022, %v2090
        %v2183 = vmul.f32 %v2023, %v2090
        %v2184 = vmul.f32 %v2024, %v2091
        %v2185 = vmul.f32 %v2025, %v2091
        %v2186 = vmul.f32 %v2026, %v2092
        %v2187 = vmul.f32 %v2027, %v2092
        %v2188 = vmul.f32 %v2028, %v2093
        %v2189 = vmul.f32 %v2029, %v2093
        %v2190 = vpack.c.bf16 %v2127, %v2126
        %v2191 = vpack.c.bf16 %v2129, %v2128
        %v2192 = vpack.c.bf16 %v2131, %v2130
        %v2193 = vpack.c.bf16 %v2133, %v2132
        %v2194 = vpack.c.bf16 %v2135, %v2134
        %v2195 = vpack.c.bf16 %v2137, %v2136
        %v2196 = vpack.c.bf16 %v2139, %v2138
        %v2197 = vpack.c.bf16 %v2141, %v2140
        %v2198 = vpack.c.bf16 %v2143, %v2142
        %v2199 = vpack.c.bf16 %v2145, %v2144
        %v2200 = vpack.c.bf16 %v2147, %v2146
        %v2201 = vpack.c.bf16 %v2149, %v2148
        %v2202 = vpack.c.bf16 %v2151, %v2150
        %v2203 = vpack.c.bf16 %v2153, %v2152
        %v2204 = vpack.c.bf16 %v2155, %v2154
        %v2205 = vpack.c.bf16 %v2157, %v2156
        %v2206 = vpack.c.bf16 %v2159, %v2158
        %v2207 = vpack.c.bf16 %v2161, %v2160
        %v2208 = vpack.c.bf16 %v2163, %v2162
        %v2209 = vpack.c.bf16 %v2165, %v2164
        %v2210 = vpack.c.bf16 %v2167, %v2166
        %v2211 = vpack.c.bf16 %v2169, %v2168
        %v2212 = vpack.c.bf16 %v2171, %v2170
        %v2213 = vpack.c.bf16 %v2173, %v2172
        %v2214 = vpack.c.bf16 %v2175, %v2174
        %v2215 = vpack.c.bf16 %v2177, %v2176
        %v2216 = vpack.c.bf16 %v2179, %v2178
        %v2217 = vpack.c.bf16 %v2181, %v2180
        %v2218 = vpack.c.bf16 %v2183, %v2182
        %v2219 = vpack.c.bf16 %v2185, %v2184
        %v2220 = vpack.c.bf16 %v2187, %v2186
        %v2221 = vpack.c.bf16 %v2189, %v2188
        %2222 = vmatpush.bf16.msra.mxu0 %v803
        %2223 = vmatpush.bf16.msra.mxu0 %v802
        %2224 = vmatpush.bf16.msra.mxu0 %v801
        %2225 = vmatpush.bf16.msra.mxu0 %v800
        %2226 = vmatpush.bf16.msra.mxu0 %v799
        %2227 = vmatpush.bf16.msra.mxu0 %v798
        %2228 = vmatpush.bf16.msra.mxu0 %v797
        %2229 = vmatpush.bf16.msra.mxu0 %v796
        %2230 = vmatmul.bf16.gmra.mxu0 %v2190
        %v2231 = vpop.f32.mrf.mxu0
        %v2232 = vadd.f32 0.0, %v2231
        %v2233 = vpop.f32.mrf.mxu0
        %v2234 = vadd.f32 0.0, %v2233
        %2235 = vmatmul.bf16.gmra.mxu0 %v2191
        %v2236 = vpop.f32.mrf.mxu0
        %v2237 = vadd.f32 0.0, %v2236
        %v2238 = vpop.f32.mrf.mxu0
        %v2239 = vadd.f32 0.0, %v2238
        %2240 = vmatmul.bf16.gmra.mxu0 %v2192
        %v2241 = vpop.f32.mrf.mxu0
        %v2242 = vadd.f32 0.0, %v2241
        %v2243 = vpop.f32.mrf.mxu0
        %v2244 = vadd.f32 0.0, %v2243
        %2245 = vmatmul.bf16.gmra.mxu0 %v2193
        %v2246 = vpop.f32.mrf.mxu0
        %v2247 = vadd.f32 0.0, %v2246
        %v2248 = vpop.f32.mrf.mxu0
        %v2249 = vadd.f32 0.0, %v2248
        %2250 = vmatmul.bf16.gmra.mxu0 %v2194
        %v2251 = vpop.f32.mrf.mxu0
        %v2252 = vadd.f32 0.0, %v2251
        %v2253 = vpop.f32.mrf.mxu0
        %v2254 = vadd.f32 0.0, %v2253
        %2255 = vmatmul.bf16.gmra.mxu0 %v2195
        %v2256 = vpop.f32.mrf.mxu0
        %v2257 = vadd.f32 0.0, %v2256
        %v2258 = vpop.f32.mrf.mxu0
        %v2259 = vadd.f32 0.0, %v2258
        %2260 = vmatmul.bf16.gmra.mxu0 %v2196
        %v2261 = vpop.f32.mrf.mxu0
        %v2262 = vadd.f32 0.0, %v2261
        %v2263 = vpop.f32.mrf.mxu0
        %v2264 = vadd.f32 0.0, %v2263
        %2265 = vmatmul.bf16.gmra.mxu0 %v2197
        %v2266 = vpop.f32.mrf.mxu0
        %v2267 = vadd.f32 0.0, %v2266
        %v2268 = vpop.f32.mrf.mxu0
        %v2269 = vadd.f32 0.0, %v2268
        %2270 = vmatmul.bf16.gmra.mxu0 %v2198
        %v2271 = vpop.f32.mrf.mxu0
        %v2272 = vadd.f32 0.0, %v2271
        %v2273 = vpop.f32.mrf.mxu0
        %v2274 = vadd.f32 0.0, %v2273
        %2275 = vmatmul.bf16.gmra.mxu0 %v2199
        %v2276 = vpop.f32.mrf.mxu0
        %v2277 = vadd.f32 0.0, %v2276
        %v2278 = vpop.f32.mrf.mxu0
        %v2279 = vadd.f32 0.0, %v2278
        %2280 = vmatmul.bf16.gmra.mxu0 %v2200
        %v2281 = vpop.f32.mrf.mxu0
        %v2282 = vadd.f32 0.0, %v2281
        %v2283 = vpop.f32.mrf.mxu0
        %v2284 = vadd.f32 0.0, %v2283
        %2285 = vmatmul.bf16.gmra.mxu0 %v2201
        %v2286 = vpop.f32.mrf.mxu0
        %v2287 = vadd.f32 0.0, %v2286
        %v2288 = vpop.f32.mrf.mxu0
        %v2289 = vadd.f32 0.0, %v2288
        %2290 = vmatmul.bf16.gmra.mxu0 %v2202
        %v2291 = vpop.f32.mrf.mxu0
        %v2292 = vadd.f32 0.0, %v2291
        %v2293 = vpop.f32.mrf.mxu0
        %v2294 = vadd.f32 0.0, %v2293
        %2295 = vmatmul.bf16.gmra.mxu0 %v2203
        %v2296 = vpop.f32.mrf.mxu0
        %v2297 = vadd.f32 0.0, %v2296
        %v2298 = vpop.f32.mrf.mxu0
        %v2299 = vadd.f32 0.0, %v2298
        %2300 = vmatmul.bf16.gmra.mxu0 %v2204
        %v2301 = vpop.f32.mrf.mxu0
        %v2302 = vadd.f32 0.0, %v2301
        %v2303 = vpop.f32.mrf.mxu0
        %v2304 = vadd.f32 0.0, %v2303
        %2305 = vmatmul.bf16.gmra.mxu0 %v2205
        %v2306 = vpop.f32.mrf.mxu0
        %v2307 = vadd.f32 0.0, %v2306
        %v2308 = vpop.f32.mrf.mxu0
        %v2309 = vadd.f32 0.0, %v2308
        %2310 = vmatmul.bf16.gmra.mxu0 %v2206
        %v2311 = vpop.f32.mrf.mxu0
        %v2312 = vadd.f32 0.0, %v2311
        %v2313 = vpop.f32.mrf.mxu0
        %v2314 = vadd.f32 0.0, %v2313
        %2315 = vmatmul.bf16.gmra.mxu0 %v2207
        %v2316 = vpop.f32.mrf.mxu0
        %v2317 = vadd.f32 0.0, %v2316
        %v2318 = vpop.f32.mrf.mxu0
        %v2319 = vadd.f32 0.0, %v2318
        %2320 = vmatmul.bf16.gmra.mxu0 %v2208
        %v2321 = vpop.f32.mrf.mxu0
        %v2322 = vadd.f32 0.0, %v2321
        %v2323 = vpop.f32.mrf.mxu0
        %v2324 = vadd.f32 0.0, %v2323
        %2325 = vmatmul.bf16.gmra.mxu0 %v2209
        %v2326 = vpop.f32.mrf.mxu0
        %v2327 = vadd.f32 0.0, %v2326
        %v2328 = vpop.f32.mrf.mxu0
        %v2329 = vadd.f32 0.0, %v2328
        %2330 = vmatmul.bf16.gmra.mxu0 %v2210
        %v2331 = vpop.f32.mrf.mxu0
        %v2332 = vadd.f32 0.0, %v2331
        %v2333 = vpop.f32.mrf.mxu0
        %v2334 = vadd.f32 0.0, %v2333
        %2335 = vmatmul.bf16.gmra.mxu0 %v2211
        %v2336 = vpop.f32.mrf.mxu0
        %v2337 = vadd.f32 0.0, %v2336
        %v2338 = vpop.f32.mrf.mxu0
        %v2339 = vadd.f32 0.0, %v2338
        %2340 = vmatmul.bf16.gmra.mxu0 %v2212
        %v2341 = vpop.f32.mrf.mxu0
        %v2342 = vadd.f32 0.0, %v2341
        %v2343 = vpop.f32.mrf.mxu0
        %v2344 = vadd.f32 0.0, %v2343
        %2345 = vmatmul.bf16.gmra.mxu0 %v2213
        %v2346 = vpop.f32.mrf.mxu0
        %v2347 = vadd.f32 0.0, %v2346
        %v2348 = vpop.f32.mrf.mxu0
        %v2349 = vadd.f32 0.0, %v2348
        %2350 = vmatmul.bf16.gmra.mxu0 %v2214
        %v2351 = vpop.f32.mrf.mxu0
        %v2352 = vadd.f32 0.0, %v2351
        %v2353 = vpop.f32.mrf.mxu0
        %v2354 = vadd.f32 0.0, %v2353
        %2355 = vmatmul.bf16.gmra.mxu0 %v2215
        %v2356 = vpop.f32.mrf.mxu0
        %v2357 = vadd.f32 0.0, %v2356
        %v2358 = vpop.f32.mrf.mxu0
        %v2359 = vadd.f32 0.0, %v2358
        %2360 = vmatmul.bf16.gmra.mxu0 %v2216
        %v2361 = vpop.f32.mrf.mxu0
        %v2362 = vadd.f32 0.0, %v2361
        %v2363 = vpop.f32.mrf.mxu0
        %v2364 = vadd.f32 0.0, %v2363
        %2365 = vmatmul.bf16.gmra.mxu0 %v2217
        %v2366 = vpop.f32.mrf.mxu0
        %v2367 = vadd.f32 0.0, %v2366
        %v2368 = vpop.f32.mrf.mxu0
        %v2369 = vadd.f32 0.0, %v2368
        %2370 = vmatmul.bf16.gmra.mxu0 %v2218
        %v2371 = vpop.f32.mrf.mxu0
        %v2372 = vadd.f32 0.0, %v2371
        %v2373 = vpop.f32.mrf.mxu0
        %v2374 = vadd.f32 0.0, %v2373
        %2375 = vmatmul.bf16.gmra.mxu0 %v2219
        %v2376 = vpop.f32.mrf.mxu0
        %v2377 = vadd.f32 0.0, %v2376
        %v2378 = vpop.f32.mrf.mxu0
        %v2379 = vadd.f32 0.0, %v2378
        %2380 = vmatmul.bf16.gmra.mxu0 %v2220
        %v2381 = vpop.f32.mrf.mxu0
        %v2382 = vadd.f32 0.0, %v2381
        %v2383 = vpop.f32.mrf.mxu0
        %v2384 = vadd.f32 0.0, %v2383
        %2385 = vmatmul.bf16.gmra.mxu0 %v2221
        %v2386 = vpop.f32.mrf.mxu0
        %v2387 = vadd.f32 0.0, %v2386
        %v2388 = vpop.f32.mrf.mxu0
        %v2389 = vadd.f32 0.0, %v2388
        %2390 = vdwg.mxu0
        %v2391 = vmul.f32 %v2232, %v570
        %v2392 = vmul.f32 %v2234, %v571
        %v2393 = vmul.f32 %v2237, %v570
        %v2394 = vmul.f32 %v2239, %v571
        %v2395 = vmul.f32 %v2242, %v570
        %v2396 = vmul.f32 %v2244, %v571
        %v2397 = vmul.f32 %v2247, %v570
        %v2398 = vmul.f32 %v2249, %v571
        %v2399 = vmul.f32 %v2252, %v570
        %v2400 = vmul.f32 %v2254, %v571
        %v2401 = vmul.f32 %v2257, %v570
        %v2402 = vmul.f32 %v2259, %v571
        %v2403 = vmul.f32 %v2262, %v570
        %v2404 = vmul.f32 %v2264, %v571
        %v2405 = vmul.f32 %v2267, %v570
        %v2406 = vmul.f32 %v2269, %v571
        %v2407 = vmul.f32 %v2272, %v570
        %v2408 = vmul.f32 %v2274, %v571
        %v2409 = vmul.f32 %v2277, %v570
        %v2410 = vmul.f32 %v2279, %v571
        %v2411 = vmul.f32 %v2282, %v570
        %v2412 = vmul.f32 %v2284, %v571
        %v2413 = vmul.f32 %v2287, %v570
        %v2414 = vmul.f32 %v2289, %v571
        %v2415 = vmul.f32 %v2292, %v570
        %v2416 = vmul.f32 %v2294, %v571
        %v2417 = vmul.f32 %v2297, %v570
        %v2418 = vmul.f32 %v2299, %v571
        %v2419 = vmul.f32 %v2302, %v570
        %v2420 = vmul.f32 %v2304, %v571
        %v2421 = vmul.f32 %v2307, %v570
        %v2422 = vmul.f32 %v2309, %v571
        %v2423 = vmul.f32 %v2312, %v570
        %v2424 = vmul.f32 %v2314, %v571
        %v2425 = vmul.f32 %v2317, %v570
        %v2426 = vmul.f32 %v2319, %v571
        %v2427 = vmul.f32 %v2322, %v570
        %v2428 = vmul.f32 %v2324, %v571
        %v2429 = vmul.f32 %v2327, %v570
        %v2430 = vmul.f32 %v2329, %v571
        %v2431 = vmul.f32 %v2332, %v570
        %v2432 = vmul.f32 %v2334, %v571
        %v2433 = vmul.f32 %v2337, %v570
        %v2434 = vmul.f32 %v2339, %v571
        %v2435 = vmul.f32 %v2342, %v570
        %v2436 = vmul.f32 %v2344, %v571
        %v2437 = vmul.f32 %v2347, %v570
        %v2438 = vmul.f32 %v2349, %v571
        %v2439 = vmul.f32 %v2352, %v570
        %v2440 = vmul.f32 %v2354, %v571
        %v2441 = vmul.f32 %v2357, %v570
        %v2442 = vmul.f32 %v2359, %v571
        %v2443 = vmul.f32 %v2362, %v570
        %v2444 = vmul.f32 %v2364, %v571
        %v2445 = vmul.f32 %v2367, %v570
        %v2446 = vmul.f32 %v2369, %v571
        %v2447 = vmul.f32 %v2372, %v570
        %v2448 = vmul.f32 %v2374, %v571
        %v2449 = vmul.f32 %v2377, %v570
        %v2450 = vmul.f32 %v2379, %v571
        %v2451 = vmul.f32 %v2382, %v570
        %v2452 = vmul.f32 %v2384, %v571
        %v2453 = vmul.f32 %v2387, %v570
        %v2454 = vmul.f32 %v2389, %v571
        %v2455 = vadd.f32 %v2391, %v2392
        %v2456 = vrot.slane %v2455, 4
        %v2457 = vadd.f32 %v2455, %v2456
        %v2458 = vrot.slane %v2457, 2
        %v2459 = vadd.f32 %v2457, %v2458
        %v2460 = vrot.slane %v2459, 1
        %v2461 = vadd.f32 %v2459, %v2460
        %v2462 = vadd.f32 %v2393, %v2394
        %v2463 = vrot.slane %v2462, 4
        %v2464 = vadd.f32 %v2462, %v2463
        %v2465 = vrot.slane %v2464, 2
        %v2466 = vadd.f32 %v2464, %v2465
        %v2467 = vrot.slane %v2466, 1
        %v2468 = vadd.f32 %v2466, %v2467
        %v2469 = vadd.f32 %v2395, %v2396
        %v2470 = vrot.slane %v2469, 4
        %v2471 = vadd.f32 %v2469, %v2470
        %v2472 = vrot.slane %v2471, 2
        %v2473 = vadd.f32 %v2471, %v2472
        %v2474 = vrot.slane %v2473, 1
        %v2475 = vadd.f32 %v2473, %v2474
        %v2476 = vadd.f32 %v2397, %v2398
        %v2477 = vrot.slane %v2476, 4
        %v2478 = vadd.f32 %v2476, %v2477
        %v2479 = vrot.slane %v2478, 2
        %v2480 = vadd.f32 %v2478, %v2479
        %v2481 = vrot.slane %v2480, 1
        %v2482 = vadd.f32 %v2480, %v2481
        %v2483 = vadd.f32 %v2399, %v2400
        %v2484 = vrot.slane %v2483, 4
        %v2485 = vadd.f32 %v2483, %v2484
        %v2486 = vrot.slane %v2485, 2
        %v2487 = vadd.f32 %v2485, %v2486
        %v2488 = vrot.slane %v2487, 1
        %v2489 = vadd.f32 %v2487, %v2488
        %v2490 = vadd.f32 %v2401, %v2402
        %v2491 = vrot.slane %v2490, 4
        %v2492 = vadd.f32 %v2490, %v2491
        %v2493 = vrot.slane %v2492, 2
        %v2494 = vadd.f32 %v2492, %v2493
        %v2495 = vrot.slane %v2494, 1
        %v2496 = vadd.f32 %v2494, %v2495
        %v2497 = vadd.f32 %v2403, %v2404
        %v2498 = vrot.slane %v2497, 4
        %v2499 = vadd.f32 %v2497, %v2498
        %v2500 = vrot.slane %v2499, 2
        %v2501 = vadd.f32 %v2499, %v2500
        %v2502 = vrot.slane %v2501, 1
        %v2503 = vadd.f32 %v2501, %v2502
        %v2504 = vadd.f32 %v2405, %v2406
        %v2505 = vrot.slane %v2504, 4
        %v2506 = vadd.f32 %v2504, %v2505
        %v2507 = vrot.slane %v2506, 2
        %v2508 = vadd.f32 %v2506, %v2507
        %v2509 = vrot.slane %v2508, 1
        %v2510 = vadd.f32 %v2508, %v2509
        %v2511 = vadd.f32 %v2407, %v2408
        %v2512 = vrot.slane %v2511, 4
        %v2513 = vadd.f32 %v2511, %v2512
        %v2514 = vrot.slane %v2513, 2
        %v2515 = vadd.f32 %v2513, %v2514
        %v2516 = vrot.slane %v2515, 1
        %v2517 = vadd.f32 %v2515, %v2516
        %v2518 = vadd.f32 %v2409, %v2410
        %v2519 = vrot.slane %v2518, 4
        %v2520 = vadd.f32 %v2518, %v2519
        %v2521 = vrot.slane %v2520, 2
        %v2522 = vadd.f32 %v2520, %v2521
        %v2523 = vrot.slane %v2522, 1
        %v2524 = vadd.f32 %v2522, %v2523
        %v2525 = vadd.f32 %v2411, %v2412
        %v2526 = vrot.slane %v2525, 4
        %v2527 = vadd.f32 %v2525, %v2526
        %v2528 = vrot.slane %v2527, 2
        %v2529 = vadd.f32 %v2527, %v2528
        %v2530 = vrot.slane %v2529, 1
        %v2531 = vadd.f32 %v2529, %v2530
        %v2532 = vadd.f32 %v2413, %v2414
        %v2533 = vrot.slane %v2532, 4
        %v2534 = vadd.f32 %v2532, %v2533
        %v2535 = vrot.slane %v2534, 2
        %v2536 = vadd.f32 %v2534, %v2535
        %v2537 = vrot.slane %v2536, 1
        %v2538 = vadd.f32 %v2536, %v2537
        %v2539 = vadd.f32 %v2415, %v2416
        %v2540 = vrot.slane %v2539, 4
        %v2541 = vadd.f32 %v2539, %v2540
        %v2542 = vrot.slane %v2541, 2
        %v2543 = vadd.f32 %v2541, %v2542
        %v2544 = vrot.slane %v2543, 1
        %v2545 = vadd.f32 %v2543, %v2544
        %v2546 = vadd.f32 %v2417, %v2418
        %v2547 = vrot.slane %v2546, 4
        %v2548 = vadd.f32 %v2546, %v2547
        %v2549 = vrot.slane %v2548, 2
        %v2550 = vadd.f32 %v2548, %v2549
        %v2551 = vrot.slane %v2550, 1
        %v2552 = vadd.f32 %v2550, %v2551
        %v2553 = vadd.f32 %v2419, %v2420
        %v2554 = vrot.slane %v2553, 4
        %v2555 = vadd.f32 %v2553, %v2554
        %v2556 = vrot.slane %v2555, 2
        %v2557 = vadd.f32 %v2555, %v2556
        %v2558 = vrot.slane %v2557, 1
        %v2559 = vadd.f32 %v2557, %v2558
        %v2560 = vadd.f32 %v2421, %v2422
        %v2561 = vrot.slane %v2560, 4
        %v2562 = vadd.f32 %v2560, %v2561
        %v2563 = vrot.slane %v2562, 2
        %v2564 = vadd.f32 %v2562, %v2563
        %v2565 = vrot.slane %v2564, 1
        %v2566 = vadd.f32 %v2564, %v2565
        %v2567 = vadd.f32 %v2423, %v2424
        %v2568 = vrot.slane %v2567, 4
        %v2569 = vadd.f32 %v2567, %v2568
        %v2570 = vrot.slane %v2569, 2
        %v2571 = vadd.f32 %v2569, %v2570
        %v2572 = vrot.slane %v2571, 1
        %v2573 = vadd.f32 %v2571, %v2572
        %v2574 = vadd.f32 %v2425, %v2426
        %v2575 = vrot.slane %v2574, 4
        %v2576 = vadd.f32 %v2574, %v2575
        %v2577 = vrot.slane %v2576, 2
        %v2578 = vadd.f32 %v2576, %v2577
        %v2579 = vrot.slane %v2578, 1
        %v2580 = vadd.f32 %v2578, %v2579
        %v2581 = vadd.f32 %v2427, %v2428
        %v2582 = vrot.slane %v2581, 4
        %v2583 = vadd.f32 %v2581, %v2582
        %v2584 = vrot.slane %v2583, 2
        %v2585 = vadd.f32 %v2583, %v2584
        %v2586 = vrot.slane %v2585, 1
        %v2587 = vadd.f32 %v2585, %v2586
        %v2588 = vadd.f32 %v2429, %v2430
        %v2589 = vrot.slane %v2588, 4
        %v2590 = vadd.f32 %v2588, %v2589
        %v2591 = vrot.slane %v2590, 2
        %v2592 = vadd.f32 %v2590, %v2591
        %v2593 = vrot.slane %v2592, 1
        %v2594 = vadd.f32 %v2592, %v2593
        %v2595 = vadd.f32 %v2431, %v2432
        %v2596 = vrot.slane %v2595, 4
        %v2597 = vadd.f32 %v2595, %v2596
        %v2598 = vrot.slane %v2597, 2
        %v2599 = vadd.f32 %v2597, %v2598
        %v2600 = vrot.slane %v2599, 1
        %v2601 = vadd.f32 %v2599, %v2600
        %v2602 = vadd.f32 %v2433, %v2434
        %v2603 = vrot.slane %v2602, 4
        %v2604 = vadd.f32 %v2602, %v2603
        %v2605 = vrot.slane %v2604, 2
        %v2606 = vadd.f32 %v2604, %v2605
        %v2607 = vrot.slane %v2606, 1
        %v2608 = vadd.f32 %v2606, %v2607
        %v2609 = vadd.f32 %v2435, %v2436
        %v2610 = vrot.slane %v2609, 4
        %v2611 = vadd.f32 %v2609, %v2610
        %v2612 = vrot.slane %v2611, 2
        %v2613 = vadd.f32 %v2611, %v2612
        %v2614 = vrot.slane %v2613, 1
        %v2615 = vadd.f32 %v2613, %v2614
        %v2616 = vadd.f32 %v2437, %v2438
        %v2617 = vrot.slane %v2616, 4
        %v2618 = vadd.f32 %v2616, %v2617
        %v2619 = vrot.slane %v2618, 2
        %v2620 = vadd.f32 %v2618, %v2619
        %v2621 = vrot.slane %v2620, 1
        %v2622 = vadd.f32 %v2620, %v2621
        %v2623 = vadd.f32 %v2439, %v2440
        %v2624 = vrot.slane %v2623, 4
        %v2625 = vadd.f32 %v2623, %v2624
        %v2626 = vrot.slane %v2625, 2
        %v2627 = vadd.f32 %v2625, %v2626
        %v2628 = vrot.slane %v2627, 1
        %v2629 = vadd.f32 %v2627, %v2628
        %v2630 = vadd.f32 %v2441, %v2442
        %v2631 = vrot.slane %v2630, 4
        %v2632 = vadd.f32 %v2630, %v2631
        %v2633 = vrot.slane %v2632, 2
        %v2634 = vadd.f32 %v2632, %v2633
        %v2635 = vrot.slane %v2634, 1
        %v2636 = vadd.f32 %v2634, %v2635
        %v2637 = vadd.f32 %v2443, %v2444
        %v2638 = vrot.slane %v2637, 4
        %v2639 = vadd.f32 %v2637, %v2638
        %v2640 = vrot.slane %v2639, 2
        %v2641 = vadd.f32 %v2639, %v2640
        %v2642 = vrot.slane %v2641, 1
        %v2643 = vadd.f32 %v2641, %v2642
        %v2644 = vadd.f32 %v2445, %v2446
        %v2645 = vrot.slane %v2644, 4
        %v2646 = vadd.f32 %v2644, %v2645
        %v2647 = vrot.slane %v2646, 2
        %v2648 = vadd.f32 %v2646, %v2647
        %v2649 = vrot.slane %v2648, 1
        %v2650 = vadd.f32 %v2648, %v2649
        %v2651 = vadd.f32 %v2447, %v2448
        %v2652 = vrot.slane %v2651, 4
        %v2653 = vadd.f32 %v2651, %v2652
        %v2654 = vrot.slane %v2653, 2
        %v2655 = vadd.f32 %v2653, %v2654
        %v2656 = vrot.slane %v2655, 1
        %v2657 = vadd.f32 %v2655, %v2656
        %v2658 = vadd.f32 %v2449, %v2450
        %v2659 = vrot.slane %v2658, 4
        %v2660 = vadd.f32 %v2658, %v2659
        %v2661 = vrot.slane %v2660, 2
        %v2662 = vadd.f32 %v2660, %v2661
        %v2663 = vrot.slane %v2662, 1
        %v2664 = vadd.f32 %v2662, %v2663
        %v2665 = vadd.f32 %v2451, %v2452
        %v2666 = vrot.slane %v2665, 4
        %v2667 = vadd.f32 %v2665, %v2666
        %v2668 = vrot.slane %v2667, 2
        %v2669 = vadd.f32 %v2667, %v2668
        %v2670 = vrot.slane %v2669, 1
        %v2671 = vadd.f32 %v2669, %v2670
        %v2672 = vadd.f32 %v2453, %v2454
        %v2673 = vrot.slane %v2672, 4
        %v2674 = vadd.f32 %v2672, %v2673
        %v2675 = vrot.slane %v2674, 2
        %v2676 = vadd.f32 %v2674, %v2675
        %v2677 = vrot.slane %v2676, 1
        %v2678 = vadd.f32 %v2676, %v2677
        %v2679 = vld [vmem:[#allocation4 + $0x10] sm:$0xf]
        %v2680 = vld [vmem:[#allocation4 + $0x3c] sm:$0xf]
        %v2681 = vld [vmem:[#allocation4 + $0x68] sm:$0xf]
        %v2682 = vld [vmem:[#allocation4 + $0x94] sm:$0xf]
        %v2683 = vld [vmem:[#allocation4 + $0xc0] sm:$0xf]
        %v2684 = vld [vmem:[#allocation4 + $0xec] sm:$0xf]
        %v2685 = vld [vmem:[#allocation4 + $0x118] sm:$0xf]
        %v2686 = vld [vmem:[#allocation4 + $0x144] sm:$0xf]
        %v2687 = vld [vmem:[#allocation4 + $0x170] sm:$0xf]
        %v2688 = vld [vmem:[#allocation4 + $0x19c] sm:$0xf]
        %v2689 = vld [vmem:[#allocation4 + $0x1c8] sm:$0xf]
        %v2690 = vld [vmem:[#allocation4 + $0x1f4] sm:$0xf]
        %v2691 = vld [vmem:[#allocation4 + $0x220] sm:$0xf]
        %v2692 = vld [vmem:[#allocation4 + $0x24c] sm:$0xf]
        %v2693 = vld [vmem:[#allocation4 + $0x278] sm:$0xf]
        %v2694 = vld [vmem:[#allocation4 + $0x2a4] sm:$0xf]
        %v2695 = vpack.c.bf16 %v2461, %v2461
        %v2696 = vpack.c.bf16 %v2468, %v2468
        %v2697 = vpack.c.bf16 %v2475, %v2475
        %v2698 = vpack.c.bf16 %v2482, %v2482
        %v2699 = vpack.c.bf16 %v2489, %v2489
        %v2700 = vpack.c.bf16 %v2496, %v2496
        %v2701 = vpack.c.bf16 %v2503, %v2503
        %v2702 = vpack.c.bf16 %v2510, %v2510
        %v2703 = vpack.c.bf16 %v2517, %v2517
        %v2704 = vpack.c.bf16 %v2524, %v2524
        %v2705 = vpack.c.bf16 %v2531, %v2531
        %v2706 = vpack.c.bf16 %v2538, %v2538
        %v2707 = vpack.c.bf16 %v2545, %v2545
        %v2708 = vpack.c.bf16 %v2552, %v2552
        %v2709 = vpack.c.bf16 %v2559, %v2559
        %v2710 = vpack.c.bf16 %v2566, %v2566
        %v2711 = vpack.c.bf16 %v2573, %v2573
        %v2712 = vpack.c.bf16 %v2580, %v2580
        %v2713 = vpack.c.bf16 %v2587, %v2587
        %v2714 = vpack.c.bf16 %v2594, %v2594
        %v2715 = vpack.c.bf16 %v2601, %v2601
        %v2716 = vpack.c.bf16 %v2608, %v2608
        %v2717 = vpack.c.bf16 %v2615, %v2615
        %v2718 = vpack.c.bf16 %v2622, %v2622
        %v2719 = vpack.c.bf16 %v2629, %v2629
        %v2720 = vpack.c.bf16 %v2636, %v2636
        %v2721 = vpack.c.bf16 %v2643, %v2643
        %v2722 = vpack.c.bf16 %v2650, %v2650
        %v2723 = vpack.c.bf16 %v2657, %v2657
        %v2724 = vpack.c.bf16 %v2664, %v2664
        %v2725 = vpack.c.bf16 %v2671, %v2671
        %v2726 = vpack.c.bf16 %v2678, %v2678
        %v2727 = vld [vmem:[#allocation6 + $0x4] sm:$0x1]
        %v2729 = vperm.slane %v2727, 0
        %v2763 = vunpack.c.l.b16 %v2695
        %v2764 = vunpack.c.l.b16 %v2696
        %v2765 = vunpack.c.l.b16 %v2697
        %v2766 = vunpack.c.l.b16 %v2698
        %v2767 = vunpack.c.l.b16 %v2699
        %v2768 = vunpack.c.l.b16 %v2700
        %v2769 = vunpack.c.l.b16 %v2701
        %v2770 = vunpack.c.l.b16 %v2702
        %v2771 = vunpack.c.l.b16 %v2703
        %v2772 = vunpack.c.l.b16 %v2704
        %v2773 = vunpack.c.l.b16 %v2705
        %v2774 = vunpack.c.l.b16 %v2706
        %v2775 = vunpack.c.l.b16 %v2707
        %v2776 = vunpack.c.l.b16 %v2708
        %v2777 = vunpack.c.l.b16 %v2709
        %v2778 = vunpack.c.l.b16 %v2710
        %v2779 = vunpack.c.l.b16 %v2711
        %v2780 = vunpack.c.l.b16 %v2712
        %v2781 = vunpack.c.l.b16 %v2713
        %v2782 = vunpack.c.l.b16 %v2714
        %v2783 = vunpack.c.l.b16 %v2715
        %v2784 = vunpack.c.l.b16 %v2716
        %v2785 = vunpack.c.l.b16 %v2717
        %v2786 = vunpack.c.l.b16 %v2718
        %v2787 = vunpack.c.l.b16 %v2719
        %v2788 = vunpack.c.l.b16 %v2720
        %v2789 = vunpack.c.l.b16 %v2721
        %v2790 = vunpack.c.l.b16 %v2722
        %v2791 = vunpack.c.l.b16 %v2723
        %v2792 = vunpack.c.l.b16 %v2724
        %v2793 = vunpack.c.l.b16 %v2725
        %v2794 = vunpack.c.l.b16 %v2726
        %vm2795 = vcmask 1041409
        %v2796 = vsel %vm2795, %v2764, %v2763
        %vm2797 = vcmask 1042434
        %v2798 = vsel %vm2797, %v2765, %v2796
        %vm2799 = vcmask 1043459
        %v2800 = vsel %vm2799, %v2766, %v2798
        %vm2801 = vcmask 1044484
        %v2802 = vsel %vm2801, %v2767, %v2800
        %vm2803 = vcmask 1045509
        %v2804 = vsel %vm2803, %v2768, %v2802
        %vm2805 = vcmask 1046534
        %v2806 = vsel %vm2805, %v2769, %v2804
        %vm2807 = vcmask 1047559
        %v2808 = vsel %vm2807, %v2770, %v2806
        %v2809 = vsel %vm2795, %v2772, %v2771
        %v2810 = vsel %vm2797, %v2773, %v2809
        %v2811 = vsel %vm2799, %v2774, %v2810
        %v2812 = vsel %vm2801, %v2775, %v2811
        %v2813 = vsel %vm2803, %v2776, %v2812
        %v2814 = vsel %vm2805, %v2777, %v2813
        %v2815 = vsel %vm2807, %v2778, %v2814
        %v2816 = vsel %vm2795, %v2780, %v2779
        %v2817 = vsel %vm2797, %v2781, %v2816
        %v2818 = vsel %vm2799, %v2782, %v2817
        %v2819 = vsel %vm2801, %v2783, %v2818
        %v2820 = vsel %vm2803, %v2784, %v2819
        %v2821 = vsel %vm2805, %v2785, %v2820
        %v2822 = vsel %vm2807, %v2786, %v2821
        %v2823 = vsel %vm2795, %v2788, %v2787
        %v2824 = vsel %vm2797, %v2789, %v2823
        %v2825 = vsel %vm2799, %v2790, %v2824
        %v2826 = vsel %vm2801, %v2791, %v2825
        %v2827 = vsel %vm2803, %v2792, %v2826
        %v2828 = vsel %vm2805, %v2793, %v2827
        %v2829 = vsel %vm2807, %v2794, %v2828
        %v2830 = vpack.c.b16 %v2815, %v2808
        %v2831 = vpack.c.b16 %v2829, %v2822
        %v2850 = vunpack.c.l.b16 %v2679
        %v2851 = vunpack.c.l.b16 %v2680
        %v2852 = vunpack.c.l.b16 %v2681
        %v2853 = vunpack.c.l.b16 %v2682
        %v2854 = vunpack.c.l.b16 %v2683
        %v2855 = vunpack.c.l.b16 %v2684
        %v2856 = vunpack.c.l.b16 %v2685
        %v2857 = vunpack.c.l.b16 %v2686
        %v2858 = vunpack.c.l.b16 %v2687
        %v2859 = vunpack.c.l.b16 %v2688
        %v2860 = vunpack.c.l.b16 %v2689
        %v2861 = vunpack.c.l.b16 %v2690
        %v2862 = vunpack.c.l.b16 %v2691
        %v2863 = vunpack.c.l.b16 %v2692
        %v2864 = vunpack.c.l.b16 %v2693
        %v2865 = vunpack.c.l.b16 %v2694
        %v2866 = vpack.c.b16 %v2851, %v2850
        %v2867 = vpack.c.b16 %v2853, %v2852
        %v2868 = vpack.c.b16 %v2855, %v2854
        %v2869 = vpack.c.b16 %v2857, %v2856
        %v2870 = vpack.c.b16 %v2859, %v2858
        %v2871 = vpack.c.b16 %v2861, %v2860
        %v2872 = vpack.c.b16 %v2863, %v2862
        %v2873 = vpack.c.b16 %v2865, %v2864
        %2882 = vmatpush.bf16.msra.mxu0 %v2873
        %2883 = vmatpush.bf16.msra.mxu0 %v2872
        %2884 = vmatpush.bf16.msra.mxu0 %v2871
        %2885 = vmatpush.bf16.msra.mxu0 %v2870
        %2886 = vmatpush.bf16.msra.mxu0 %v2869
        %2887 = vmatpush.bf16.msra.mxu0 %v2868
        %2888 = vmatpush.bf16.msra.mxu0 %v2867
        %2889 = vmatpush.bf16.msra.mxu0 %v2866
        %2890 = vmatmul.bf16.gmra.mxu0 %v2830
        %v2891 = vpop.f32.mrf.mxu0
        %v2892 = vadd.f32 %v2729, %v2891
        %v2893 = vpop.f32.mrf.mxu0
        %v2894 = vadd.f32 %v2729, %v2893
        %2895 = vmatmul.bf16.gmra.mxu0 %v2831
        %v2896 = vpop.f32.mrf.mxu0
        %v2897 = vadd.f32 %v2729, %v2896
        %v2898 = vpop.f32.mrf.mxu0
        %v2899 = vadd.f32 %v2729, %v2898
        %2900 = vdwg.mxu0
        %v2901 = vadd.f32 %v302, %v2892
        %v2902 = vadd.f32 %v304, %v2894
        %v2903 = vadd.f32 %v307, %v2897
        %v2904 = vadd.f32 %v309, %v2899
        %v2905 = vld [vmem:[#allocation6 + $0x5] sm:$0x1]
        %v2906 = vld [vmem:[#allocation6 + $0x6] sm:$0x1]
        %2907 = vadd.xlane.f32.xlu0 %v2901
        %v2908 = vpop.xlane.xlu0 %2907
        %2909 = vadd.xlane.f32.xlu0 %v2902
        %v2910 = vpop.xlane.xlu0 %2909
        %2911 = vadd.xlane.f32.xlu0 %v2903
        %v2912 = vpop.xlane.xlu0 %2911
        %2913 = vadd.xlane.f32.xlu0 %v2904
        %v2914 = vpop.xlane.xlu0 %2913
        %v2915 = vrcp.pop 128.0
        %v2916 = vmul.f32 128.0, %v2915
        %v2917 = vsub.f32 1.0, %v2916
        %v2918 = vmul.f32 %v2915, %v2917
        %v2919 = vadd.f32 %v2915, %v2918
        %vm2920 = vweird.f32 %v2915
        %v2921 = vsel %vm2920, %v2915, %v2919
        %v2922 = vmul.f32 %v2908, %v2921
        %v2923 = vmul.f32 %v2910, %v2921
        %v2924 = vmul.f32 %v2912, %v2921
        %v2925 = vmul.f32 %v2914, %v2921
        %v2926 = vsub.f32 %v2901, %v2922
        %v2927 = vsub.f32 %v2902, %v2923
        %v2928 = vsub.f32 %v2903, %v2924
        %v2929 = vsub.f32 %v2904, %v2925
        %v2930 = vmul.f32 %v2926, %v2926
        %v2931 = vmul.f32 %v2927, %v2927
        %v2932 = vmul.f32 %v2928, %v2928
        %v2933 = vmul.f32 %v2929, %v2929
        %2934 = vadd.xlane.f32.xlu0 %v2930
        %v2935 = vpop.xlane.xlu0 %2934
        %2936 = vadd.xlane.f32.xlu0 %v2931
        %v2937 = vpop.xlane.xlu0 %2936
        %2938 = vadd.xlane.f32.xlu0 %v2932
        %v2939 = vpop.xlane.xlu0 %2938
        %2940 = vadd.xlane.f32.xlu0 %v2933
        %v2941 = vpop.xlane.xlu0 %2940
        %v2942 = vmul.f32 %v2935, %v2921
        %v2943 = vmul.f32 %v2937, %v2921
        %v2944 = vmul.f32 %v2939, %v2921
        %v2945 = vmul.f32 %v2941, %v2921
        %v2946 = vadd.f32 %v2942, 1e-05
        %v2947 = vadd.f32 %v2943, 1e-05
        %v2948 = vadd.f32 %v2944, 1e-05
        %v2949 = vadd.f32 %v2945, 1e-05
        %v2950 = vrsqrt.pop %v2946
        %v2951 = vmul.f32 %v2950, %v2946
        %v2952 = vmul.f32 %v2951, %v2950
        %v2953 = vmul.f32 0.5, %v2952
        %v2954 = vsub.f32 1.5, %v2953
        %v2955 = vmul.f32 %v2950, %v2954
        %vm2956 = vweird.f32 %v2946
        %vm2957 = vweird.f32 %v2950
        %vm2958 = vmor %vm2956, %vm2957
        %v2959 = vsel %vm2958, %v2950, %v2955
        %v2960 = vrsqrt.pop %v2947
        %v2961 = vmul.f32 %v2960, %v2947
        %v2962 = vmul.f32 %v2961, %v2960
        %v2963 = vmul.f32 0.5, %v2962
        %v2964 = vsub.f32 1.5, %v2963
        %v2965 = vmul.f32 %v2960, %v2964
        %vm2966 = vweird.f32 %v2947
        %vm2967 = vweird.f32 %v2960
        %vm2968 = vmor %vm2966, %vm2967
        %v2969 = vsel %vm2968, %v2960, %v2965
        %v2970 = vrsqrt.pop %v2948
        %v2971 = vmul.f32 %v2970, %v2948
        %v2972 = vmul.f32 %v2971, %v2970
        %v2973 = vmul.f32 0.5, %v2972
        %v2974 = vsub.f32 1.5, %v2973
        %v2975 = vmul.f32 %v2970, %v2974
        %vm2976 = vweird.f32 %v2948
        %vm2977 = vweird.f32 %v2970
        %vm2978 = vmor %vm2976, %vm2977
        %v2979 = vsel %vm2978, %v2970, %v2975
        %v2980 = vrsqrt.pop %v2949
        %v2981 = vmul.f32 %v2980, %v2949
        %v2982 = vmul.f32 %v2981, %v2980
        %v2983 = vmul.f32 0.5, %v2982
        %v2984 = vsub.f32 1.5, %v2983
        %v2985 = vmul.f32 %v2980, %v2984
        %vm2986 = vweird.f32 %v2949
        %vm2987 = vweird.f32 %v2980
        %vm2988 = vmor %vm2986, %vm2987
        %v2989 = vsel %vm2988, %v2980, %v2985
        %v2990 = vmul.f32 %v2926, %v2959
        %v2991 = vmul.f32 %v2927, %v2969
        %v2992 = vmul.f32 %v2928, %v2979
        %v2993 = vmul.f32 %v2929, %v2989
        %v2995 = vperm.slane %v2905, 0
        %v2997 = vmul.f32 %v2990, %v2995
        %v2998 = vmul.f32 %v2991, %v2995
        %v2999 = vmul.f32 %v2992, %v2995
        %v3000 = vmul.f32 %v2993, %v2995
        %v3002 = vperm.slane %v2906, 0
        %v3004 = vadd.f32 %v2997, %v3002
        %v3005 = vadd.f32 %v2998, %v3002
        %v3006 = vadd.f32 %v2999, %v3002
        %v3007 = vadd.f32 %v3000, %v3002
        %v3008 = vld [vmem:[#allocation4 + $0x14] sm:$0xf]
        %v3009 = vld [vmem:[#allocation4 + $0x40] sm:$0xf]
        %v3010 = vld [vmem:[#allocation4 + $0x6c] sm:$0xf]
        %v3011 = vld [vmem:[#allocation4 + $0x98] sm:$0xf]
        %v3012 = vld [vmem:[#allocation4 + $0xc4] sm:$0xf]
        %v3013 = vld [vmem:[#allocation4 + $0xf0] sm:$0xf]
        %v3014 = vld [vmem:[#allocation4 + $0x11c] sm:$0xf]
        %v3015 = vld [vmem:[#allocation4 + $0x148] sm:$0xf]
        %v3016 = vld [vmem:[#allocation4 + $0x174] sm:$0xf]
        %v3017 = vld [vmem:[#allocation4 + $0x1a0] sm:$0xf]
        %v3018 = vld [vmem:[#allocation4 + $0x1cc] sm:$0xf]
        %v3019 = vld [vmem:[#allocation4 + $0x1f8] sm:$0xf]
        %v3020 = vld [vmem:[#allocation4 + $0x224] sm:$0xf]
        %v3021 = vld [vmem:[#allocation4 + $0x250] sm:$0xf]
        %v3022 = vld [vmem:[#allocation4 + $0x27c] sm:$0xf]
        %v3023 = vld [vmem:[#allocation4 + $0x2a8] sm:$0xf]
        %v3024 = vpack.c.bf16 %v3005, %v3004
        %v3025 = vpack.c.bf16 %v3007, %v3006
        %v3026 = vld [vmem:[#allocation6 + $0x7] sm:$0x1]
        %v3028 = vperm.slane %v3026, 0
        %v3046 = vunpack.c.l.b16 %v3008
        %v3047 = vunpack.c.l.b16 %v3009
        %v3048 = vunpack.c.l.b16 %v3010
        %v3049 = vunpack.c.l.b16 %v3011
        %v3050 = vunpack.c.l.b16 %v3012
        %v3051 = vunpack.c.l.b16 %v3013
        %v3052 = vunpack.c.l.b16 %v3014
        %v3053 = vunpack.c.l.b16 %v3015
        %v3054 = vunpack.c.l.b16 %v3016
        %v3055 = vunpack.c.l.b16 %v3017
        %v3056 = vunpack.c.l.b16 %v3018
        %v3057 = vunpack.c.l.b16 %v3019
        %v3058 = vunpack.c.l.b16 %v3020
        %v3059 = vunpack.c.l.b16 %v3021
        %v3060 = vunpack.c.l.b16 %v3022
        %v3061 = vunpack.c.l.b16 %v3023
        %v3062 = vpack.c.b16 %v3047, %v3046
        %v3063 = vpack.c.b16 %v3049, %v3048
        %v3064 = vpack.c.b16 %v3051, %v3050
        %v3065 = vpack.c.b16 %v3053, %v3052
        %v3066 = vpack.c.b16 %v3055, %v3054
        %v3067 = vpack.c.b16 %v3057, %v3056
        %v3068 = vpack.c.b16 %v3059, %v3058
        %v3069 = vpack.c.b16 %v3061, %v3060
        %3078 = vmatpush.bf16.msra.mxu0 %v3069
        %3079 = vmatpush.bf16.msra.mxu0 %v3068
        %3080 = vmatpush.bf16.msra.mxu0 %v3067
        %3081 = vmatpush.bf16.msra.mxu0 %v3066
        %3082 = vmatpush.bf16.msra.mxu0 %v3065
        %3083 = vmatpush.bf16.msra.mxu0 %v3064
        %3084 = vmatpush.bf16.msra.mxu0 %v3063
        %3085 = vmatpush.bf16.msra.mxu0 %v3062
        %3086 = vmatmul.bf16.gmra.mxu0 %v3024
        %v3087 = vpop.f32.mrf.mxu0
        %v3088 = vadd.f32 %v3028, %v3087
        %v3089 = vpop.f32.mrf.mxu0
        %v3090 = vadd.f32 %v3028, %v3089
        %3091 = vmatmul.bf16.gmra.mxu0 %v3025
        %v3092 = vpop.f32.mrf.mxu0
        %v3093 = vadd.f32 %v3028, %v3092
        %v3094 = vpop.f32.mrf.mxu0
        %v3095 = vadd.f32 %v3028, %v3094
        %3096 = vdwg.mxu0
        %v3097 = vmax.f32 %v3088, 0.0
        %v3098 = vmax.f32 %v3090, 0.0
        %v3099 = vmax.f32 %v3093, 0.0
        %v3100 = vmax.f32 %v3095, 0.0
        %v3101 = vld [vmem:[#allocation4 + $0x18] sm:$0xf]
        %v3102 = vld [vmem:[#allocation4 + $0x44] sm:$0xf]
        %v3103 = vld [vmem:[#allocation4 + $0x70] sm:$0xf]
        %v3104 = vld [vmem:[#allocation4 + $0x9c] sm:$0xf]
        %v3105 = vld [vmem:[#allocation4 + $0xc8] sm:$0xf]
        %v3106 = vld [vmem:[#allocation4 + $0xf4] sm:$0xf]
        %v3107 = vld [vmem:[#allocation4 + $0x120] sm:$0xf]
        %v3108 = vld [vmem:[#allocation4 + $0x14c] sm:$0xf]
        %v3109 = vld [vmem:[#allocation4 + $0x178] sm:$0xf]
        %v3110 = vld [vmem:[#allocation4 + $0x1a4] sm:$0xf]
        %v3111 = vld [vmem:[#allocation4 + $0x1d0] sm:$0xf]
        %v3112 = vld [vmem:[#allocation4 + $0x1fc] sm:$0xf]
        %v3113 = vld [vmem:[#allocation4 + $0x228] sm:$0xf]
        %v3114 = vld [vmem:[#allocation4 + $0x254] sm:$0xf]
        %v3115 = vld [vmem:[#allocation4 + $0x280] sm:$0xf]
        %v3116 = vld [vmem:[#allocation4 + $0x2ac] sm:$0xf]
        %v3117 = vpack.c.bf16 %v3098, %v3097
        %v3118 = vpack.c.bf16 %v3100, %v3099
        %v3119 = vld [vmem:[#allocation6 + $0x8] sm:$0x1]
        %v3121 = vperm.slane %v3119, 0
        %v3139 = vunpack.c.l.b16 %v3101
        %v3140 = vunpack.c.l.b16 %v3102
        %v3141 = vunpack.c.l.b16 %v3103
        %v3142 = vunpack.c.l.b16 %v3104
        %v3143 = vunpack.c.l.b16 %v3105
        %v3144 = vunpack.c.l.b16 %v3106
        %v3145 = vunpack.c.l.b16 %v3107
        %v3146 = vunpack.c.l.b16 %v3108
        %v3147 = vunpack.c.l.b16 %v3109
        %v3148 = vunpack.c.l.b16 %v3110
        %v3149 = vunpack.c.l.b16 %v3111
        %v3150 = vunpack.c.l.b16 %v3112
        %v3151 = vunpack.c.l.b16 %v3113
        %v3152 = vunpack.c.l.b16 %v3114
        %v3153 = vunpack.c.l.b16 %v3115
        %v3154 = vunpack.c.l.b16 %v3116
        %v3155 = vpack.c.b16 %v3140, %v3139
        %v3156 = vpack.c.b16 %v3142, %v3141
        %v3157 = vpack.c.b16 %v3144, %v3143
        %v3158 = vpack.c.b16 %v3146, %v3145
        %v3159 = vpack.c.b16 %v3148, %v3147
        %v3160 = vpack.c.b16 %v3150, %v3149
        %v3161 = vpack.c.b16 %v3152, %v3151
        %v3162 = vpack.c.b16 %v3154, %v3153
        %3171 = vmatpush.bf16.msra.mxu0 %v3162
        %3172 = vmatpush.bf16.msra.mxu0 %v3161
        %3173 = vmatpush.bf16.msra.mxu0 %v3160
        %3174 = vmatpush.bf16.msra.mxu0 %v3159
        %3175 = vmatpush.bf16.msra.mxu0 %v3158
        %3176 = vmatpush.bf16.msra.mxu0 %v3157
        %3177 = vmatpush.bf16.msra.mxu0 %v3156
        %3178 = vmatpush.bf16.msra.mxu0 %v3155
        %3179 = vmatmul.bf16.gmra.mxu0 %v3117
        %v3180 = vpop.f32.mrf.mxu0
        %v3181 = vadd.f32 %v3121, %v3180
        %v3182 = vpop.f32.mrf.mxu0
        %v3183 = vadd.f32 %v3121, %v3182
        %3184 = vmatmul.bf16.gmra.mxu0 %v3118
        %v3185 = vpop.f32.mrf.mxu0
        %v3186 = vadd.f32 %v3121, %v3185
        %v3187 = vpop.f32.mrf.mxu0
        %v3188 = vadd.f32 %v3121, %v3187
        %3189 = vdwg.mxu0
        %v3190 = vadd.f32 %v3004, %v3181
        %v3191 = vadd.f32 %v3005, %v3183
        %v3192 = vadd.f32 %v3006, %v3186
        %v3193 = vadd.f32 %v3007, %v3188
        %v3194 = vld [vmem:[#allocation6 + $0x9] sm:$0x1]
        %v3195 = vld [vmem:[#allocation6 + $0xa] sm:$0x1]
        %3196 = vadd.xlane.f32.xlu0 %v3190
        %v3197 = vpop.xlane.xlu0 %3196
        %3198 = vadd.xlane.f32.xlu0 %v3191
        %v3199 = vpop.xlane.xlu0 %3198
        %3200 = vadd.xlane.f32.xlu0 %v3192
        %v3201 = vpop.xlane.xlu0 %3200
        %3202 = vadd.xlane.f32.xlu0 %v3193
        %v3203 = vpop.xlane.xlu0 %3202
        %v3204 = vmul.f32 %v3197, %v2921
        %v3205 = vmul.f32 %v3199, %v2921
        %v3206 = vmul.f32 %v3201, %v2921
        %v3207 = vmul.f32 %v3203, %v2921
        %v3208 = vsub.f32 %v3190, %v3204
        %v3209 = vsub.f32 %v3191, %v3205
        %v3210 = vsub.f32 %v3192, %v3206
        %v3211 = vsub.f32 %v3193, %v3207
        %v3212 = vmul.f32 %v3208, %v3208
        %v3213 = vmul.f32 %v3209, %v3209
        %v3214 = vmul.f32 %v3210, %v3210
        %v3215 = vmul.f32 %v3211, %v3211
        %3216 = vadd.xlane.f32.xlu0 %v3212
        %v3217 = vpop.xlane.xlu0 %3216
        %3218 = vadd.xlane.f32.xlu0 %v3213
        %v3219 = vpop.xlane.xlu0 %3218
        %3220 = vadd.xlane.f32.xlu0 %v3214
        %v3221 = vpop.xlane.xlu0 %3220
        %3222 = vadd.xlane.f32.xlu0 %v3215
        %v3223 = vpop.xlane.xlu0 %3222
        %v3224 = vmul.f32 %v3217, %v2921
        %v3225 = vmul.f32 %v3219, %v2921
        %v3226 = vmul.f32 %v3221, %v2921
        %v3227 = vmul.f32 %v3223, %v2921
        %v3228 = vadd.f32 %v3224, 1e-05
        %v3229 = vadd.f32 %v3225, 1e-05
        %v3230 = vadd.f32 %v3226, 1e-05
        %v3231 = vadd.f32 %v3227, 1e-05
        %v3232 = vrsqrt.pop %v3228
        %v3233 = vmul.f32 %v3232, %v3228
        %v3234 = vmul.f32 %v3233, %v3232
        %v3235 = vmul.f32 0.5, %v3234
        %v3236 = vsub.f32 1.5, %v3235
        %v3237 = vmul.f32 %v3232, %v3236
        %vm3238 = vweird.f32 %v3228
        %vm3239 = vweird.f32 %v3232
        %vm3240 = vmor %vm3238, %vm3239
        %v3241 = vsel %vm3240, %v3232, %v3237
        %v3242 = vrsqrt.pop %v3229
        %v3243 = vmul.f32 %v3242, %v3229
        %v3244 = vmul.f32 %v3243, %v3242
        %v3245 = vmul.f32 0.5, %v3244
        %v3246 = vsub.f32 1.5, %v3245
        %v3247 = vmul.f32 %v3242, %v3246
        %vm3248 = vweird.f32 %v3229
        %vm3249 = vweird.f32 %v3242
        %vm3250 = vmor %vm3248, %vm3249
        %v3251 = vsel %vm3250, %v3242, %v3247
        %v3252 = vrsqrt.pop %v3230
        %v3253 = vmul.f32 %v3252, %v3230
        %v3254 = vmul.f32 %v3253, %v3252
        %v3255 = vmul.f32 0.5, %v3254
        %v3256 = vsub.f32 1.5, %v3255
        %v3257 = vmul.f32 %v3252, %v3256
        %vm3258 = vweird.f32 %v3230
        %vm3259 = vweird.f32 %v3252
        %vm3260 = vmor %vm3258, %vm3259
        %v3261 = vsel %vm3260, %v3252, %v3257
        %v3262 = vrsqrt.pop %v3231
        %v3263 = vmul.f32 %v3262, %v3231
        %v3264 = vmul.f32 %v3263, %v3262
        %v3265 = vmul.f32 0.5, %v3264
        %v3266 = vsub.f32 1.5, %v3265
        %v3267 = vmul.f32 %v3262, %v3266
        %vm3268 = vweird.f32 %v3231
        %vm3269 = vweird.f32 %v3262
        %vm3270 = vmor %vm3268, %vm3269
        %v3271 = vsel %vm3270, %v3262, %v3267
        %v3272 = vmul.f32 %v3208, %v3241
        %v3273 = vmul.f32 %v3209, %v3251
        %v3274 = vmul.f32 %v3210, %v3261
        %v3275 = vmul.f32 %v3211, %v3271
        %v3277 = vperm.slane %v3194, 0
        %v3279 = vmul.f32 %v3272, %v3277
        %v3280 = vmul.f32 %v3273, %v3277
        %v3281 = vmul.f32 %v3274, %v3277
        %v3282 = vmul.f32 %v3275, %v3277
        %v3284 = vperm.slane %v3195, 0
        %v3286 = vadd.f32 %v3279, %v3284
        %v3287 = vadd.f32 %v3280, %v3284
        %v3288 = vadd.f32 %v3281, %v3284
        %v3289 = vadd.f32 %v3282, %v3284
        %v3290 = vld [vmem:[#allocation4 + $0x1c] sm:$0xf]
        %v3291 = vld [vmem:[#allocation4 + $0x48] sm:$0xf]
        %v3292 = vld [vmem:[#allocation4 + $0x74] sm:$0xf]
        %v3293 = vld [vmem:[#allocation4 + $0xa0] sm:$0xf]
        %v3294 = vld [vmem:[#allocation4 + $0xcc] sm:$0xf]
        %v3295 = vld [vmem:[#allocation4 + $0xf8] sm:$0xf]
        %v3296 = vld [vmem:[#allocation4 + $0x124] sm:$0xf]
        %v3297 = vld [vmem:[#allocation4 + $0x150] sm:$0xf]
        %v3298 = vld [vmem:[#allocation4 + $0x17c] sm:$0xf]
        %v3299 = vld [vmem:[#allocation4 + $0x1a8] sm:$0xf]
        %v3300 = vld [vmem:[#allocation4 + $0x1d4] sm:$0xf]
        %v3301 = vld [vmem:[#allocation4 + $0x200] sm:$0xf]
        %v3302 = vld [vmem:[#allocation4 + $0x22c] sm:$0xf]
        %v3303 = vld [vmem:[#allocation4 + $0x258] sm:$0xf]
        %v3304 = vld [vmem:[#allocation4 + $0x284] sm:$0xf]
        %v3305 = vld [vmem:[#allocation4 + $0x2b0] sm:$0xf]
        %v3306 = vpack.c.bf16 %v3287, %v3286
        %v3307 = vpack.c.bf16 %v3289, %v3288
        %v3308 = vld [vmem:[#allocation6 + $0xb] sm:$0x1]
        %v3310 = vperm.slane %v3308, 0
        %v3328 = vunpack.c.l.b16 %v3290
        %v3329 = vunpack.c.l.b16 %v3291
        %v3330 = vunpack.c.l.b16 %v3292
        %v3331 = vunpack.c.l.b16 %v3293
        %v3332 = vunpack.c.l.b16 %v3294
        %v3333 = vunpack.c.l.b16 %v3295
        %v3334 = vunpack.c.l.b16 %v3296
        %v3335 = vunpack.c.l.b16 %v3297
        %v3336 = vunpack.c.l.b16 %v3298
        %v3337 = vunpack.c.l.b16 %v3299
        %v3338 = vunpack.c.l.b16 %v3300
        %v3339 = vunpack.c.l.b16 %v3301
        %v3340 = vunpack.c.l.b16 %v3302
        %v3341 = vunpack.c.l.b16 %v3303
        %v3342 = vunpack.c.l.b16 %v3304
        %v3343 = vunpack.c.l.b16 %v3305
        %v3344 = vpack.c.b16 %v3329, %v3328
        %v3345 = vpack.c.b16 %v3331, %v3330
        %v3346 = vpack.c.b16 %v3333, %v3332
        %v3347 = vpack.c.b16 %v3335, %v3334
        %v3348 = vpack.c.b16 %v3337, %v3336
        %v3349 = vpack.c.b16 %v3339, %v3338
        %v3350 = vpack.c.b16 %v3341, %v3340
        %v3351 = vpack.c.b16 %v3343, %v3342
        %3360 = vmatpush.bf16.msra.mxu0 %v3351
        %3361 = vmatpush.bf16.msra.mxu0 %v3350
        %3362 = vmatpush.bf16.msra.mxu0 %v3349
        %3363 = vmatpush.bf16.msra.mxu0 %v3348
        %3364 = vmatpush.bf16.msra.mxu0 %v3347
        %3365 = vmatpush.bf16.msra.mxu0 %v3346
        %3366 = vmatpush.bf16.msra.mxu0 %v3345
        %3367 = vmatpush.bf16.msra.mxu0 %v3344
        %3368 = vmatmul.bf16.gmra.mxu0 %v3306
        %v3369 = vpop.f32.mrf.mxu0
        %v3370 = vadd.f32 %v3310, %v3369
        %v3371 = vpop.f32.mrf.mxu0
        %v3372 = vadd.f32 %v3310, %v3371
        %3373 = vmatmul.bf16.gmra.mxu0 %v3307
        %v3374 = vpop.f32.mrf.mxu0
        %v3375 = vadd.f32 %v3310, %v3374
        %v3376 = vpop.f32.mrf.mxu0
        %v3377 = vadd.f32 %v3310, %v3376
        %3378 = vdwg.mxu0
        %v3379 = vmax.f32 %v3370, 0.0
        %v3380 = vmax.f32 %v3372, 0.0
        %v3381 = vmax.f32 %v3375, 0.0
        %v3382 = vmax.f32 %v3377, 0.0
        %v3383 = vld [vmem:[#allocation4 + $0x20] sm:$0xf]
        %v3384 = vld [vmem:[#allocation4 + $0x4c] sm:$0xf]
        %v3385 = vld [vmem:[#allocation4 + $0x78] sm:$0xf]
        %v3386 = vld [vmem:[#allocation4 + $0xa4] sm:$0xf]
        %v3387 = vld [vmem:[#allocation4 + $0xd0] sm:$0xf]
        %v3388 = vld [vmem:[#allocation4 + $0xfc] sm:$0xf]
        %v3389 = vld [vmem:[#allocation4 + $0x128] sm:$0xf]
        %v3390 = vld [vmem:[#allocation4 + $0x154] sm:$0xf]
        %v3391 = vld [vmem:[#allocation4 + $0x180] sm:$0xf]
        %v3392 = vld [vmem:[#allocation4 + $0x1ac] sm:$0xf]
        %v3393 = vld [vmem:[#allocation4 + $0x1d8] sm:$0xf]
        %v3394 = vld [vmem:[#allocation4 + $0x204] sm:$0xf]
        %v3395 = vld [vmem:[#allocation4 + $0x230] sm:$0xf]
        %v3396 = vld [vmem:[#allocation4 + $0x25c] sm:$0xf]
        %v3397 = vld [vmem:[#allocation4 + $0x288] sm:$0xf]
        %v3398 = vld [vmem:[#allocation4 + $0x2b4] sm:$0xf]
        %v3399 = vpack.c.bf16 %v3380, %v3379
        %v3400 = vpack.c.bf16 %v3382, %v3381
        %v3401 = vld [vmem:[#allocation6 + $0xc] sm:$0x1]
        %v3403 = vperm.slane %v3401, 0
        %v3421 = vunpack.c.l.b16 %v3383
        %v3422 = vunpack.c.l.b16 %v3384
        %v3423 = vunpack.c.l.b16 %v3385
        %v3424 = vunpack.c.l.b16 %v3386
        %v3425 = vunpack.c.l.b16 %v3387
        %v3426 = vunpack.c.l.b16 %v3388
        %v3427 = vunpack.c.l.b16 %v3389
        %v3428 = vunpack.c.l.b16 %v3390
        %v3429 = vunpack.c.l.b16 %v3391
        %v3430 = vunpack.c.l.b16 %v3392
        %v3431 = vunpack.c.l.b16 %v3393
        %v3432 = vunpack.c.l.b16 %v3394
        %v3433 = vunpack.c.l.b16 %v3395
        %v3434 = vunpack.c.l.b16 %v3396
        %v3435 = vunpack.c.l.b16 %v3397
        %v3436 = vunpack.c.l.b16 %v3398
        %v3437 = vpack.c.b16 %v3422, %v3421
        %v3438 = vpack.c.b16 %v3424, %v3423
        %v3439 = vpack.c.b16 %v3426, %v3425
        %v3440 = vpack.c.b16 %v3428, %v3427
        %v3441 = vpack.c.b16 %v3430, %v3429
        %v3442 = vpack.c.b16 %v3432, %v3431
        %v3443 = vpack.c.b16 %v3434, %v3433
        %v3444 = vpack.c.b16 %v3436, %v3435
        %3453 = vmatpush.bf16.msra.mxu0 %v3444
        %3454 = vmatpush.bf16.msra.mxu0 %v3443
        %3455 = vmatpush.bf16.msra.mxu0 %v3442
        %3456 = vmatpush.bf16.msra.mxu0 %v3441
        %3457 = vmatpush.bf16.msra.mxu0 %v3440
        %3458 = vmatpush.bf16.msra.mxu0 %v3439
        %3459 = vmatpush.bf16.msra.mxu0 %v3438
        %3460 = vmatpush.bf16.msra.mxu0 %v3437
        %3461 = vmatmul.bf16.gmra.mxu0 %v3399
        %v3462 = vpop.f32.mrf.mxu0
        %v3463 = vadd.f32 %v3403, %v3462
        %v3464 = vpop.f32.mrf.mxu0
        %v3465 = vadd.f32 %v3403, %v3464
        %3466 = vmatmul.bf16.gmra.mxu0 %v3400
        %v3467 = vpop.f32.mrf.mxu0
        %v3468 = vadd.f32 %v3403, %v3467
        %v3469 = vpop.f32.mrf.mxu0
        %v3470 = vadd.f32 %v3403, %v3469
        %3471 = vdwg.mxu0
        %3472 = vst [vmem:[%s224] sm:$0xff] %v3463
        %3473 = vst [vmem:[%s224 + $0x8] sm:$0xff] %v3465
        %3474 = vst [vmem:[%s224 + $0x10] sm:$0xff] %v3468
        %3475 = vst [vmem:[%s224 + $0x18] sm:$0xff] %v3470
        %s3476 = smul.u32 4, %s18
        %p3477 = scmp.lt.s32.totalorder %s3476, 7
        %s3478 = scalar_select %p3477, %s3476, 7
        %s3479 = smul.addr %s3478, 8
        %s3480 = scalar_lea.vmem %s3, %s3479
        // Predicated region
        $region45: #{encoder_forward.1} parent=31 // pred_check
          %p3481 = pneg %p104
        $region46: #{encoder_forward.1} parent=31 // pred_check_branch
          %3483 = sbr.rel (%p3481) target = $region48
        $region47: #{encoder_forward.1} parent=31 // pred_region
          %s3484 = smul.u32 4, %s18
        $region48: #{encoder_forward.1} parent=31 // pred_fallthru
          _
      $region32: #{encoder_forward.1} parent=5 // pred_fallthru
        _
      %p3485 = scmp.le.s32.totalorder 2, %s13
      // Predicated region
      $region49: #{encoder_forward.1} parent=5 // pred_check
        %p3486 = pneg %p3485
      $region50: #{encoder_forward.1} parent=5 // pred_check_branch
        %3488 = sbr.rel (%p3486) target = $region52
      $region51: #{encoder_forward.1} parent=5 // pred_region
        %s3489 = ssub.s32 %s13, 2
        // Predicated region
        $region53: #{encoder_forward.1} parent=51 // pred_check
          %p3490 = pneg %p110
        $region54: #{encoder_forward.1} parent=51 // pred_check_branch
          %3492 = sbr.rel (%p3490) target = $region56
        $region55: #{encoder_forward.1} parent=51 // pred_region
          %s3493 = smul.u32 4, %s19
          %p3494 = scmp.lt.s32.totalorder %s3493, 7
          %s3495 = scalar_select %p3494, %s3493, 7
          %s3496 = smul.addr %s3495, 8
          %s3497 = scalar_lea.vmem %s3, %s3496
        $region56: #{encoder_forward.1} parent=51 // pred_fallthru
          _
      $region52: #{encoder_forward.1} parent=5 // pred_fallthru
        _
    $region6: #{encoder_forward.1} parent=1 // loop_footer
      %s17 = sadd.s32 1, %s13
    $region7: #{encoder_forward.1} parent=1 // loop_footer_branch
      %12 = sbr.rel target = $region3
    $region8: #{encoder_forward.1} parent=1 // loop_exit
      _
    %3498 = vsyncpa [#allocation3], 1
    %s3499 = scalar_lea.sflag [#allocation3], 1
    %3500 = vsyncpa %s3499, 1
    %3501 = vsyncpa [#allocation5], 1

</llo_original>
